<compile_context>
chip_gen: v7x
topology: tpu7x:2x2x1
jax: 0.10.0
libtpu: 0.0.40
codegen_flags: <defaults>
</compile_context>

<pallas_src>
import functools

import jax
import jax.numpy as jnp
from jax import lax
from jax.experimental import pallas as pl
from jax.experimental.pallas import tpu as pltpu


def _ca_layer_kernel(x_ref, w1_ref, b1_ref, w2t_ref, b2_ref, o_ref, *, use_bf16):
    """One CA layer on one image: conv3x3(valid) -> ReLU -> conv3x3(valid).

    x_ref   : (1, H, W, Cin)      NHWC image (channels on lanes = matmul K)
    w1_ref  : (9*Cin, Chid)       conv1 weights, im2col layout
    b1_ref  : (1, Chid)
    w2t_ref : (Cout, 9*Chid)      conv2 weights, pre-transposed
    b2_ref  : (Cout, 1)
    o_ref   : (1, Cout, Ho*Wo)    NCHW output, spatial flattened onto lanes
    """
    _, H, W, Cin = x_ref.shape
    Chid = w1_ref.shape[1]
    H1, W1 = H - 2, W - 2          # after conv1
    H2, W2 = H1 - 2, W1 - 2        # after conv2

    mm_dtype = jnp.bfloat16 if use_bf16 else None

    x = x_ref[0]                                            # (H, W, Cin)

    # ---- conv1: single im2col matmul, K = 9*Cin ----------------------------
    cols = [x[dy:dy + H1, dx:dx + W1, :].reshape(H1 * W1, Cin)
            for dy in range(3) for dx in range(3)]
    p1 = jnp.concatenate(cols, axis=1)                      # (H1*W1, 9*Cin)
    w1 = w1_ref[...]
    if mm_dtype is not None:
        p1, w1 = p1.astype(mm_dtype), w1.astype(mm_dtype)
    h = jnp.dot(p1, w1, preferred_element_type=jnp.float32)
    h = jnp.maximum(h + b1_ref[...], 0.0)                   # bias + ReLU in f32 (VPU)
    h = h.reshape(H1, W1, Chid)

    # ---- conv2: single im2col matmul, K = 9*Chid, emitted transposed -------
    cols2 = [h[dy:dy + H2, dx:dx + W2, :].reshape(H2 * W2, Chid)
             for dy in range(3) for dx in range(3)]
    p2 = jnp.concatenate(cols2, axis=1)                     # (H2*W2, 9*Chid)
    w2t = w2t_ref[...]
    if mm_dtype is not None:
        p2, w2t = p2.astype(mm_dtype), w2t.astype(mm_dtype)
    # (Cout, 9*Chid) @ (H2*W2, 9*Chid)^T -> (Cout, H2*W2): output channels land
    # on sublanes and flattened spatial on 144 lanes, so the store below is a
    # lane-dense NCHW store with no in-kernel transpose.
    o_t = lax.dot_general(w2t, p2, (((1,), (1,)), ((), ())),
                          preferred_element_type=jnp.float32)
    o_t = o_t + b2_ref[...]                                 # (Cout, 1) broadcast

    o_ref[0] = o_t.astype(o_ref.dtype)


def ca_layer_pallas(x_nhwc, w1_2d, b1_2d, w2_t, b2_col, *, use_bf16=False):
    """Apply one CA layer to an NHWC batch; returns (N, Cout, Ho*Wo) NCHW-flat."""
    N, H, W, Cin = x_nhwc.shape
    Chid = w1_2d.shape[1]
    Cout = w2_t.shape[0]
    Ho, Wo = H - 4, W - 4
    H1, W1 = H - 2, W - 2

    flops = 2 * N * (H1 * W1 * 9 * Cin * Chid + Ho * Wo * 9 * Chid * Cout)
    bytes_accessed = 4 * (x_nhwc.size + w1_2d.size + b1_2d.size
                          + w2_t.size + b2_col.size + N * Cout * Ho * Wo)

    kernel = functools.partial(_ca_layer_kernel, use_bf16=use_bf16)

    return pl.pallas_call(
        kernel,
        out_shape=jax.ShapeDtypeStruct((N, Cout, Ho * Wo), x_nhwc.dtype),
        grid_spec=pltpu.PrefetchScalarGridSpec(
            num_scalar_prefetch=0,
            grid=(N,),
            in_specs=[
                pl.BlockSpec((1, H, W, Cin), lambda n: (n, 0, 0, 0)),
                pl.BlockSpec((9 * Cin, Chid), lambda n: (0, 0)),   # grid-invariant
                pl.BlockSpec((1, Chid), lambda n: (0, 0)),
                pl.BlockSpec((Cout, 9 * Chid), lambda n: (0, 0)),
                pl.BlockSpec((Cout, 1), lambda n: (0, 0)),
            ],
            out_specs=pl.BlockSpec((1, Cout, Ho * Wo), lambda n: (n, 0, 0)),
        ),
        compiler_params=pltpu.CompilerParams(
            dimension_semantics=("parallel",)),     # 2 images -> both v7x TCs
        cost_estimate=pl.CostEstimate(
            flops=flops, transcendentals=0, bytes_accessed=bytes_accessed),
    )(x_nhwc, w1_2d, b1_2d, w2_t, b2_col)


@functools.partial(jax.jit, static_argnames=("use_bf16",))
def ca_forward(x_nchw, w1, b1, w2, b2, use_bf16=False):
    """One CA layer on an NCHW batch; w1/w2 are HWIO (3,3,Cin,Cout)."""
    N, Cin, H, W = x_nchw.shape
    Chid = w1.shape[3]
    Cout = w2.shape[3]
    x_nhwc = jnp.transpose(x_nchw, (0, 2, 3, 1))            # channels -> lane (K) axis
    # 2-D weight layouts matching the in-kernel im2col column order (ky,kx,cin):
    #   conv1: (9*Cin, Chid);  conv2 pre-transposed: (Cout, 9*Chid) so the
    #   kernel's NT matmul emits the NCHW result directly.
    w1_2d = w1.reshape(9 * Cin, Chid)
    w2_t = jnp.transpose(w2.reshape(9 * Chid, Cout))
    out = ca_layer_pallas(x_nhwc, w1_2d, b1.reshape(1, Chid),
                          w2_t, b2.reshape(Cout, 1), use_bf16=use_bf16)
    return out.reshape(N, Cout, H - 4, W - 4)               # free reshape; no transpose


class CAModelPallas:
    """JAX/Pallas port of CAModel: 32 identical-shape conv blocks, cycled by call count."""

    def __init__(self, env_d, hidden_d, key, use_bf16=False):
        self.sc = 0
        self.lc = 32
        self.env_d = env_d
        self.hidden_d = hidden_d
        self.use_bf16 = use_bf16          # set True on v6e/v7x for bf16 MXU inputs
        self.lays = []
        for _ in range(self.lc):
            k1, k2, k3, k4, key = jax.random.split(key, 5)
            # Deterministic synthetic init (uniform, PyTorch-like fan-in scale).
            bound1 = 1.0 / (env_d * 9) ** 0.5
            bound2 = 1.0 / (hidden_d * 9) ** 0.5
            w1 = jax.random.uniform(k1, (3, 3, env_d, hidden_d),
                                    jnp.float32, -bound1, bound1)
            b1 = jax.random.uniform(k2, (hidden_d,), jnp.float32, -bound1, bound1)
            w2 = jax.random.uniform(k3, (3, 3, hidden_d, env_d),
                                    jnp.float32, -bound2, bound2)
            b2 = jax.random.uniform(k4, (env_d,), jnp.float32, -bound2, bound2)
            self.lays.append((w1, b1, w2, b2))

    def forward(self, x_nchw):
        # TODO(synk): if several of the 32 layers are applied back-to-back, fuse
        # them into one pallas_call (stacked weights + scalar-prefetched layer
        # index, activation resident in VMEM); not done here because each layer
        # shrinks the spatial dims by 4, so block shapes differ per layer and
        # the module contract is one layer per call.
        w1, b1, w2, b2 = self.lays[self.sc % self.lc]
        self.sc += 1
        return ca_forward(x_nchw, w1, b1, w2, b2, use_bf16=self.use_bf16)


def _reference_forward(x_nchw, w1, b1, w2, b2):
    """Pure-JAX reference (NCHW, valid conv) for correctness check."""
    dn = lax.conv_dimension_numbers(x_nchw.shape, (3, 3, 1, 1), ("NCHW", "HWIO", "NCHW"))
    h = lax.conv_general_dilated(x_nchw, w1, (1, 1), "VALID", dimension_numbers=dn)
    h = jnp.maximum(h + b1[None, :, None, None], 0.0)
    dn2 = lax.conv_dimension_numbers(h.shape, (3, 3, 1, 1), ("NCHW", "HWIO", "NCHW"))
    o = lax.conv_general_dilated(h, w2, (1, 1), "VALID", dimension_numbers=dn2)
    return o + b2[None, :, None, None]


if __name__ == "__main__":
    key = jax.random.PRNGKey(0)
    k_params, k_x = jax.random.split(key)

    env_d, hidden_d = 4, 32
    N, H, W = 2, 16, 16

    model = CAModelPallas(env_d, hidden_d, k_params)
    x = jax.random.normal(k_x, (N, env_d, H, W), jnp.float32)   # NCHW like PyTorch

    out0 = jax.block_until_ready(model.forward(x))   # layer 0 (sc=0 -> lA)
    out1 = jax.block_until_ready(model.forward(x))   # layer 1 (sc incremented)

    assert out0.shape == (N, env_d, H - 4, W - 4), out0.shape
    assert out1.shape == (N, env_d, H - 4, W - 4), out1.shape

    for out, lay in ((out0, model.lays[0]), (out1, model.lays[1])):
        ref = jax.block_until_ready(_reference_forward(x, *lay))
        err = float(jnp.max(jnp.abs(out - ref)))
        assert jnp.allclose(out, ref, atol=1e-4, rtol=1e-4), err

    print("KERNEL_OK")
</pallas_src>

<mosaic_0001>
module attributes {stable_mosaic.version = 11 : i64} {
  func.func @_ca_layer_kernel(%arg0: i32, %arg1: memref<1x16x16x4xf32, #tpu.memory_space<vmem>>, %arg2: memref<36x32xf32, #tpu.memory_space<vmem>>, %arg3: memref<1x32xf32, #tpu.memory_space<vmem>>, %arg4: memref<4x288xf32, #tpu.memory_space<vmem>>, %arg5: memref<4x1xf32, #tpu.memory_space<vmem>>, %arg6: memref<1x4x144xf32, #tpu.memory_space<vmem>>) attributes {dimension_semantics = [#tpu.dimension_semantics<parallel>], iteration_bounds = array<i64: 2>, scalar_prefetch = 0 : i64, scratch_operands = 0 : i64, tpu.core_type = #tpu.core_type<tc>, window_params = [{transform_indices = @transform_0, window_bounds = array<i64: 1, 16, 16, 4>}, {pipeline_mode = #tpu.pipeline_mode<synchronous>, transform_indices = @transform_1, window_bounds = array<i64: 36, 32>}, {pipeline_mode = #tpu.pipeline_mode<synchronous>, transform_indices = @transform_2, window_bounds = array<i64: 1, 32>}, {pipeline_mode = #tpu.pipeline_mode<synchronous>, transform_indices = @transform_3, window_bounds = array<i64: 4, 288>}, {pipeline_mode = #tpu.pipeline_mode<synchronous>, transform_indices = @transform_4, window_bounds = array<i64: 4, 1>}, {transform_indices = @transform_5, window_bounds = array<i64: 1, 4, 144>}]} {
    %c0 = arith.constant 0 : index
    %c0_0 = arith.constant 0 : index
    %c0_1 = arith.constant 0 : index
    %c0_2 = arith.constant 0 : index
    %0 = vector.load %arg1[%c0, %c0_0, %c0_1, %c0_2] : memref<1x16x16x4xf32, #tpu.memory_space<vmem>>, vector<1x16x16x4xf32>
    %1 = vector.shape_cast %0 : vector<1x16x16x4xf32> to vector<16x16x4xf32>
    %2 = vector.extract_strided_slice %1 {offsets = [0, 0, 0], sizes = [14, 14, 4], strides = [1, 1, 1]} : vector<16x16x4xf32> to vector<14x14x4xf32>
    %3 = vector.shape_cast %2 : vector<14x14x4xf32> to vector<196x4xf32>
    %4 = vector.extract_strided_slice %1 {offsets = [0, 1, 0], sizes = [14, 14, 4], strides = [1, 1, 1]} : vector<16x16x4xf32> to vector<14x14x4xf32>
    %5 = vector.shape_cast %4 : vector<14x14x4xf32> to vector<196x4xf32>
    %6 = vector.extract_strided_slice %1 {offsets = [0, 2, 0], sizes = [14, 14, 4], strides = [1, 1, 1]} : vector<16x16x4xf32> to vector<14x14x4xf32>
    %7 = vector.shape_cast %6 : vector<14x14x4xf32> to vector<196x4xf32>
    %8 = vector.extract_strided_slice %1 {offsets = [1, 0, 0], sizes = [14, 14, 4], strides = [1, 1, 1]} : vector<16x16x4xf32> to vector<14x14x4xf32>
    %9 = vector.shape_cast %8 : vector<14x14x4xf32> to vector<196x4xf32>
    %10 = vector.extract_strided_slice %1 {offsets = [1, 1, 0], sizes = [14, 14, 4], strides = [1, 1, 1]} : vector<16x16x4xf32> to vector<14x14x4xf32>
    %11 = vector.shape_cast %10 : vector<14x14x4xf32> to vector<196x4xf32>
    %12 = vector.extract_strided_slice %1 {offsets = [1, 2, 0], sizes = [14, 14, 4], strides = [1, 1, 1]} : vector<16x16x4xf32> to vector<14x14x4xf32>
    %13 = vector.shape_cast %12 : vector<14x14x4xf32> to vector<196x4xf32>
    %14 = vector.extract_strided_slice %1 {offsets = [2, 0, 0], sizes = [14, 14, 4], strides = [1, 1, 1]} : vector<16x16x4xf32> to vector<14x14x4xf32>
    %15 = vector.shape_cast %14 : vector<14x14x4xf32> to vector<196x4xf32>
    %16 = vector.extract_strided_slice %1 {offsets = [2, 1, 0], sizes = [14, 14, 4], strides = [1, 1, 1]} : vector<16x16x4xf32> to vector<14x14x4xf32>
    %17 = vector.shape_cast %16 : vector<14x14x4xf32> to vector<196x4xf32>
    %18 = vector.extract_strided_slice %1 {offsets = [2, 2, 0], sizes = [14, 14, 4], strides = [1, 1, 1]} : vector<16x16x4xf32> to vector<14x14x4xf32>
    %19 = vector.shape_cast %18 : vector<14x14x4xf32> to vector<196x4xf32>
    %20 = tpu.concatenate %3, %5, %7, %9, %11, %13, %15, %17, %19 in 1 : vector<196x4xf32>, vector<196x4xf32>, vector<196x4xf32>, vector<196x4xf32>, vector<196x4xf32>, vector<196x4xf32>, vector<196x4xf32>, vector<196x4xf32>, vector<196x4xf32> -> vector<196x36xf32>
    %c0_3 = arith.constant 0 : index
    %c0_4 = arith.constant 0 : index
    %21 = vector.load %arg2[%c0_3, %c0_4] : memref<36x32xf32, #tpu.memory_space<vmem>>, vector<36x32xf32>
    %cst = arith.constant dense<0.000000e+00> : vector<196x32xf32>
    %22 = tpu.matmul %20, %21, %cst {dimension_numbers = #tpu.dot_dimension_numbers<[1], [0], [0], [1], [0, 0, 1, 1], [], []>} : vector<196x36xf32>, vector<36x32xf32>, vector<196x32xf32> -> vector<196x32xf32>
    %c0_5 = arith.constant 0 : index
    %c0_6 = arith.constant 0 : index
    %23 = vector.load %arg3[%c0_5, %c0_6] : memref<1x32xf32, #tpu.memory_space<vmem>>, vector<1x32xf32>
    %24 = vector.broadcast %23 : vector<1x32xf32> to vector<196x32xf32>
    %25 = arith.addf %22, %24 : vector<196x32xf32>
    %cst_7 = arith.constant 0.000000e+00 : f32
    %26 = vector.broadcast %cst_7 : f32 to vector<196x32xf32>
    %27 = arith.maximumf %25, %26 : vector<196x32xf32>
    %28 = vector.shape_cast %27 : vector<196x32xf32> to vector<14x14x32xf32>
    %29 = vector.extract_strided_slice %28 {offsets = [0, 0, 0], sizes = [12, 12, 32], strides = [1, 1, 1]} : vector<14x14x32xf32> to vector<12x12x32xf32>
    %30 = vector.shape_cast %29 : vector<12x12x32xf32> to vector<144x32xf32>
    %31 = vector.extract_strided_slice %28 {offsets = [0, 1, 0], sizes = [12, 12, 32], strides = [1, 1, 1]} : vector<14x14x32xf32> to vector<12x12x32xf32>
    %32 = vector.shape_cast %31 : vector<12x12x32xf32> to vector<144x32xf32>
    %33 = vector.extract_strided_slice %28 {offsets = [0, 2, 0], sizes = [12, 12, 32], strides = [1, 1, 1]} : vector<14x14x32xf32> to vector<12x12x32xf32>
    %34 = vector.shape_cast %33 : vector<12x12x32xf32> to vector<144x32xf32>
    %35 = vector.extract_strided_slice %28 {offsets = [1, 0, 0], sizes = [12, 12, 32], strides = [1, 1, 1]} : vector<14x14x32xf32> to vector<12x12x32xf32>
    %36 = vector.shape_cast %35 : vector<12x12x32xf32> to vector<144x32xf32>
    %37 = vector.extract_strided_slice %28 {offsets = [1, 1, 0], sizes = [12, 12, 32], strides = [1, 1, 1]} : vector<14x14x32xf32> to vector<12x12x32xf32>
    %38 = vector.shape_cast %37 : vector<12x12x32xf32> to vector<144x32xf32>
    %39 = vector.extract_strided_slice %28 {offsets = [1, 2, 0], sizes = [12, 12, 32], strides = [1, 1, 1]} : vector<14x14x32xf32> to vector<12x12x32xf32>
    %40 = vector.shape_cast %39 : vector<12x12x32xf32> to vector<144x32xf32>
    %41 = vector.extract_strided_slice %28 {offsets = [2, 0, 0], sizes = [12, 12, 32], strides = [1, 1, 1]} : vector<14x14x32xf32> to vector<12x12x32xf32>
    %42 = vector.shape_cast %41 : vector<12x12x32xf32> to vector<144x32xf32>
    %43 = vector.extract_strided_slice %28 {offsets = [2, 1, 0], sizes = [12, 12, 32], strides = [1, 1, 1]} : vector<14x14x32xf32> to vector<12x12x32xf32>
    %44 = vector.shape_cast %43 : vector<12x12x32xf32> to vector<144x32xf32>
    %45 = vector.extract_strided_slice %28 {offsets = [2, 2, 0], sizes = [12, 12, 32], strides = [1, 1, 1]} : vector<14x14x32xf32> to vector<12x12x32xf32>
    %46 = vector.shape_cast %45 : vector<12x12x32xf32> to vector<144x32xf32>
    %47 = tpu.concatenate %30, %32, %34, %36, %38, %40, %42, %44, %46 in 1 : vector<144x32xf32>, vector<144x32xf32>, vector<144x32xf32>, vector<144x32xf32>, vector<144x32xf32>, vector<144x32xf32>, vector<144x32xf32>, vector<144x32xf32>, vector<144x32xf32> -> vector<144x288xf32>
    %c0_8 = arith.constant 0 : index
    %c0_9 = arith.constant 0 : index
    %48 = vector.load %arg4[%c0_8, %c0_9] : memref<4x288xf32, #tpu.memory_space<vmem>>, vector<4x288xf32>
    %cst_10 = arith.constant dense<0.000000e+00> : vector<4x144xf32>
    %49 = tpu.matmul %48, %47, %cst_10 {dimension_numbers = #tpu.dot_dimension_numbers<[1], [1], [0], [0], [0, 0, 1, 0], [], []>} : vector<4x288xf32>, vector<144x288xf32>, vector<4x144xf32> -> vector<4x144xf32>
    %c0_11 = arith.constant 0 : index
    %c0_12 = arith.constant 0 : index
    %50 = vector.load %arg5[%c0_11, %c0_12] : memref<4x1xf32, #tpu.memory_space<vmem>>, vector<4x1xf32>
    %51 = vector.broadcast %50 : vector<4x1xf32> to vector<4x144xf32>
    %52 = arith.addf %49, %51 : vector<4x144xf32>
    %c0_13 = arith.constant 0 : index
    %c0_14 = arith.constant 0 : index
    %c0_15 = arith.constant 0 : index
    %53 = vector.load %arg6[%c0_13, %c0_14, %c0_15] : memref<1x4x144xf32, #tpu.memory_space<vmem>>, vector<1x4x144xf32>
    %54 = vector.shape_cast %53 : vector<1x4x144xf32> to vector<4x144xf32>
    %55 = vector.shape_cast %52 : vector<4x144xf32> to vector<1x4x144xf32>
    tpu.vector_store %arg6[%c0_13, %c0_14, %c0_15], %55 {strides = array<i32>} : memref<1x4x144xf32, #tpu.memory_space<vmem>>, vector<1x4x144xf32>,
    return
  }
  func.func @transform_0(%arg0: i32) -> (i32, i32, i32, i32) {
    %c0_i32 = arith.constant 0 : i32
    %c0_i32_0 = arith.constant 0 : i32
    %c0_i32_1 = arith.constant 0 : i32
    %c0_i32_2 = arith.constant 0 : i32
    return %arg0, %c0_i32, %c0_i32_0, %c0_i32_1 : i32, i32, i32, i32
  }
  func.func @transform_1(%arg0: i32) -> (i32, i32) {
    %c0_i32 = arith.constant 0 : i32
    %c0_i32_0 = arith.constant 0 : i32
    %c0_i32_1 = arith.constant 0 : i32
    return %c0_i32, %c0_i32_0 : i32, i32
  }
  func.func @transform_2(%arg0: i32) -> (i32, i32) {
    %c0_i32 = arith.constant 0 : i32
    %c0_i32_0 = arith.constant 0 : i32
    %c0_i32_1 = arith.constant 0 : i32
    return %c0_i32, %c0_i32_0 : i32, i32
  }
  func.func @transform_3(%arg0: i32) -> (i32, i32) {
    %c0_i32 = arith.constant 0 : i32
    %c0_i32_0 = arith.constant 0 : i32
    %c0_i32_1 = arith.constant 0 : i32
    return %c0_i32, %c0_i32_0 : i32, i32
  }
  func.func @transform_4(%arg0: i32) -> (i32, i32) {
    %c0_i32 = arith.constant 0 : i32
    %c0_i32_0 = arith.constant 0 : i32
    %c0_i32_1 = arith.constant 0 : i32
    return %c0_i32, %c0_i32_0 : i32, i32
  }
  func.func @transform_5(%arg0: i32) -> (i32, i32, i32) {
    %c0_i32 = arith.constant 0 : i32
    %c0_i32_0 = arith.constant 0 : i32
    %c0_i32_1 = arith.constant 0 : i32
    return %arg0, %c0_i32, %c0_i32_0 : i32, i32, i32
  }
}

</mosaic_0001>

<llo_original>
// kernel: ca_forward.1
$region0: #{ca_forward.1}
  #allocation0 [shape = 'u32[]', space=smem, size = 0x4, offset = 0x4, fixed_abs, tag = 'smem constant byte address 0x4 - core index']
  #allocation1 [shape = 'u32[144,128]{1,0:T(1,128)}', space=vmem, size = 0x12000, scoped, tag = 'internal scratch']
  %s0 = inlined_call_operand.vmem [shape: f32[2,16,16,4], index: 0, kind: input, shape index: {}]
  %s1 = inlined_call_operand.vmem [shape: f32[36,32], index: 1, kind: input, shape index: {}]
  %s2 = inlined_call_operand.vmem [shape: f32[1,32], index: 2, kind: input, shape index: {}]
  %s3 = inlined_call_operand.vmem [shape: f32[4,288], index: 3, kind: input, shape index: {}]
  %s4 = inlined_call_operand.vmem [shape: f32[4,1], index: 4, kind: input, shape index: {}]
  %s5 = inlined_call_operand.vmem [shape: f32[2,4,144], index: 5, kind: output, shape index: {}]
  %s6 = sld [smem:[#allocation0]]
  $region53: #{ca_forward.1} parent=0
    _
  %s8 = ssub.s32 1, %s6
  %s9 = scalar_select 0, %s8, %s6
  loop: start=0, step=1, limit=4
  $region2: #{ca_forward.1} parent=0 // loop_pre_header
    _
  $region3: #{ca_forward.1} parent=0 // loop_header
    %s11 = sphi 0, %s15
    %p12 = scmp.ge.s32.totalorder %s11, 4
    %s21 = sphi 0, %s23
    %s24 = sphi 0, %s21
    %s25 = sphi 0, %s24
    %s41 = sphi 0, %s25
    %s45 = sphi 0, %s45
    %s47 = sphi 0, %s45
    %s48 = sphi 0, %s47
    %s62 = sphi 0, %s48
    %s66 = sphi 0, %s66
    %s68 = sphi 0, %s66
    %s69 = sphi 0, %s68
    %s83 = sphi 0, %s69
    %s87 = sphi 0, %s87
    %s89 = sphi 0, %s87
    %s90 = sphi 0, %s89
    %s104 = sphi 0, %s90
    %s108 = sphi 0, %s108
    %s110 = sphi 0, %s108
    %s111 = sphi 0, %s110
    %s125 = sphi 0, %s111
    %s131 = sphi 0, %s133
    %s134 = sphi 0, %s131
    %s135 = sphi 0, %s134
    %s151 = sphi 0, %s135
  $region4: #{ca_forward.1} parent=0 // loop_header_branch
    %14 = sbr.rel (%p12) target = $region8
  $region5: #{ca_forward.1} parent=0 // loop_body
    %s16 = ssub.s32 %s11, 1
    %s17 = ssub.s32 %s11, 2
    %s18 = sadd.s32 %s11, 1
    %s19 = ssub.s32 %s11, %s18
    %p20 = scmp.eq.s32.totalorder %s19, 0
    %s22 = sadd.s32 %s21, 1
    %s23 = scalar_select %p20, %s21, %s22
    %p26 = pneg %p20
    %p27 = scmp.eq.s32.totalorder %s11, 1
    %p28 = por %p26, %p27
    %p29 = scmp.ne.s32.totalorder %s21, %s24
    %p30 = scmp.eq.s32.totalorder %s11, 0
    %p31 = por %p29, %p30
    %p32 = scmp.ne.s32.totalorder %s21, %s24
    %p33 = scmp.eq.s32.totalorder %s16, 1
    %p34 = por %p32, %p33
    %p35 = scmp.ne.s32.totalorder %s24, %s25
    %p36 = scmp.eq.s32.totalorder %s16, 0
    %p37 = por %p35, %p36
    %p38 = scmp.ne.s32.totalorder %s24, %s25
    %p39 = scmp.eq.s32.totalorder %s17, 1
    %p40 = por %p38, %p39
    %p42 = scmp.ne.s32.totalorder %s25, %s41
    %p43 = scmp.eq.s32.totalorder %s17, 0
    %p44 = por %p42, %p43
    %s46 = sadd.s32 %s45, 1
    %p49 = scmp.eq.s32.totalorder %s11, 1
    %p50 = scmp.ne.s32.totalorder %s45, %s47
    %p51 = scmp.eq.s32.totalorder %s11, 0
    %p52 = por %p50, %p51
    %p53 = scmp.ne.s32.totalorder %s45, %s47
    %p54 = scmp.eq.s32.totalorder %s16, 1
    %p55 = por %p53, %p54
    %p56 = scmp.ne.s32.totalorder %s47, %s48
    %p57 = scmp.eq.s32.totalorder %s16, 0
    %p58 = por %p56, %p57
    %p59 = scmp.ne.s32.totalorder %s47, %s48
    %p60 = scmp.eq.s32.totalorder %s17, 1
    %p61 = por %p59, %p60
    %p63 = scmp.ne.s32.totalorder %s48, %s62
    %p64 = scmp.eq.s32.totalorder %s17, 0
    %p65 = por %p63, %p64
    %s67 = sadd.s32 %s66, 1
    %p70 = scmp.eq.s32.totalorder %s11, 1
    %p71 = scmp.ne.s32.totalorder %s66, %s68
    %p72 = scmp.eq.s32.totalorder %s11, 0
    %p73 = por %p71, %p72
    %p74 = scmp.ne.s32.totalorder %s66, %s68
    %p75 = scmp.eq.s32.totalorder %s16, 1
    %p76 = por %p74, %p75
    %p77 = scmp.ne.s32.totalorder %s68, %s69
    %p78 = scmp.eq.s32.totalorder %s16, 0
    %p79 = por %p77, %p78
    %p80 = scmp.ne.s32.totalorder %s68, %s69
    %p81 = scmp.eq.s32.totalorder %s17, 1
    %p82 = por %p80, %p81
    %p84 = scmp.ne.s32.totalorder %s69, %s83
    %p85 = scmp.eq.s32.totalorder %s17, 0
    %p86 = por %p84, %p85
    %s88 = sadd.s32 %s87, 1
    %p91 = scmp.eq.s32.totalorder %s11, 1
    %p92 = scmp.ne.s32.totalorder %s87, %s89
    %p93 = scmp.eq.s32.totalorder %s11, 0
    %p94 = por %p92, %p93
    %p95 = scmp.ne.s32.totalorder %s87, %s89
    %p96 = scmp.eq.s32.totalorder %s16, 1
    %p97 = por %p95, %p96
    %p98 = scmp.ne.s32.totalorder %s89, %s90
    %p99 = scmp.eq.s32.totalorder %s16, 0
    %p100 = por %p98, %p99
    %p101 = scmp.ne.s32.totalorder %s89, %s90
    %p102 = scmp.eq.s32.totalorder %s17, 1
    %p103 = por %p101, %p102
    %p105 = scmp.ne.s32.totalorder %s90, %s104
    %p106 = scmp.eq.s32.totalorder %s17, 0
    %p107 = por %p105, %p106
    %s109 = sadd.s32 %s108, 1
    %p112 = scmp.eq.s32.totalorder %s11, 1
    %p113 = scmp.ne.s32.totalorder %s108, %s110
    %p114 = scmp.eq.s32.totalorder %s11, 0
    %p115 = por %p113, %p114
    %p116 = scmp.ne.s32.totalorder %s108, %s110
    %p117 = scmp.eq.s32.totalorder %s16, 1
    %p118 = por %p116, %p117
    %p119 = scmp.ne.s32.totalorder %s110, %s111
    %p120 = scmp.eq.s32.totalorder %s16, 0
    %p121 = por %p119, %p120
    %p122 = scmp.ne.s32.totalorder %s110, %s111
    %p123 = scmp.eq.s32.totalorder %s17, 1
    %p124 = por %p122, %p123
    %p126 = scmp.ne.s32.totalorder %s111, %s125
    %p127 = scmp.eq.s32.totalorder %s17, 0
    %p128 = por %p126, %p127
    %s129 = ssub.s32 %s11, %s18
    %p130 = scmp.eq.s32.totalorder %s129, 0
    %s132 = sadd.s32 %s131, 1
    %s133 = scalar_select %p130, %s131, %s132
    %p136 = pneg %p130
    %p137 = scmp.eq.s32.totalorder %s11, 1
    %p138 = por %p136, %p137
    %p139 = scmp.ne.s32.totalorder %s131, %s134
    %p140 = scmp.eq.s32.totalorder %s11, 0
    %p141 = por %p139, %p140
    %p142 = scmp.ne.s32.totalorder %s131, %s134
    %p143 = scmp.eq.s32.totalorder %s16, 1
    %p144 = por %p142, %p143
    %p145 = scmp.ne.s32.totalorder %s134, %s135
    %p146 = scmp.eq.s32.totalorder %s16, 0
    %p147 = por %p145, %p146
    %p148 = scmp.ne.s32.totalorder %s134, %s135
    %p149 = scmp.eq.s32.totalorder %s17, 1
    %p150 = por %p148, %p149
    %p152 = scmp.ne.s32.totalorder %s135, %s151
    %p153 = scmp.eq.s32.totalorder %s17, 0
    %p154 = por %p152, %p153
    %p155 = scmp.le.s32.totalorder 1, %s11
    %p156 = scmp.lt.s32.totalorder %s11, 3
    %p157 = pnand %p155, %p156
    %p158 = pneg %p157
    // Predicated region
    $region9: #{ca_forward.1} parent=5 // pred_check
      _
    $region10: #{ca_forward.1} parent=5 // pred_check_branch
      %160 = sbr.rel (%p157) target = $region12
    $region11: #{ca_forward.1} parent=5 // pred_region
      %s161 = ssub.s32 %s11, 1
      // Predicated region
      $region13: #{ca_forward.1} parent=11 // pred_check
        %p162 = pneg %p58
      $region14: #{ca_forward.1} parent=11 // pred_check_branch
        %164 = sbr.rel (%p162) target = $region16
      $region15: #{ca_forward.1} parent=11 // pred_region
        _
      $region16: #{ca_forward.1} parent=11 // pred_fallthru
        _
      // Predicated region
      $region17: #{ca_forward.1} parent=11 // pred_check
        %p165 = pneg %p79
      $region18: #{ca_forward.1} parent=11 // pred_check_branch
        %167 = sbr.rel (%p165) target = $region20
      $region19: #{ca_forward.1} parent=11 // pred_region
        _
      $region20: #{ca_forward.1} parent=11 // pred_fallthru
        _
      // Predicated region
      $region21: #{ca_forward.1} parent=11 // pred_check
        %p168 = pneg %p100
      $region22: #{ca_forward.1} parent=11 // pred_check_branch
        %170 = sbr.rel (%p168) target = $region24
      $region23: #{ca_forward.1} parent=11 // pred_region
        _
      $region24: #{ca_forward.1} parent=11 // pred_fallthru
        _
      // Predicated region
      $region25: #{ca_forward.1} parent=11 // pred_check
        %p171 = pneg %p121
      $region26: #{ca_forward.1} parent=11 // pred_check_branch
        %173 = sbr.rel (%p171) target = $region28
      $region27: #{ca_forward.1} parent=11 // pred_region
        _
      $region28: #{ca_forward.1} parent=11 // pred_fallthru
        _
    $region12: #{ca_forward.1} parent=5 // pred_fallthru
      _
    %p174 = scmp.lt.s32.totalorder %s11, 2
    // Predicated region
    $region29: #{ca_forward.1} parent=5 // pred_check
      %p175 = pneg %p174
    $region30: #{ca_forward.1} parent=5 // pred_check_branch
      %177 = sbr.rel (%p175) target = $region32
    $region31: #{ca_forward.1} parent=5 // pred_region
      // Predicated region
      $region33: #{ca_forward.1} parent=31 // pred_check
        %p178 = pneg %p31
      $region34: #{ca_forward.1} parent=31 // pred_check_branch
        %180 = sbr.rel (%p178) target = $region36
      $region35: #{ca_forward.1} parent=31 // pred_region
        %p181 = scmp.lt.s32.totalorder %s11, 1
        %s182 = scalar_select %p181, %s11, 1
        %s183 = smul.addr %s182, 32
        %s184 = smul.addr %s183, 8
        %s185 = scalar_lea.vmem %s0, %s184
      $region36: #{ca_forward.1} parent=31 // pred_fallthru
        _
    $region32: #{ca_forward.1} parent=5 // pred_fallthru
      _
    %p186 = scmp.le.s32.totalorder 1, %s11
    %p187 = scmp.lt.s32.totalorder %s11, 3
    %p188 = pnand %p186, %p187
    %p189 = pneg %p188
    // Predicated region
    $region37: #{ca_forward.1} parent=5 // pred_check
      _
    $region38: #{ca_forward.1} parent=5 // pred_check_branch
      %191 = sbr.rel (%p188) target = $region40
    $region39: #{ca_forward.1} parent=5 // pred_region
      %s192 = ssub.s32 %s11, 1
      %p193 = scmp.lt.s32.totalorder %s16, 1
      %s194 = scalar_select %p193, %s16, 1
      %s195 = smul.addr %s194, 32
      %s196 = smul.addr %s195, 8
      %s197 = scalar_lea.vmem %s0, %s196
      %p198 = pneg %p37
      %p199 = pneg %p34
      %p200 = pneg %p58
      %p201 = pneg %p55
      %p202 = pneg %p79
      %p203 = pneg %p76
      %p204 = pneg %p100
      %p205 = pneg %p97
      %p206 = pneg %p121
      %p207 = pneg %p118
      %p208 = pneg %p147
      %p209 = pneg %p144
      %p210 = scmp.lt.s32.totalorder %s16, 1
      %s211 = scalar_select %p210, %s16, 1
      %s212 = smul.addr %s211, 2
      %s213 = smul.addr %s212, 4
      %s214 = scalar_lea.vmem %s5, %s213
      %p215 = scmp.lt.s32.totalorder %s16, 1
      %s216 = scalar_select %p215, %s16, 1
      %s217 = smul.addr %s216, 32
      %s218 = smul.addr %s217, 8
      %s219 = scalar_lea.vmem %s0, %s218
      %p220 = scmp.lt.s32.totalorder %s16, 1
      %s221 = scalar_select %p220, %s16, 1
      %s222 = smul.addr %s221, 2
      %s223 = smul.addr %s222, 4
      %s224 = scalar_lea.vmem %s5, %s223
      %v225 = vld [vmem:[%s219] sm:$0xff]
      %v226 = vld [vmem:[%s219 + $0x8] sm:$0xff]
      %v227 = vld [vmem:[%s219 + $0x10] sm:$0xff]
      %v228 = vld [vmem:[%s219 + $0x18] sm:$0xff]
      %v229 = vld [vmem:[%s219 + $0x20] sm:$0xff]
      %v230 = vld [vmem:[%s219 + $0x28] sm:$0xff]
      %v231 = vld [vmem:[%s219 + $0x30] sm:$0xff]
      %v232 = vld [vmem:[%s219 + $0x38] sm:$0xff]
      %v233 = vld [vmem:[%s219 + $0x40] sm:$0xff]
      %v234 = vld [vmem:[%s219 + $0x48] sm:$0xff]
      %v235 = vld [vmem:[%s219 + $0x50] sm:$0xff]
      %v236 = vld [vmem:[%s219 + $0x58] sm:$0xff]
      %v237 = vld [vmem:[%s219 + $0x60] sm:$0xff]
      %v238 = vld [vmem:[%s219 + $0x68] sm:$0xff]
      %v239 = vld [vmem:[%s219 + $0x70] sm:$0xff]
      %v240 = vld [vmem:[%s219 + $0x78] sm:$0xff]
      %v241 = vld [vmem:[%s219 + $0x80] sm:$0xff]
      %v242 = vld [vmem:[%s219 + $0x88] sm:$0xff]
      %v243 = vld [vmem:[%s219 + $0x90] sm:$0xff]
      %v244 = vld [vmem:[%s219 + $0x98] sm:$0xff]
      %v245 = vld [vmem:[%s219 + $0xa0] sm:$0xff]
      %v246 = vld [vmem:[%s219 + $0xa8] sm:$0xff]
      %v247 = vld [vmem:[%s219 + $0xb0] sm:$0xff]
      %v248 = vld [vmem:[%s219 + $0xb8] sm:$0xff]
      %v249 = vld [vmem:[%s219 + $0xc0] sm:$0xff]
      %v250 = vld [vmem:[%s219 + $0xc8] sm:$0xff]
      %v251 = vld [vmem:[%s219 + $0xd0] sm:$0xff]
      %v252 = vld [vmem:[%s219 + $0xd8] sm:$0xff]
      %v253 = vld [vmem:[%s219 + $0xe0] sm:$0xff]
      %v254 = vld [vmem:[%s219 + $0xe8] sm:$0xff]
      %v255 = vld [vmem:[%s219 + $0xf0] sm:$0xff]
      %v256 = vld [vmem:[%s219 + $0xf8] sm:$0xff]
      %v285 = vcombine.high %v225, %v225
      %v287 = vunpack.c.l.s4 1983009808
      %v288 = vunpack.c.0.s8 %v287
      %v289 = vlaneseq
      %v290 = vshrl.u32 %v289, 7
      %v291 = vsub.s32 %v288, %v290
      %v292 = vrot.slane %v225, %v291
      %v294 = vunpack.c.l.s4 1983009808
      %v295 = vunpack.c.0.s8 %v294
      %v296 = vlaneseq
      %v297 = vshrl.u32 %v296, 7
      %v298 = vsub.s32 %v295, %v297
      %v299 = vrot.slane %v285, %v298
      %v300 = vcombine.high %v292, %v292
      %v301 = vcombine.high %v299, %v299
      %v302 = vcombine.high %v226, %v226
      %v304 = vunpack.c.l.s4 1983009808
      %v305 = vunpack.c.0.s8 %v304
      %v306 = vlaneseq
      %v307 = vshrl.u32 %v306, 7
      %v308 = vsub.s32 %v305, %v307
      %v309 = vrot.slane %v226, %v308
      %v311 = vunpack.c.l.s4 1983009808
      %v312 = vunpack.c.0.s8 %v311
      %v313 = vlaneseq
      %v314 = vshrl.u32 %v313, 7
      %v315 = vsub.s32 %v312, %v314
      %v316 = vrot.slane %v302, %v315
      %v317 = vcombine.high %v309, %v309
      %v318 = vcombine.high %v227, %v227
      %v320 = vunpack.c.l.s4 1983009808
      %v321 = vunpack.c.0.s8 %v320
      %v322 = vlaneseq
      %v323 = vshrl.u32 %v322, 7
      %v324 = vsub.s32 %v321, %v323
      %v325 = vrot.slane %v227, %v324
      %v327 = vunpack.c.l.s4 1983009808
      %v328 = vunpack.c.0.s8 %v327
      %v329 = vlaneseq
      %v330 = vshrl.u32 %v329, 7
      %v331 = vsub.s32 %v328, %v330
      %v332 = vrot.slane %v318, %v331
      %v333 = vcombine.high %v325, %v325
      %v334 = vcombine.high %v332, %v332
      %v335 = vcombine.high %v228, %v228
      %v337 = vunpack.c.l.s4 1983009808
      %v338 = vunpack.c.0.s8 %v337
      %v339 = vlaneseq
      %v340 = vshrl.u32 %v339, 7
      %v341 = vsub.s32 %v338, %v340
      %v342 = vrot.slane %v228, %v341
      %v344 = vunpack.c.l.s4 1983009808
      %v345 = vunpack.c.0.s8 %v344
      %v346 = vlaneseq
      %v347 = vshrl.u32 %v346, 7
      %v348 = vsub.s32 %v345, %v347
      %v349 = vrot.slane %v335, %v348
      %v350 = vcombine.high %v342, %v342
      %v351 = vcombine.high %v229, %v229
      %v353 = vunpack.c.l.s4 1983009808
      %v354 = vunpack.c.0.s8 %v353
      %v355 = vlaneseq
      %v356 = vshrl.u32 %v355, 7
      %v357 = vsub.s32 %v354, %v356
      %v358 = vrot.slane %v229, %v357
      %v360 = vunpack.c.l.s4 1983009808
      %v361 = vunpack.c.0.s8 %v360
      %v362 = vlaneseq
      %v363 = vshrl.u32 %v362, 7
      %v364 = vsub.s32 %v361, %v363
      %v365 = vrot.slane %v351, %v364
      %v366 = vcombine.high %v358, %v358
      %v367 = vcombine.high %v365, %v365
      %v368 = vcombine.high %v230, %v230
      %v370 = vunpack.c.l.s4 1983009808
      %v371 = vunpack.c.0.s8 %v370
      %v372 = vlaneseq
      %v373 = vshrl.u32 %v372, 7
      %v374 = vsub.s32 %v371, %v373
      %v375 = vrot.slane %v230, %v374
      %v377 = vunpack.c.l.s4 1983009808
      %v378 = vunpack.c.0.s8 %v377
      %v379 = vlaneseq
      %v380 = vshrl.u32 %v379, 7
      %v381 = vsub.s32 %v378, %v380
      %v382 = vrot.slane %v368, %v381
      %v383 = vcombine.high %v375, %v375
      %v384 = vcombine.high %v231, %v231
      %v386 = vunpack.c.l.s4 1983009808
      %v387 = vunpack.c.0.s8 %v386
      %v388 = vlaneseq
      %v389 = vshrl.u32 %v388, 7
      %v390 = vsub.s32 %v387, %v389
      %v391 = vrot.slane %v231, %v390
      %v393 = vunpack.c.l.s4 1983009808
      %v394 = vunpack.c.0.s8 %v393
      %v395 = vlaneseq
      %v396 = vshrl.u32 %v395, 7
      %v397 = vsub.s32 %v394, %v396
      %v398 = vrot.slane %v384, %v397
      %v399 = vcombine.high %v391, %v391
      %v400 = vcombine.high %v398, %v398
      %v401 = vcombine.high %v232, %v232
      %v403 = vunpack.c.l.s4 1983009808
      %v404 = vunpack.c.0.s8 %v403
      %v405 = vlaneseq
      %v406 = vshrl.u32 %v405, 7
      %v407 = vsub.s32 %v404, %v406
      %v408 = vrot.slane %v232, %v407
      %v410 = vunpack.c.l.s4 1983009808
      %v411 = vunpack.c.0.s8 %v410
      %v412 = vlaneseq
      %v413 = vshrl.u32 %v412, 7
      %v414 = vsub.s32 %v411, %v413
      %v415 = vrot.slane %v401, %v414
      %v416 = vcombine.high %v408, %v408
      %v417 = vcombine.high %v233, %v233
      %v419 = vunpack.c.l.s4 1983009808
      %v420 = vunpack.c.0.s8 %v419
      %v421 = vlaneseq
      %v422 = vshrl.u32 %v421, 7
      %v423 = vsub.s32 %v420, %v422
      %v424 = vrot.slane %v233, %v423
      %v426 = vunpack.c.l.s4 1983009808
      %v427 = vunpack.c.0.s8 %v426
      %v428 = vlaneseq
      %v429 = vshrl.u32 %v428, 7
      %v430 = vsub.s32 %v427, %v429
      %v431 = vrot.slane %v417, %v430
      %v432 = vcombine.high %v424, %v424
      %v433 = vcombine.high %v431, %v431
      %v434 = vcombine.high %v234, %v234
      %v436 = vunpack.c.l.s4 1983009808
      %v437 = vunpack.c.0.s8 %v436
      %v438 = vlaneseq
      %v439 = vshrl.u32 %v438, 7
      %v440 = vsub.s32 %v437, %v439
      %v441 = vrot.slane %v234, %v440
      %v443 = vunpack.c.l.s4 1983009808
      %v444 = vunpack.c.0.s8 %v443
      %v445 = vlaneseq
      %v446 = vshrl.u32 %v445, 7
      %v447 = vsub.s32 %v444, %v446
      %v448 = vrot.slane %v434, %v447
      %v449 = vcombine.high %v441, %v441
      %v450 = vcombine.high %v235, %v235
      %v452 = vunpack.c.l.s4 1983009808
      %v453 = vunpack.c.0.s8 %v452
      %v454 = vlaneseq
      %v455 = vshrl.u32 %v454, 7
      %v456 = vsub.s32 %v453, %v455
      %v457 = vrot.slane %v235, %v456
      %v459 = vunpack.c.l.s4 1983009808
      %v460 = vunpack.c.0.s8 %v459
      %v461 = vlaneseq
      %v462 = vshrl.u32 %v461, 7
      %v463 = vsub.s32 %v460, %v462
      %v464 = vrot.slane %v450, %v463
      %v465 = vcombine.high %v457, %v457
      %v466 = vcombine.high %v464, %v464
      %v467 = vcombine.high %v236, %v236
      %v469 = vunpack.c.l.s4 1983009808
      %v470 = vunpack.c.0.s8 %v469
      %v471 = vlaneseq
      %v472 = vshrl.u32 %v471, 7
      %v473 = vsub.s32 %v470, %v472
      %v474 = vrot.slane %v236, %v473
      %v476 = vunpack.c.l.s4 1983009808
      %v477 = vunpack.c.0.s8 %v476
      %v478 = vlaneseq
      %v479 = vshrl.u32 %v478, 7
      %v480 = vsub.s32 %v477, %v479
      %v481 = vrot.slane %v467, %v480
      %v482 = vcombine.high %v474, %v474
      %v483 = vcombine.high %v237, %v237
      %v485 = vunpack.c.l.s4 1983009808
      %v486 = vunpack.c.0.s8 %v485
      %v487 = vlaneseq
      %v488 = vshrl.u32 %v487, 7
      %v489 = vsub.s32 %v486, %v488
      %v490 = vrot.slane %v237, %v489
      %v492 = vunpack.c.l.s4 1983009808
      %v493 = vunpack.c.0.s8 %v492
      %v494 = vlaneseq
      %v495 = vshrl.u32 %v494, 7
      %v496 = vsub.s32 %v493, %v495
      %v497 = vrot.slane %v483, %v496
      %v498 = vcombine.high %v490, %v490
      %v499 = vcombine.high %v497, %v497
      %v500 = vcombine.high %v238, %v238
      %v502 = vunpack.c.l.s4 1983009808
      %v503 = vunpack.c.0.s8 %v502
      %v504 = vlaneseq
      %v505 = vshrl.u32 %v504, 7
      %v506 = vsub.s32 %v503, %v505
      %v507 = vrot.slane %v238, %v506
      %v509 = vunpack.c.l.s4 1983009808
      %v510 = vunpack.c.0.s8 %v509
      %v511 = vlaneseq
      %v512 = vshrl.u32 %v511, 7
      %v513 = vsub.s32 %v510, %v512
      %v514 = vrot.slane %v500, %v513
      %v515 = vcombine.high %v507, %v507
      %v516 = vcombine.high %v239, %v239
      %v518 = vunpack.c.l.s4 1983009808
      %v519 = vunpack.c.0.s8 %v518
      %v520 = vlaneseq
      %v521 = vshrl.u32 %v520, 7
      %v522 = vsub.s32 %v519, %v521
      %v523 = vrot.slane %v239, %v522
      %v525 = vunpack.c.l.s4 1983009808
      %v526 = vunpack.c.0.s8 %v525
      %v527 = vlaneseq
      %v528 = vshrl.u32 %v527, 7
      %v529 = vsub.s32 %v526, %v528
      %v530 = vrot.slane %v516, %v529
      %v531 = vcombine.high %v523, %v523
      %v532 = vcombine.high %v530, %v530
      %v533 = vcombine.high %v240, %v240
      %v535 = vunpack.c.l.s4 1983009808
      %v536 = vunpack.c.0.s8 %v535
      %v537 = vlaneseq
      %v538 = vshrl.u32 %v537, 7
      %v539 = vsub.s32 %v536, %v538
      %v540 = vrot.slane %v240, %v539
      %v542 = vunpack.c.l.s4 1983009808
      %v543 = vunpack.c.0.s8 %v542
      %v544 = vlaneseq
      %v545 = vshrl.u32 %v544, 7
      %v546 = vsub.s32 %v543, %v545
      %v547 = vrot.slane %v533, %v546
      %v548 = vcombine.high %v540, %v540
      %v549 = vcombine.high %v241, %v241
      %v551 = vunpack.c.l.s4 1983009808
      %v552 = vunpack.c.0.s8 %v551
      %v553 = vlaneseq
      %v554 = vshrl.u32 %v553, 7
      %v555 = vsub.s32 %v552, %v554
      %v556 = vrot.slane %v241, %v555
      %v558 = vunpack.c.l.s4 1983009808
      %v559 = vunpack.c.0.s8 %v558
      %v560 = vlaneseq
      %v561 = vshrl.u32 %v560, 7
      %v562 = vsub.s32 %v559, %v561
      %v563 = vrot.slane %v549, %v562
      %v564 = vcombine.high %v556, %v556
      %v565 = vcombine.high %v563, %v563
      %v566 = vcombine.high %v242, %v242
      %v568 = vunpack.c.l.s4 1983009808
      %v569 = vunpack.c.0.s8 %v568
      %v570 = vlaneseq
      %v571 = vshrl.u32 %v570, 7
      %v572 = vsub.s32 %v569, %v571
      %v573 = vrot.slane %v242, %v572
      %v575 = vunpack.c.l.s4 1983009808
      %v576 = vunpack.c.0.s8 %v575
      %v577 = vlaneseq
      %v578 = vshrl.u32 %v577, 7
      %v579 = vsub.s32 %v576, %v578
      %v580 = vrot.slane %v566, %v579
      %v581 = vcombine.high %v573, %v573
      %v582 = vcombine.high %v243, %v243
      %v584 = vunpack.c.l.s4 1983009808
      %v585 = vunpack.c.0.s8 %v584
      %v586 = vlaneseq
      %v587 = vshrl.u32 %v586, 7
      %v588 = vsub.s32 %v585, %v587
      %v589 = vrot.slane %v243, %v588
      %v591 = vunpack.c.l.s4 1983009808
      %v592 = vunpack.c.0.s8 %v591
      %v593 = vlaneseq
      %v594 = vshrl.u32 %v593, 7
      %v595 = vsub.s32 %v592, %v594
      %v596 = vrot.slane %v582, %v595
      %v597 = vcombine.high %v589, %v589
      %v598 = vcombine.high %v596, %v596
      %v599 = vcombine.high %v244, %v244
      %v601 = vunpack.c.l.s4 1983009808
      %v602 = vunpack.c.0.s8 %v601
      %v603 = vlaneseq
      %v604 = vshrl.u32 %v603, 7
      %v605 = vsub.s32 %v602, %v604
      %v606 = vrot.slane %v244, %v605
      %v608 = vunpack.c.l.s4 1983009808
      %v609 = vunpack.c.0.s8 %v608
      %v610 = vlaneseq
      %v611 = vshrl.u32 %v610, 7
      %v612 = vsub.s32 %v609, %v611
      %v613 = vrot.slane %v599, %v612
      %v614 = vcombine.high %v606, %v606
      %v615 = vcombine.high %v245, %v245
      %v617 = vunpack.c.l.s4 1983009808
      %v618 = vunpack.c.0.s8 %v617
      %v619 = vlaneseq
      %v620 = vshrl.u32 %v619, 7
      %v621 = vsub.s32 %v618, %v620
      %v622 = vrot.slane %v245, %v621
      %v624 = vunpack.c.l.s4 1983009808
      %v625 = vunpack.c.0.s8 %v624
      %v626 = vlaneseq
      %v627 = vshrl.u32 %v626, 7
      %v628 = vsub.s32 %v625, %v627
      %v629 = vrot.slane %v615, %v628
      %v630 = vcombine.high %v622, %v622
      %v631 = vcombine.high %v629, %v629
      %v632 = vcombine.high %v246, %v246
      %v634 = vunpack.c.l.s4 1983009808
      %v635 = vunpack.c.0.s8 %v634
      %v636 = vlaneseq
      %v637 = vshrl.u32 %v636, 7
      %v638 = vsub.s32 %v635, %v637
      %v639 = vrot.slane %v246, %v638
      %v641 = vunpack.c.l.s4 1983009808
      %v642 = vunpack.c.0.s8 %v641
      %v643 = vlaneseq
      %v644 = vshrl.u32 %v643, 7
      %v645 = vsub.s32 %v642, %v644
      %v646 = vrot.slane %v632, %v645
      %v647 = vcombine.high %v639, %v639
      %v648 = vcombine.high %v247, %v247
      %v650 = vunpack.c.l.s4 1983009808
      %v651 = vunpack.c.0.s8 %v650
      %v652 = vlaneseq
      %v653 = vshrl.u32 %v652, 7
      %v654 = vsub.s32 %v651, %v653
      %v655 = vrot.slane %v247, %v654
      %v657 = vunpack.c.l.s4 1983009808
      %v658 = vunpack.c.0.s8 %v657
      %v659 = vlaneseq
      %v660 = vshrl.u32 %v659, 7
      %v661 = vsub.s32 %v658, %v660
      %v662 = vrot.slane %v648, %v661
      %v663 = vcombine.high %v655, %v655
      %v664 = vcombine.high %v662, %v662
      %v665 = vcombine.high %v248, %v248
      %v667 = vunpack.c.l.s4 1983009808
      %v668 = vunpack.c.0.s8 %v667
      %v669 = vlaneseq
      %v670 = vshrl.u32 %v669, 7
      %v671 = vsub.s32 %v668, %v670
      %v672 = vrot.slane %v248, %v671
      %v674 = vunpack.c.l.s4 1983009808
      %v675 = vunpack.c.0.s8 %v674
      %v676 = vlaneseq
      %v677 = vshrl.u32 %v676, 7
      %v678 = vsub.s32 %v675, %v677
      %v679 = vrot.slane %v665, %v678
      %v680 = vcombine.high %v672, %v672
      %v681 = vcombine.high %v249, %v249
      %v683 = vunpack.c.l.s4 1983009808
      %v684 = vunpack.c.0.s8 %v683
      %v685 = vlaneseq
      %v686 = vshrl.u32 %v685, 7
      %v687 = vsub.s32 %v684, %v686
      %v688 = vrot.slane %v249, %v687
      %v690 = vunpack.c.l.s4 1983009808
      %v691 = vunpack.c.0.s8 %v690
      %v692 = vlaneseq
      %v693 = vshrl.u32 %v692, 7
      %v694 = vsub.s32 %v691, %v693
      %v695 = vrot.slane %v681, %v694
      %v696 = vcombine.high %v688, %v688
      %v697 = vcombine.high %v695, %v695
      %v698 = vcombine.high %v250, %v250
      %v700 = vunpack.c.l.s4 1983009808
      %v701 = vunpack.c.0.s8 %v700
      %v702 = vlaneseq
      %v703 = vshrl.u32 %v702, 7
      %v704 = vsub.s32 %v701, %v703
      %v705 = vrot.slane %v250, %v704
      %v707 = vunpack.c.l.s4 1983009808
      %v708 = vunpack.c.0.s8 %v707
      %v709 = vlaneseq
      %v710 = vshrl.u32 %v709, 7
      %v711 = vsub.s32 %v708, %v710
      %v712 = vrot.slane %v698, %v711
      %v713 = vcombine.high %v705, %v705
      %v714 = vcombine.high %v251, %v251
      %v716 = vunpack.c.l.s4 1983009808
      %v717 = vunpack.c.0.s8 %v716
      %v718 = vlaneseq
      %v719 = vshrl.u32 %v718, 7
      %v720 = vsub.s32 %v717, %v719
      %v721 = vrot.slane %v251, %v720
      %v723 = vunpack.c.l.s4 1983009808
      %v724 = vunpack.c.0.s8 %v723
      %v725 = vlaneseq
      %v726 = vshrl.u32 %v725, 7
      %v727 = vsub.s32 %v724, %v726
      %v728 = vrot.slane %v714, %v727
      %v729 = vcombine.high %v721, %v721
      %v730 = vcombine.high %v728, %v728
      %v731 = vcombine.high %v252, %v252
      %v733 = vunpack.c.l.s4 1983009808
      %v734 = vunpack.c.0.s8 %v733
      %v735 = vlaneseq
      %v736 = vshrl.u32 %v735, 7
      %v737 = vsub.s32 %v734, %v736
      %v738 = vrot.slane %v252, %v737
      %v740 = vunpack.c.l.s4 1983009808
      %v741 = vunpack.c.0.s8 %v740
      %v742 = vlaneseq
      %v743 = vshrl.u32 %v742, 7
      %v744 = vsub.s32 %v741, %v743
      %v745 = vrot.slane %v731, %v744
      %v746 = vcombine.high %v738, %v738
      %v747 = vcombine.high %v316, %v316
      %v748 = vcombine.high %v349, %v349
      %v749 = vcombine.high %v382, %v382
      %v750 = vcombine.high %v415, %v415
      %v751 = vcombine.high %v448, %v448
      %v752 = vcombine.high %v481, %v481
      %v753 = vcombine.high %v514, %v514
      %v754 = vcombine.high %v547, %v547
      %v755 = vcombine.high %v580, %v580
      %v756 = vcombine.high %v613, %v613
      %v757 = vcombine.high %v646, %v646
      %v758 = vcombine.high %v679, %v679
      %v759 = vcombine.high %v712, %v712
      %v760 = vcombine.high %v745, %v745
      %vm761 = vcmask 1040384
      %vm762 = vcmask 1042434
      %vm763 = vmor %vm761, %vm762
      %vm764 = vcmask 1044484
      %vm765 = vmor %vm763, %vm764
      %vm766 = vcmask 1046534
      %vm767 = vmor %vm765, %vm766
      %v768 = vrot.slane %v292, 7
      %v769 = vrot.slane %v768, 2
      %v770 = vrot.slane %v300, 7
      %v771 = vsel %vm767, %v769, %v770
      %v772 = vrot.slane %v770, 2
      %v773 = vrot.slane %v299, 7
      %v774 = vsel %vm767, %v772, %v773
      %v775 = vrot.slane %v773, 2
      %v776 = vrot.slane %v301, 7
      %v777 = vsel %vm767, %v775, %v776
      %v778 = vrot.slane %v776, 2
      %v779 = vrot.slane %v309, 7
      %v780 = vsel %vm767, %v778, %v779
      %v781 = vrot.slane %v779, 2
      %v782 = vrot.slane %v317, 7
      %v783 = vsel %vm767, %v781, %v782
      %v784 = vrot.slane %v782, 2
      %v785 = vrot.slane %v316, 7
      %v786 = vsel %vm767, %v784, %v785
      %v787 = vrot.slane %v785, 2
      %v788 = vrot.slane %v747, 7
      %v789 = vsel %vm767, %v787, %v788
      %v790 = vrot.slane %v325, 7
      %v791 = vrot.slane %v790, 2
      %v792 = vrot.slane %v333, 7
      %v793 = vsel %vm767, %v791, %v792
      %v794 = vrot.slane %v792, 2
      %v795 = vrot.slane %v332, 7
      %v796 = vsel %vm767, %v794, %v795
      %v797 = vrot.slane %v795, 2
      %v798 = vrot.slane %v334, 7
      %v799 = vsel %vm767, %v797, %v798
      %v800 = vrot.slane %v798, 2
      %v801 = vrot.slane %v342, 7
      %v802 = vsel %vm767, %v800, %v801
      %v803 = vrot.slane %v801, 2
      %v804 = vrot.slane %v350, 7
      %v805 = vsel %vm767, %v803, %v804
      %v806 = vrot.slane %v804, 2
      %v807 = vrot.slane %v349, 7
      %v808 = vsel %vm767, %v806, %v807
      %v809 = vrot.slane %v807, 2
      %v810 = vrot.slane %v748, 7
      %v811 = vsel %vm767, %v809, %v810
      %v812 = vrot.slane %v358, 7
      %v813 = vrot.slane %v812, 2
      %v814 = vrot.slane %v366, 7
      %v815 = vsel %vm767, %v813, %v814
      %v816 = vrot.slane %v814, 2
      %v817 = vrot.slane %v365, 7
      %v818 = vsel %vm767, %v816, %v817
      %v819 = vrot.slane %v817, 2
      %v820 = vrot.slane %v367, 7
      %v821 = vsel %vm767, %v819, %v820
      %v822 = vrot.slane %v820, 2
      %v823 = vrot.slane %v375, 7
      %v824 = vsel %vm767, %v822, %v823
      %v825 = vrot.slane %v823, 2
      %v826 = vrot.slane %v383, 7
      %v827 = vsel %vm767, %v825, %v826
      %v828 = vrot.slane %v826, 2
      %v829 = vrot.slane %v382, 7
      %v830 = vsel %vm767, %v828, %v829
      %v831 = vrot.slane %v829, 2
      %v832 = vrot.slane %v749, 7
      %v833 = vsel %vm767, %v831, %v832
      %v834 = vrot.slane %v391, 7
      %v835 = vrot.slane %v834, 2
      %v836 = vrot.slane %v399, 7
      %v837 = vsel %vm767, %v835, %v836
      %v838 = vrot.slane %v836, 2
      %v839 = vrot.slane %v398, 7
      %v840 = vsel %vm767, %v838, %v839
      %v841 = vrot.slane %v839, 2
      %v842 = vrot.slane %v400, 7
      %v843 = vsel %vm767, %v841, %v842
      %v844 = vrot.slane %v842, 2
      %v845 = vrot.slane %v408, 7
      %v846 = vsel %vm767, %v844, %v845
      %v847 = vrot.slane %v845, 2
      %v848 = vrot.slane %v416, 7
      %v849 = vsel %vm767, %v847, %v848
      %v850 = vrot.slane %v848, 2
      %v851 = vrot.slane %v415, 7
      %v852 = vsel %vm767, %v850, %v851
      %v853 = vrot.slane %v851, 2
      %v854 = vrot.slane %v750, 7
      %v855 = vsel %vm767, %v853, %v854
      %v856 = vrot.slane %v424, 7
      %v857 = vrot.slane %v856, 2
      %v858 = vrot.slane %v432, 7
      %v859 = vsel %vm767, %v857, %v858
      %v860 = vrot.slane %v858, 2
      %v861 = vrot.slane %v431, 7
      %v862 = vsel %vm767, %v860, %v861
      %v863 = vrot.slane %v861, 2
      %v864 = vrot.slane %v433, 7
      %v865 = vsel %vm767, %v863, %v864
      %v866 = vrot.slane %v864, 2
      %v867 = vrot.slane %v441, 7
      %v868 = vsel %vm767, %v866, %v867
      %v869 = vrot.slane %v867, 2
      %v870 = vrot.slane %v449, 7
      %v871 = vsel %vm767, %v869, %v870
      %v872 = vrot.slane %v870, 2
      %v873 = vrot.slane %v448, 7
      %v874 = vsel %vm767, %v872, %v873
      %v875 = vrot.slane %v873, 2
      %v876 = vrot.slane %v751, 7
      %v877 = vsel %vm767, %v875, %v876
      %v878 = vrot.slane %v457, 7
      %v879 = vrot.slane %v878, 2
      %v880 = vrot.slane %v465, 7
      %v881 = vsel %vm767, %v879, %v880
      %v882 = vrot.slane %v880, 2
      %v883 = vrot.slane %v464, 7
      %v884 = vsel %vm767, %v882, %v883
      %v885 = vrot.slane %v883, 2
      %v886 = vrot.slane %v466, 7
      %v887 = vsel %vm767, %v885, %v886
      %v888 = vrot.slane %v886, 2
      %v889 = vrot.slane %v474, 7
      %v890 = vsel %vm767, %v888, %v889
      %v891 = vrot.slane %v889, 2
      %v892 = vrot.slane %v482, 7
      %v893 = vsel %vm767, %v891, %v892
      %v894 = vrot.slane %v892, 2
      %v895 = vrot.slane %v481, 7
      %v896 = vsel %vm767, %v894, %v895
      %v897 = vrot.slane %v895, 2
      %v898 = vrot.slane %v752, 7
      %v899 = vsel %vm767, %v897, %v898
      %v900 = vrot.slane %v490, 7
      %v901 = vrot.slane %v900, 2
      %v902 = vrot.slane %v498, 7
      %v903 = vsel %vm767, %v901, %v902
      %v904 = vrot.slane %v902, 2
      %v905 = vrot.slane %v497, 7
      %v906 = vsel %vm767, %v904, %v905
      %v907 = vrot.slane %v905, 2
      %v908 = vrot.slane %v499, 7
      %v909 = vsel %vm767, %v907, %v908
      %v910 = vrot.slane %v908, 2
      %v911 = vrot.slane %v507, 7
      %v912 = vsel %vm767, %v910, %v911
      %v913 = vrot.slane %v911, 2
      %v914 = vrot.slane %v515, 7
      %v915 = vsel %vm767, %v913, %v914
      %v916 = vrot.slane %v914, 2
      %v917 = vrot.slane %v514, 7
      %v918 = vsel %vm767, %v916, %v917
      %v919 = vrot.slane %v917, 2
      %v920 = vrot.slane %v753, 7
      %v921 = vsel %vm767, %v919, %v920
      %v922 = vrot.slane %v523, 7
      %v923 = vrot.slane %v922, 2
      %v924 = vrot.slane %v531, 7
      %v925 = vsel %vm767, %v923, %v924
      %v926 = vrot.slane %v924, 2
      %v927 = vrot.slane %v530, 7
      %v928 = vsel %vm767, %v926, %v927
      %v929 = vrot.slane %v927, 2
      %v930 = vrot.slane %v532, 7
      %v931 = vsel %vm767, %v929, %v930
      %v932 = vrot.slane %v930, 2
      %v933 = vrot.slane %v540, 7
      %v934 = vsel %vm767, %v932, %v933
      %v935 = vrot.slane %v933, 2
      %v936 = vrot.slane %v548, 7
      %v937 = vsel %vm767, %v935, %v936
      %v938 = vrot.slane %v936, 2
      %v939 = vrot.slane %v547, 7
      %v940 = vsel %vm767, %v938, %v939
      %v941 = vrot.slane %v939, 2
      %v942 = vrot.slane %v754, 7
      %v943 = vsel %vm767, %v941, %v942
      %v944 = vrot.slane %v556, 7
      %v945 = vrot.slane %v944, 2
      %v946 = vrot.slane %v564, 7
      %v947 = vsel %vm767, %v945, %v946
      %v948 = vrot.slane %v946, 2
      %v949 = vrot.slane %v563, 7
      %v950 = vsel %vm767, %v948, %v949
      %v951 = vrot.slane %v949, 2
      %v952 = vrot.slane %v565, 7
      %v953 = vsel %vm767, %v951, %v952
      %v954 = vrot.slane %v952, 2
      %v955 = vrot.slane %v573, 7
      %v956 = vsel %vm767, %v954, %v955
      %v957 = vrot.slane %v955, 2
      %v958 = vrot.slane %v581, 7
      %v959 = vsel %vm767, %v957, %v958
      %v960 = vrot.slane %v958, 2
      %v961 = vrot.slane %v580, 7
      %v962 = vsel %vm767, %v960, %v961
      %v963 = vrot.slane %v961, 2
      %v964 = vrot.slane %v755, 7
      %v965 = vsel %vm767, %v963, %v964
      %v966 = vrot.slane %v589, 7
      %v967 = vrot.slane %v966, 2
      %v968 = vrot.slane %v597, 7
      %v969 = vsel %vm767, %v967, %v968
      %v970 = vrot.slane %v968, 2
      %v971 = vrot.slane %v596, 7
      %v972 = vsel %vm767, %v970, %v971
      %v973 = vrot.slane %v971, 2
      %v974 = vrot.slane %v598, 7
      %v975 = vsel %vm767, %v973, %v974
      %v976 = vrot.slane %v974, 2
      %v977 = vrot.slane %v606, 7
      %v978 = vsel %vm767, %v976, %v977
      %v979 = vrot.slane %v977, 2
      %v980 = vrot.slane %v614, 7
      %v981 = vsel %vm767, %v979, %v980
      %v982 = vrot.slane %v980, 2
      %v983 = vrot.slane %v613, 7
      %v984 = vsel %vm767, %v982, %v983
      %v985 = vrot.slane %v983, 2
      %v986 = vrot.slane %v756, 7
      %v987 = vsel %vm767, %v985, %v986
      %v988 = vrot.slane %v622, 7
      %v989 = vrot.slane %v988, 2
      %v990 = vrot.slane %v630, 7
      %v991 = vsel %vm767, %v989, %v990
      %v992 = vrot.slane %v990, 2
      %v993 = vrot.slane %v629, 7
      %v994 = vsel %vm767, %v992, %v993
      %v995 = vrot.slane %v993, 2
      %v996 = vrot.slane %v631, 7
      %v997 = vsel %vm767, %v995, %v996
      %v998 = vrot.slane %v996, 2
      %v999 = vrot.slane %v639, 7
      %v1000 = vsel %vm767, %v998, %v999
      %v1001 = vrot.slane %v999, 2
      %v1002 = vrot.slane %v647, 7
      %v1003 = vsel %vm767, %v1001, %v1002
      %v1004 = vrot.slane %v1002, 2
      %v1005 = vrot.slane %v646, 7
      %v1006 = vsel %vm767, %v1004, %v1005
      %v1007 = vrot.slane %v1005, 2
      %v1008 = vrot.slane %v757, 7
      %v1009 = vsel %vm767, %v1007, %v1008
      %v1010 = vrot.slane %v655, 7
      %v1011 = vrot.slane %v1010, 2
      %v1012 = vrot.slane %v663, 7
      %v1013 = vsel %vm767, %v1011, %v1012
      %v1014 = vrot.slane %v1012, 2
      %v1015 = vrot.slane %v662, 7
      %v1016 = vsel %vm767, %v1014, %v1015
      %v1017 = vrot.slane %v1015, 2
      %v1018 = vrot.slane %v664, 7
      %v1019 = vsel %vm767, %v1017, %v1018
      %v1020 = vrot.slane %v1018, 2
      %v1021 = vrot.slane %v672, 7
      %v1022 = vsel %vm767, %v1020, %v1021
      %v1023 = vrot.slane %v1021, 2
      %v1024 = vrot.slane %v680, 7
      %v1025 = vsel %vm767, %v1023, %v1024
      %v1026 = vrot.slane %v1024, 2
      %v1027 = vrot.slane %v679, 7
      %v1028 = vsel %vm767, %v1026, %v1027
      %v1029 = vrot.slane %v1027, 2
      %v1030 = vrot.slane %v758, 7
      %v1031 = vsel %vm767, %v1029, %v1030
      %v1032 = vrot.slane %v688, 7
      %v1033 = vrot.slane %v1032, 2
      %v1034 = vrot.slane %v696, 7
      %v1035 = vsel %vm767, %v1033, %v1034
      %v1036 = vrot.slane %v1034, 2
      %v1037 = vrot.slane %v695, 7
      %v1038 = vsel %vm767, %v1036, %v1037
      %v1039 = vrot.slane %v1037, 2
      %v1040 = vrot.slane %v697, 7
      %v1041 = vsel %vm767, %v1039, %v1040
      %v1042 = vrot.slane %v1040, 2
      %v1043 = vrot.slane %v705, 7
      %v1044 = vsel %vm767, %v1042, %v1043
      %v1045 = vrot.slane %v1043, 2
      %v1046 = vrot.slane %v713, 7
      %v1047 = vsel %vm767, %v1045, %v1046
      %v1048 = vrot.slane %v1046, 2
      %v1049 = vrot.slane %v712, 7
      %v1050 = vsel %vm767, %v1048, %v1049
      %v1051 = vrot.slane %v1049, 2
      %v1052 = vrot.slane %v759, 7
      %v1053 = vsel %vm767, %v1051, %v1052
      %v1054 = vrot.slane %v721, 7
      %v1055 = vrot.slane %v1054, 2
      %v1056 = vrot.slane %v729, 7
      %v1057 = vsel %vm767, %v1055, %v1056
      %v1058 = vrot.slane %v1056, 2
      %v1059 = vrot.slane %v728, 7
      %v1060 = vsel %vm767, %v1058, %v1059
      %v1061 = vrot.slane %v1059, 2
      %v1062 = vrot.slane %v730, 7
      %v1063 = vsel %vm767, %v1061, %v1062
      %v1064 = vrot.slane %v1062, 2
      %v1065 = vrot.slane %v738, 7
      %v1066 = vsel %vm767, %v1064, %v1065
      %v1067 = vrot.slane %v1065, 2
      %v1068 = vrot.slane %v746, 7
      %v1069 = vsel %vm767, %v1067, %v1068
      %v1070 = vrot.slane %v1068, 2
      %v1071 = vrot.slane %v745, 7
      %v1072 = vsel %vm767, %v1070, %v1071
      %v1073 = vrot.slane %v1071, 2
      %v1074 = vrot.slane %v760, 7
      %v1075 = vsel %vm767, %v1073, %v1074
      %v1078 = vcombine.high %v253, %v253
      %v1080 = vunpack.c.l.s4 1983009808
      %v1081 = vunpack.c.0.s8 %v1080
      %v1082 = vlaneseq
      %v1083 = vshrl.u32 %v1082, 7
      %v1084 = vsub.s32 %v1081, %v1083
      %v1085 = vrot.slane %v253, %v1084
      %v1087 = vunpack.c.l.s4 1983009808
      %v1088 = vunpack.c.0.s8 %v1087
      %v1089 = vlaneseq
      %v1090 = vshrl.u32 %v1089, 7
      %v1091 = vsub.s32 %v1088, %v1090
      %v1092 = vrot.slane %v1078, %v1091
      %v1093 = vcombine.high %v1085, %v1085
      %v1094 = vcombine.high %v1092, %v1092
      %v1095 = vcombine.high %v254, %v254
      %v1097 = vunpack.c.l.s4 1983009808
      %v1098 = vunpack.c.0.s8 %v1097
      %v1099 = vlaneseq
      %v1100 = vshrl.u32 %v1099, 7
      %v1101 = vsub.s32 %v1098, %v1100
      %v1102 = vrot.slane %v254, %v1101
      %v1104 = vunpack.c.l.s4 1983009808
      %v1105 = vunpack.c.0.s8 %v1104
      %v1106 = vlaneseq
      %v1107 = vshrl.u32 %v1106, 7
      %v1108 = vsub.s32 %v1105, %v1107
      %v1109 = vrot.slane %v1095, %v1108
      %v1110 = vcombine.high %v1102, %v1102
      %v1111 = vcombine.high %v1109, %v1109
      %v1112 = vrot.slane %v1085, 7
      %v1113 = vrot.slane %v1112, 2
      %v1114 = vrot.slane %v1093, 7
      %v1115 = vsel %vm767, %v1113, %v1114
      %v1116 = vrot.slane %v1114, 2
      %v1117 = vrot.slane %v1092, 7
      %v1118 = vsel %vm767, %v1116, %v1117
      %v1119 = vrot.slane %v1117, 2
      %v1120 = vrot.slane %v1094, 7
      %v1121 = vsel %vm767, %v1119, %v1120
      %v1122 = vrot.slane %v1120, 2
      %v1123 = vrot.slane %v1102, 7
      %v1124 = vsel %vm767, %v1122, %v1123
      %v1125 = vrot.slane %v1123, 2
      %v1126 = vrot.slane %v1110, 7
      %v1127 = vsel %vm767, %v1125, %v1126
      %v1128 = vrot.slane %v1126, 2
      %v1129 = vrot.slane %v1109, 7
      %v1130 = vsel %vm767, %v1128, %v1129
      %v1131 = vrot.slane %v1129, 2
      %v1132 = vrot.slane %v1111, 7
      %v1133 = vsel %vm767, %v1131, %v1132
      %v1136 = vcombine.high %v255, %v255
      %v1138 = vunpack.c.l.s4 1983009808
      %v1139 = vunpack.c.0.s8 %v1138
      %v1140 = vlaneseq
      %v1141 = vshrl.u32 %v1140, 7
      %v1142 = vsub.s32 %v1139, %v1141
      %v1143 = vrot.slane %v255, %v1142
      %v1145 = vunpack.c.l.s4 1983009808
      %v1146 = vunpack.c.0.s8 %v1145
      %v1147 = vlaneseq
      %v1148 = vshrl.u32 %v1147, 7
      %v1149 = vsub.s32 %v1146, %v1148
      %v1150 = vrot.slane %v1136, %v1149
      %v1151 = vcombine.high %v1143, %v1143
      %v1152 = vcombine.high %v1150, %v1150
      %v1153 = vcombine.high %v256, %v256
      %v1155 = vunpack.c.l.s4 1983009808
      %v1156 = vunpack.c.0.s8 %v1155
      %v1157 = vlaneseq
      %v1158 = vshrl.u32 %v1157, 7
      %v1159 = vsub.s32 %v1156, %v1158
      %v1160 = vrot.slane %v256, %v1159
      %v1162 = vunpack.c.l.s4 1983009808
      %v1163 = vunpack.c.0.s8 %v1162
      %v1164 = vlaneseq
      %v1165 = vshrl.u32 %v1164, 7
      %v1166 = vsub.s32 %v1163, %v1165
      %v1167 = vrot.slane %v1153, %v1166
      %v1168 = vcombine.high %v1160, %v1160
      %v1169 = vcombine.high %v1167, %v1167
      %v1170 = vrot.slane %v1143, 7
      %v1171 = vrot.slane %v1170, 2
      %v1172 = vrot.slane %v1151, 7
      %v1173 = vsel %vm767, %v1171, %v1172
      %v1174 = vrot.slane %v1172, 2
      %v1175 = vrot.slane %v1150, 7
      %v1176 = vsel %vm767, %v1174, %v1175
      %v1177 = vrot.slane %v1175, 2
      %v1178 = vrot.slane %v1152, 7
      %v1179 = vsel %vm767, %v1177, %v1178
      %v1180 = vrot.slane %v1178, 2
      %v1181 = vrot.slane %v1160, 7
      %v1182 = vsel %vm767, %v1180, %v1181
      %v1183 = vrot.slane %v1181, 2
      %v1184 = vrot.slane %v1168, 7
      %v1185 = vsel %vm767, %v1183, %v1184
      %v1186 = vrot.slane %v1184, 2
      %v1187 = vrot.slane %v1167, 7
      %v1188 = vsel %vm767, %v1186, %v1187
      %v1189 = vrot.slane %v1187, 2
      %v1190 = vrot.slane %v1169, 7
      %v1191 = vsel %vm767, %v1189, %v1190
      %v1192 = vcombine.low %v292, %v300
      %v1193 = vcombine.low %v299, %v301
      %v1195 = vunpack.c.l.s4 1983009808
      %v1196 = vunpack.c.0.s8 %v1195
      %v1197 = vlaneseq
      %v1198 = vshrl.u32 %v1197, 7
      %v1199 = vsub.s32 %v1196, %v1198
      %v1200 = vrot.slane %v1192, %v1199
      %v1202 = vunpack.c.l.s4 1983009808
      %v1203 = vunpack.c.0.s8 %v1202
      %v1204 = vlaneseq
      %v1205 = vshrl.u32 %v1204, 7
      %v1206 = vsub.s32 %v1203, %v1205
      %v1207 = vrot.slane %v1193, %v1206
      %v1208 = vcombine.low %v1200, %v1207
      %v1209 = vcombine.low %v309, %v317
      %v1210 = vcombine.low %v316, %v325
      %v1212 = vunpack.c.l.s4 1983009808
      %v1213 = vunpack.c.0.s8 %v1212
      %v1214 = vlaneseq
      %v1215 = vshrl.u32 %v1214, 7
      %v1216 = vsub.s32 %v1213, %v1215
      %v1217 = vrot.slane %v1209, %v1216
      %v1219 = vunpack.c.l.s4 1983009808
      %v1220 = vunpack.c.0.s8 %v1219
      %v1221 = vlaneseq
      %v1222 = vshrl.u32 %v1221, 7
      %v1223 = vsub.s32 %v1220, %v1222
      %v1224 = vrot.slane %v1210, %v1223
      %v1225 = vcombine.low %v1217, %v1224
      %v1226 = vcombine.low %v333, %v332
      %v1227 = vcombine.low %v334, %v342
      %v1229 = vunpack.c.l.s4 1983009808
      %v1230 = vunpack.c.0.s8 %v1229
      %v1231 = vlaneseq
      %v1232 = vshrl.u32 %v1231, 7
      %v1233 = vsub.s32 %v1230, %v1232
      %v1234 = vrot.slane %v1226, %v1233
      %v1236 = vunpack.c.l.s4 1983009808
      %v1237 = vunpack.c.0.s8 %v1236
      %v1238 = vlaneseq
      %v1239 = vshrl.u32 %v1238, 7
      %v1240 = vsub.s32 %v1237, %v1239
      %v1241 = vrot.slane %v1227, %v1240
      %v1242 = vcombine.low %v1234, %v1241
      %v1243 = vcombine.low %v350, %v349
      %v1244 = vcombine.low %v358, %v366
      %v1246 = vunpack.c.l.s4 1983009808
      %v1247 = vunpack.c.0.s8 %v1246
      %v1248 = vlaneseq
      %v1249 = vshrl.u32 %v1248, 7
      %v1250 = vsub.s32 %v1247, %v1249
      %v1251 = vrot.slane %v1243, %v1250
      %v1253 = vunpack.c.l.s4 1983009808
      %v1254 = vunpack.c.0.s8 %v1253
      %v1255 = vlaneseq
      %v1256 = vshrl.u32 %v1255, 7
      %v1257 = vsub.s32 %v1254, %v1256
      %v1258 = vrot.slane %v1244, %v1257
      %v1259 = vcombine.low %v1251, %v1258
      %v1260 = vcombine.low %v365, %v367
      %v1261 = vcombine.low %v375, %v383
      %v1263 = vunpack.c.l.s4 1983009808
      %v1264 = vunpack.c.0.s8 %v1263
      %v1265 = vlaneseq
      %v1266 = vshrl.u32 %v1265, 7
      %v1267 = vsub.s32 %v1264, %v1266
      %v1268 = vrot.slane %v1260, %v1267
      %v1270 = vunpack.c.l.s4 1983009808
      %v1271 = vunpack.c.0.s8 %v1270
      %v1272 = vlaneseq
      %v1273 = vshrl.u32 %v1272, 7
      %v1274 = vsub.s32 %v1271, %v1273
      %v1275 = vrot.slane %v1261, %v1274
      %v1276 = vcombine.low %v1268, %v1275
      %v1277 = vcombine.low %v382, %v391
      %v1278 = vcombine.low %v399, %v398
      %v1280 = vunpack.c.l.s4 1983009808
      %v1281 = vunpack.c.0.s8 %v1280
      %v1282 = vlaneseq
      %v1283 = vshrl.u32 %v1282, 7
      %v1284 = vsub.s32 %v1281, %v1283
      %v1285 = vrot.slane %v1277, %v1284
      %v1287 = vunpack.c.l.s4 1983009808
      %v1288 = vunpack.c.0.s8 %v1287
      %v1289 = vlaneseq
      %v1290 = vshrl.u32 %v1289, 7
      %v1291 = vsub.s32 %v1288, %v1290
      %v1292 = vrot.slane %v1278, %v1291
      %v1293 = vcombine.low %v1285, %v1292
      %v1294 = vcombine.low %v400, %v408
      %v1295 = vcombine.low %v416, %v415
      %v1297 = vunpack.c.l.s4 1983009808
      %v1298 = vunpack.c.0.s8 %v1297
      %v1299 = vlaneseq
      %v1300 = vshrl.u32 %v1299, 7
      %v1301 = vsub.s32 %v1298, %v1300
      %v1302 = vrot.slane %v1294, %v1301
      %v1304 = vunpack.c.l.s4 1983009808
      %v1305 = vunpack.c.0.s8 %v1304
      %v1306 = vlaneseq
      %v1307 = vshrl.u32 %v1306, 7
      %v1308 = vsub.s32 %v1305, %v1307
      %v1309 = vrot.slane %v1295, %v1308
      %v1310 = vcombine.low %v1302, %v1309
      %v1311 = vcombine.low %v424, %v432
      %v1312 = vcombine.low %v431, %v433
      %v1314 = vunpack.c.l.s4 1983009808
      %v1315 = vunpack.c.0.s8 %v1314
      %v1316 = vlaneseq
      %v1317 = vshrl.u32 %v1316, 7
      %v1318 = vsub.s32 %v1315, %v1317
      %v1319 = vrot.slane %v1311, %v1318
      %v1321 = vunpack.c.l.s4 1983009808
      %v1322 = vunpack.c.0.s8 %v1321
      %v1323 = vlaneseq
      %v1324 = vshrl.u32 %v1323, 7
      %v1325 = vsub.s32 %v1322, %v1324
      %v1326 = vrot.slane %v1312, %v1325
      %v1327 = vcombine.low %v1319, %v1326
      %v1328 = vcombine.low %v441, %v449
      %v1329 = vcombine.low %v448, %v457
      %v1331 = vunpack.c.l.s4 1983009808
      %v1332 = vunpack.c.0.s8 %v1331
      %v1333 = vlaneseq
      %v1334 = vshrl.u32 %v1333, 7
      %v1335 = vsub.s32 %v1332, %v1334
      %v1336 = vrot.slane %v1328, %v1335
      %v1338 = vunpack.c.l.s4 1983009808
      %v1339 = vunpack.c.0.s8 %v1338
      %v1340 = vlaneseq
      %v1341 = vshrl.u32 %v1340, 7
      %v1342 = vsub.s32 %v1339, %v1341
      %v1343 = vrot.slane %v1329, %v1342
      %v1344 = vcombine.low %v1336, %v1343
      %v1345 = vcombine.low %v465, %v464
      %v1346 = vcombine.low %v466, %v474
      %v1348 = vunpack.c.l.s4 1983009808
      %v1349 = vunpack.c.0.s8 %v1348
      %v1350 = vlaneseq
      %v1351 = vshrl.u32 %v1350, 7
      %v1352 = vsub.s32 %v1349, %v1351
      %v1353 = vrot.slane %v1345, %v1352
      %v1355 = vunpack.c.l.s4 1983009808
      %v1356 = vunpack.c.0.s8 %v1355
      %v1357 = vlaneseq
      %v1358 = vshrl.u32 %v1357, 7
      %v1359 = vsub.s32 %v1356, %v1358
      %v1360 = vrot.slane %v1346, %v1359
      %v1361 = vcombine.low %v1353, %v1360
      %v1362 = vcombine.low %v482, %v481
      %v1363 = vcombine.low %v490, %v498
      %v1365 = vunpack.c.l.s4 1983009808
      %v1366 = vunpack.c.0.s8 %v1365
      %v1367 = vlaneseq
      %v1368 = vshrl.u32 %v1367, 7
      %v1369 = vsub.s32 %v1366, %v1368
      %v1370 = vrot.slane %v1362, %v1369
      %v1372 = vunpack.c.l.s4 1983009808
      %v1373 = vunpack.c.0.s8 %v1372
      %v1374 = vlaneseq
      %v1375 = vshrl.u32 %v1374, 7
      %v1376 = vsub.s32 %v1373, %v1375
      %v1377 = vrot.slane %v1363, %v1376
      %v1378 = vcombine.low %v1370, %v1377
      %v1379 = vcombine.low %v497, %v499
      %v1380 = vcombine.low %v507, %v515
      %v1382 = vunpack.c.l.s4 1983009808
      %v1383 = vunpack.c.0.s8 %v1382
      %v1384 = vlaneseq
      %v1385 = vshrl.u32 %v1384, 7
      %v1386 = vsub.s32 %v1383, %v1385
      %v1387 = vrot.slane %v1379, %v1386
      %v1389 = vunpack.c.l.s4 1983009808
      %v1390 = vunpack.c.0.s8 %v1389
      %v1391 = vlaneseq
      %v1392 = vshrl.u32 %v1391, 7
      %v1393 = vsub.s32 %v1390, %v1392
      %v1394 = vrot.slane %v1380, %v1393
      %v1395 = vcombine.low %v1387, %v1394
      %v1396 = vcombine.low %v514, %v523
      %v1397 = vcombine.low %v531, %v530
      %v1399 = vunpack.c.l.s4 1983009808
      %v1400 = vunpack.c.0.s8 %v1399
      %v1401 = vlaneseq
      %v1402 = vshrl.u32 %v1401, 7
      %v1403 = vsub.s32 %v1400, %v1402
      %v1404 = vrot.slane %v1396, %v1403
      %v1406 = vunpack.c.l.s4 1983009808
      %v1407 = vunpack.c.0.s8 %v1406
      %v1408 = vlaneseq
      %v1409 = vshrl.u32 %v1408, 7
      %v1410 = vsub.s32 %v1407, %v1409
      %v1411 = vrot.slane %v1397, %v1410
      %v1412 = vcombine.low %v1404, %v1411
      %v1413 = vcombine.low %v532, %v540
      %v1414 = vcombine.low %v548, %v547
      %v1416 = vunpack.c.l.s4 1983009808
      %v1417 = vunpack.c.0.s8 %v1416
      %v1418 = vlaneseq
      %v1419 = vshrl.u32 %v1418, 7
      %v1420 = vsub.s32 %v1417, %v1419
      %v1421 = vrot.slane %v1413, %v1420
      %v1423 = vunpack.c.l.s4 1983009808
      %v1424 = vunpack.c.0.s8 %v1423
      %v1425 = vlaneseq
      %v1426 = vshrl.u32 %v1425, 7
      %v1427 = vsub.s32 %v1424, %v1426
      %v1428 = vrot.slane %v1414, %v1427
      %v1429 = vcombine.low %v1421, %v1428
      %v1430 = vcombine.low %v556, %v564
      %v1431 = vcombine.low %v563, %v565
      %v1433 = vunpack.c.l.s4 1983009808
      %v1434 = vunpack.c.0.s8 %v1433
      %v1435 = vlaneseq
      %v1436 = vshrl.u32 %v1435, 7
      %v1437 = vsub.s32 %v1434, %v1436
      %v1438 = vrot.slane %v1430, %v1437
      %v1440 = vunpack.c.l.s4 1983009808
      %v1441 = vunpack.c.0.s8 %v1440
      %v1442 = vlaneseq
      %v1443 = vshrl.u32 %v1442, 7
      %v1444 = vsub.s32 %v1441, %v1443
      %v1445 = vrot.slane %v1431, %v1444
      %v1446 = vcombine.low %v1438, %v1445
      %v1447 = vcombine.low %v573, %v581
      %v1448 = vcombine.low %v580, %v589
      %v1450 = vunpack.c.l.s4 1983009808
      %v1451 = vunpack.c.0.s8 %v1450
      %v1452 = vlaneseq
      %v1453 = vshrl.u32 %v1452, 7
      %v1454 = vsub.s32 %v1451, %v1453
      %v1455 = vrot.slane %v1447, %v1454
      %v1457 = vunpack.c.l.s4 1983009808
      %v1458 = vunpack.c.0.s8 %v1457
      %v1459 = vlaneseq
      %v1460 = vshrl.u32 %v1459, 7
      %v1461 = vsub.s32 %v1458, %v1460
      %v1462 = vrot.slane %v1448, %v1461
      %v1463 = vcombine.low %v1455, %v1462
      %v1464 = vcombine.low %v597, %v596
      %v1465 = vcombine.low %v598, %v606
      %v1467 = vunpack.c.l.s4 1983009808
      %v1468 = vunpack.c.0.s8 %v1467
      %v1469 = vlaneseq
      %v1470 = vshrl.u32 %v1469, 7
      %v1471 = vsub.s32 %v1468, %v1470
      %v1472 = vrot.slane %v1464, %v1471
      %v1474 = vunpack.c.l.s4 1983009808
      %v1475 = vunpack.c.0.s8 %v1474
      %v1476 = vlaneseq
      %v1477 = vshrl.u32 %v1476, 7
      %v1478 = vsub.s32 %v1475, %v1477
      %v1479 = vrot.slane %v1465, %v1478
      %v1480 = vcombine.low %v1472, %v1479
      %v1481 = vcombine.low %v614, %v613
      %v1482 = vcombine.low %v622, %v630
      %v1484 = vunpack.c.l.s4 1983009808
      %v1485 = vunpack.c.0.s8 %v1484
      %v1486 = vlaneseq
      %v1487 = vshrl.u32 %v1486, 7
      %v1488 = vsub.s32 %v1485, %v1487
      %v1489 = vrot.slane %v1481, %v1488
      %v1491 = vunpack.c.l.s4 1983009808
      %v1492 = vunpack.c.0.s8 %v1491
      %v1493 = vlaneseq
      %v1494 = vshrl.u32 %v1493, 7
      %v1495 = vsub.s32 %v1492, %v1494
      %v1496 = vrot.slane %v1482, %v1495
      %v1497 = vcombine.low %v1489, %v1496
      %v1498 = vcombine.low %v629, %v631
      %v1499 = vcombine.low %v639, %v647
      %v1501 = vunpack.c.l.s4 1983009808
      %v1502 = vunpack.c.0.s8 %v1501
      %v1503 = vlaneseq
      %v1504 = vshrl.u32 %v1503, 7
      %v1505 = vsub.s32 %v1502, %v1504
      %v1506 = vrot.slane %v1498, %v1505
      %v1508 = vunpack.c.l.s4 1983009808
      %v1509 = vunpack.c.0.s8 %v1508
      %v1510 = vlaneseq
      %v1511 = vshrl.u32 %v1510, 7
      %v1512 = vsub.s32 %v1509, %v1511
      %v1513 = vrot.slane %v1499, %v1512
      %v1514 = vcombine.low %v1506, %v1513
      %v1515 = vcombine.low %v646, %v655
      %v1516 = vcombine.low %v663, %v662
      %v1518 = vunpack.c.l.s4 1983009808
      %v1519 = vunpack.c.0.s8 %v1518
      %v1520 = vlaneseq
      %v1521 = vshrl.u32 %v1520, 7
      %v1522 = vsub.s32 %v1519, %v1521
      %v1523 = vrot.slane %v1515, %v1522
      %v1525 = vunpack.c.l.s4 1983009808
      %v1526 = vunpack.c.0.s8 %v1525
      %v1527 = vlaneseq
      %v1528 = vshrl.u32 %v1527, 7
      %v1529 = vsub.s32 %v1526, %v1528
      %v1530 = vrot.slane %v1516, %v1529
      %v1531 = vcombine.low %v1523, %v1530
      %v1532 = vcombine.low %v664, %v672
      %v1533 = vcombine.low %v680, %v679
      %v1535 = vunpack.c.l.s4 1983009808
      %v1536 = vunpack.c.0.s8 %v1535
      %v1537 = vlaneseq
      %v1538 = vshrl.u32 %v1537, 7
      %v1539 = vsub.s32 %v1536, %v1538
      %v1540 = vrot.slane %v1532, %v1539
      %v1542 = vunpack.c.l.s4 1983009808
      %v1543 = vunpack.c.0.s8 %v1542
      %v1544 = vlaneseq
      %v1545 = vshrl.u32 %v1544, 7
      %v1546 = vsub.s32 %v1543, %v1545
      %v1547 = vrot.slane %v1533, %v1546
      %v1548 = vcombine.low %v1540, %v1547
      %v1549 = vcombine.low %v688, %v696
      %v1550 = vcombine.low %v695, %v697
      %v1552 = vunpack.c.l.s4 1983009808
      %v1553 = vunpack.c.0.s8 %v1552
      %v1554 = vlaneseq
      %v1555 = vshrl.u32 %v1554, 7
      %v1556 = vsub.s32 %v1553, %v1555
      %v1557 = vrot.slane %v1549, %v1556
      %v1559 = vunpack.c.l.s4 1983009808
      %v1560 = vunpack.c.0.s8 %v1559
      %v1561 = vlaneseq
      %v1562 = vshrl.u32 %v1561, 7
      %v1563 = vsub.s32 %v1560, %v1562
      %v1564 = vrot.slane %v1550, %v1563
      %v1565 = vcombine.low %v1557, %v1564
      %v1566 = vcombine.low %v705, %v713
      %v1567 = vcombine.low %v712, %v721
      %v1569 = vunpack.c.l.s4 1983009808
      %v1570 = vunpack.c.0.s8 %v1569
      %v1571 = vlaneseq
      %v1572 = vshrl.u32 %v1571, 7
      %v1573 = vsub.s32 %v1570, %v1572
      %v1574 = vrot.slane %v1566, %v1573
      %v1576 = vunpack.c.l.s4 1983009808
      %v1577 = vunpack.c.0.s8 %v1576
      %v1578 = vlaneseq
      %v1579 = vshrl.u32 %v1578, 7
      %v1580 = vsub.s32 %v1577, %v1579
      %v1581 = vrot.slane %v1567, %v1580
      %v1582 = vcombine.low %v1574, %v1581
      %v1583 = vcombine.low %v729, %v728
      %v1584 = vcombine.low %v730, %v738
      %v1586 = vunpack.c.l.s4 1983009808
      %v1587 = vunpack.c.0.s8 %v1586
      %v1588 = vlaneseq
      %v1589 = vshrl.u32 %v1588, 7
      %v1590 = vsub.s32 %v1587, %v1589
      %v1591 = vrot.slane %v1583, %v1590
      %v1593 = vunpack.c.l.s4 1983009808
      %v1594 = vunpack.c.0.s8 %v1593
      %v1595 = vlaneseq
      %v1596 = vshrl.u32 %v1595, 7
      %v1597 = vsub.s32 %v1594, %v1596
      %v1598 = vrot.slane %v1584, %v1597
      %v1599 = vcombine.low %v1591, %v1598
      %v1600 = vcombine.low %v746, %v745
      %v1602 = vunpack.c.l.s4 1983009808
      %v1603 = vunpack.c.0.s8 %v1602
      %v1604 = vlaneseq
      %v1605 = vshrl.u32 %v1604, 7
      %v1606 = vsub.s32 %v1603, %v1605
      %v1607 = vrot.slane %v1600, %v1606
      %v1633 = vcombine.low %v771, %v774
      %v1634 = vcombine.low %v777, %v780
      %v1636 = vunpack.c.l.s4 1983009808
      %v1637 = vunpack.c.0.s8 %v1636
      %v1638 = vlaneseq
      %v1639 = vshrl.u32 %v1638, 7
      %v1640 = vsub.s32 %v1637, %v1639
      %v1641 = vrot.slane %v1633, %v1640
      %v1643 = vunpack.c.l.s4 1983009808
      %v1644 = vunpack.c.0.s8 %v1643
      %v1645 = vlaneseq
      %v1646 = vshrl.u32 %v1645, 7
      %v1647 = vsub.s32 %v1644, %v1646
      %v1648 = vrot.slane %v1634, %v1647
      %v1649 = vcombine.low %v1641, %v1648
      %v1650 = vcombine.low %v783, %v786
      %v1651 = vcombine.low %v789, %v793
      %v1653 = vunpack.c.l.s4 1983009808
      %v1654 = vunpack.c.0.s8 %v1653
      %v1655 = vlaneseq
      %v1656 = vshrl.u32 %v1655, 7
      %v1657 = vsub.s32 %v1654, %v1656
      %v1658 = vrot.slane %v1650, %v1657
      %v1660 = vunpack.c.l.s4 1983009808
      %v1661 = vunpack.c.0.s8 %v1660
      %v1662 = vlaneseq
      %v1663 = vshrl.u32 %v1662, 7
      %v1664 = vsub.s32 %v1661, %v1663
      %v1665 = vrot.slane %v1651, %v1664
      %v1666 = vcombine.low %v1658, %v1665
      %v1667 = vcombine.low %v796, %v799
      %v1668 = vcombine.low %v802, %v805
      %v1670 = vunpack.c.l.s4 1983009808
      %v1671 = vunpack.c.0.s8 %v1670
      %v1672 = vlaneseq
      %v1673 = vshrl.u32 %v1672, 7
      %v1674 = vsub.s32 %v1671, %v1673
      %v1675 = vrot.slane %v1667, %v1674
      %v1677 = vunpack.c.l.s4 1983009808
      %v1678 = vunpack.c.0.s8 %v1677
      %v1679 = vlaneseq
      %v1680 = vshrl.u32 %v1679, 7
      %v1681 = vsub.s32 %v1678, %v1680
      %v1682 = vrot.slane %v1668, %v1681
      %v1683 = vcombine.low %v1675, %v1682
      %v1684 = vcombine.low %v808, %v811
      %v1685 = vcombine.low %v815, %v818
      %v1687 = vunpack.c.l.s4 1983009808
      %v1688 = vunpack.c.0.s8 %v1687
      %v1689 = vlaneseq
      %v1690 = vshrl.u32 %v1689, 7
      %v1691 = vsub.s32 %v1688, %v1690
      %v1692 = vrot.slane %v1684, %v1691
      %v1694 = vunpack.c.l.s4 1983009808
      %v1695 = vunpack.c.0.s8 %v1694
      %v1696 = vlaneseq
      %v1697 = vshrl.u32 %v1696, 7
      %v1698 = vsub.s32 %v1695, %v1697
      %v1699 = vrot.slane %v1685, %v1698
      %v1700 = vcombine.low %v1692, %v1699
      %v1701 = vcombine.low %v821, %v824
      %v1702 = vcombine.low %v827, %v830
      %v1704 = vunpack.c.l.s4 1983009808
      %v1705 = vunpack.c.0.s8 %v1704
      %v1706 = vlaneseq
      %v1707 = vshrl.u32 %v1706, 7
      %v1708 = vsub.s32 %v1705, %v1707
      %v1709 = vrot.slane %v1701, %v1708
      %v1711 = vunpack.c.l.s4 1983009808
      %v1712 = vunpack.c.0.s8 %v1711
      %v1713 = vlaneseq
      %v1714 = vshrl.u32 %v1713, 7
      %v1715 = vsub.s32 %v1712, %v1714
      %v1716 = vrot.slane %v1702, %v1715
      %v1717 = vcombine.low %v1709, %v1716
      %v1718 = vcombine.low %v833, %v837
      %v1719 = vcombine.low %v840, %v843
      %v1721 = vunpack.c.l.s4 1983009808
      %v1722 = vunpack.c.0.s8 %v1721
      %v1723 = vlaneseq
      %v1724 = vshrl.u32 %v1723, 7
      %v1725 = vsub.s32 %v1722, %v1724
      %v1726 = vrot.slane %v1718, %v1725
      %v1728 = vunpack.c.l.s4 1983009808
      %v1729 = vunpack.c.0.s8 %v1728
      %v1730 = vlaneseq
      %v1731 = vshrl.u32 %v1730, 7
      %v1732 = vsub.s32 %v1729, %v1731
      %v1733 = vrot.slane %v1719, %v1732
      %v1734 = vcombine.low %v1726, %v1733
      %v1735 = vcombine.low %v846, %v849
      %v1736 = vcombine.low %v852, %v855
      %v1738 = vunpack.c.l.s4 1983009808
      %v1739 = vunpack.c.0.s8 %v1738
      %v1740 = vlaneseq
      %v1741 = vshrl.u32 %v1740, 7
      %v1742 = vsub.s32 %v1739, %v1741
      %v1743 = vrot.slane %v1735, %v1742
      %v1745 = vunpack.c.l.s4 1983009808
      %v1746 = vunpack.c.0.s8 %v1745
      %v1747 = vlaneseq
      %v1748 = vshrl.u32 %v1747, 7
      %v1749 = vsub.s32 %v1746, %v1748
      %v1750 = vrot.slane %v1736, %v1749
      %v1751 = vcombine.low %v1743, %v1750
      %v1752 = vcombine.low %v859, %v862
      %v1753 = vcombine.low %v865, %v868
      %v1755 = vunpack.c.l.s4 1983009808
      %v1756 = vunpack.c.0.s8 %v1755
      %v1757 = vlaneseq
      %v1758 = vshrl.u32 %v1757, 7
      %v1759 = vsub.s32 %v1756, %v1758
      %v1760 = vrot.slane %v1752, %v1759
      %v1762 = vunpack.c.l.s4 1983009808
      %v1763 = vunpack.c.0.s8 %v1762
      %v1764 = vlaneseq
      %v1765 = vshrl.u32 %v1764, 7
      %v1766 = vsub.s32 %v1763, %v1765
      %v1767 = vrot.slane %v1753, %v1766
      %v1768 = vcombine.low %v1760, %v1767
      %v1769 = vcombine.low %v871, %v874
      %v1770 = vcombine.low %v877, %v881
      %v1772 = vunpack.c.l.s4 1983009808
      %v1773 = vunpack.c.0.s8 %v1772
      %v1774 = vlaneseq
      %v1775 = vshrl.u32 %v1774, 7
      %v1776 = vsub.s32 %v1773, %v1775
      %v1777 = vrot.slane %v1769, %v1776
      %v1779 = vunpack.c.l.s4 1983009808
      %v1780 = vunpack.c.0.s8 %v1779
      %v1781 = vlaneseq
      %v1782 = vshrl.u32 %v1781, 7
      %v1783 = vsub.s32 %v1780, %v1782
      %v1784 = vrot.slane %v1770, %v1783
      %v1785 = vcombine.low %v1777, %v1784
      %v1786 = vcombine.low %v884, %v887
      %v1787 = vcombine.low %v890, %v893
      %v1789 = vunpack.c.l.s4 1983009808
      %v1790 = vunpack.c.0.s8 %v1789
      %v1791 = vlaneseq
      %v1792 = vshrl.u32 %v1791, 7
      %v1793 = vsub.s32 %v1790, %v1792
      %v1794 = vrot.slane %v1786, %v1793
      %v1796 = vunpack.c.l.s4 1983009808
      %v1797 = vunpack.c.0.s8 %v1796
      %v1798 = vlaneseq
      %v1799 = vshrl.u32 %v1798, 7
      %v1800 = vsub.s32 %v1797, %v1799
      %v1801 = vrot.slane %v1787, %v1800
      %v1802 = vcombine.low %v1794, %v1801
      %v1803 = vcombine.low %v896, %v899
      %v1804 = vcombine.low %v903, %v906
      %v1806 = vunpack.c.l.s4 1983009808
      %v1807 = vunpack.c.0.s8 %v1806
      %v1808 = vlaneseq
      %v1809 = vshrl.u32 %v1808, 7
      %v1810 = vsub.s32 %v1807, %v1809
      %v1811 = vrot.slane %v1803, %v1810
      %v1813 = vunpack.c.l.s4 1983009808
      %v1814 = vunpack.c.0.s8 %v1813
      %v1815 = vlaneseq
      %v1816 = vshrl.u32 %v1815, 7
      %v1817 = vsub.s32 %v1814, %v1816
      %v1818 = vrot.slane %v1804, %v1817
      %v1819 = vcombine.low %v1811, %v1818
      %v1820 = vcombine.low %v909, %v912
      %v1821 = vcombine.low %v915, %v918
      %v1823 = vunpack.c.l.s4 1983009808
      %v1824 = vunpack.c.0.s8 %v1823
      %v1825 = vlaneseq
      %v1826 = vshrl.u32 %v1825, 7
      %v1827 = vsub.s32 %v1824, %v1826
      %v1828 = vrot.slane %v1820, %v1827
      %v1830 = vunpack.c.l.s4 1983009808
      %v1831 = vunpack.c.0.s8 %v1830
      %v1832 = vlaneseq
      %v1833 = vshrl.u32 %v1832, 7
      %v1834 = vsub.s32 %v1831, %v1833
      %v1835 = vrot.slane %v1821, %v1834
      %v1836 = vcombine.low %v1828, %v1835
      %v1837 = vcombine.low %v921, %v925
      %v1838 = vcombine.low %v928, %v931
      %v1840 = vunpack.c.l.s4 1983009808
      %v1841 = vunpack.c.0.s8 %v1840
      %v1842 = vlaneseq
      %v1843 = vshrl.u32 %v1842, 7
      %v1844 = vsub.s32 %v1841, %v1843
      %v1845 = vrot.slane %v1837, %v1844
      %v1847 = vunpack.c.l.s4 1983009808
      %v1848 = vunpack.c.0.s8 %v1847
      %v1849 = vlaneseq
      %v1850 = vshrl.u32 %v1849, 7
      %v1851 = vsub.s32 %v1848, %v1850
      %v1852 = vrot.slane %v1838, %v1851
      %v1853 = vcombine.low %v1845, %v1852
      %v1854 = vcombine.low %v934, %v937
      %v1855 = vcombine.low %v940, %v943
      %v1857 = vunpack.c.l.s4 1983009808
      %v1858 = vunpack.c.0.s8 %v1857
      %v1859 = vlaneseq
      %v1860 = vshrl.u32 %v1859, 7
      %v1861 = vsub.s32 %v1858, %v1860
      %v1862 = vrot.slane %v1854, %v1861
      %v1864 = vunpack.c.l.s4 1983009808
      %v1865 = vunpack.c.0.s8 %v1864
      %v1866 = vlaneseq
      %v1867 = vshrl.u32 %v1866, 7
      %v1868 = vsub.s32 %v1865, %v1867
      %v1869 = vrot.slane %v1855, %v1868
      %v1870 = vcombine.low %v1862, %v1869
      %v1871 = vcombine.low %v947, %v950
      %v1872 = vcombine.low %v953, %v956
      %v1874 = vunpack.c.l.s4 1983009808
      %v1875 = vunpack.c.0.s8 %v1874
      %v1876 = vlaneseq
      %v1877 = vshrl.u32 %v1876, 7
      %v1878 = vsub.s32 %v1875, %v1877
      %v1879 = vrot.slane %v1871, %v1878
      %v1881 = vunpack.c.l.s4 1983009808
      %v1882 = vunpack.c.0.s8 %v1881
      %v1883 = vlaneseq
      %v1884 = vshrl.u32 %v1883, 7
      %v1885 = vsub.s32 %v1882, %v1884
      %v1886 = vrot.slane %v1872, %v1885
      %v1887 = vcombine.low %v1879, %v1886
      %v1888 = vcombine.low %v959, %v962
      %v1889 = vcombine.low %v965, %v969
      %v1891 = vunpack.c.l.s4 1983009808
      %v1892 = vunpack.c.0.s8 %v1891
      %v1893 = vlaneseq
      %v1894 = vshrl.u32 %v1893, 7
      %v1895 = vsub.s32 %v1892, %v1894
      %v1896 = vrot.slane %v1888, %v1895
      %v1898 = vunpack.c.l.s4 1983009808
      %v1899 = vunpack.c.0.s8 %v1898
      %v1900 = vlaneseq
      %v1901 = vshrl.u32 %v1900, 7
      %v1902 = vsub.s32 %v1899, %v1901
      %v1903 = vrot.slane %v1889, %v1902
      %v1904 = vcombine.low %v1896, %v1903
      %v1905 = vcombine.low %v972, %v975
      %v1906 = vcombine.low %v978, %v981
      %v1908 = vunpack.c.l.s4 1983009808
      %v1909 = vunpack.c.0.s8 %v1908
      %v1910 = vlaneseq
      %v1911 = vshrl.u32 %v1910, 7
      %v1912 = vsub.s32 %v1909, %v1911
      %v1913 = vrot.slane %v1905, %v1912
      %v1915 = vunpack.c.l.s4 1983009808
      %v1916 = vunpack.c.0.s8 %v1915
      %v1917 = vlaneseq
      %v1918 = vshrl.u32 %v1917, 7
      %v1919 = vsub.s32 %v1916, %v1918
      %v1920 = vrot.slane %v1906, %v1919
      %v1921 = vcombine.low %v1913, %v1920
      %v1922 = vcombine.low %v984, %v987
      %v1923 = vcombine.low %v991, %v994
      %v1925 = vunpack.c.l.s4 1983009808
      %v1926 = vunpack.c.0.s8 %v1925
      %v1927 = vlaneseq
      %v1928 = vshrl.u32 %v1927, 7
      %v1929 = vsub.s32 %v1926, %v1928
      %v1930 = vrot.slane %v1922, %v1929
      %v1932 = vunpack.c.l.s4 1983009808
      %v1933 = vunpack.c.0.s8 %v1932
      %v1934 = vlaneseq
      %v1935 = vshrl.u32 %v1934, 7
      %v1936 = vsub.s32 %v1933, %v1935
      %v1937 = vrot.slane %v1923, %v1936
      %v1938 = vcombine.low %v1930, %v1937
      %v1939 = vcombine.low %v997, %v1000
      %v1940 = vcombine.low %v1003, %v1006
      %v1942 = vunpack.c.l.s4 1983009808
      %v1943 = vunpack.c.0.s8 %v1942
      %v1944 = vlaneseq
      %v1945 = vshrl.u32 %v1944, 7
      %v1946 = vsub.s32 %v1943, %v1945
      %v1947 = vrot.slane %v1939, %v1946
      %v1949 = vunpack.c.l.s4 1983009808
      %v1950 = vunpack.c.0.s8 %v1949
      %v1951 = vlaneseq
      %v1952 = vshrl.u32 %v1951, 7
      %v1953 = vsub.s32 %v1950, %v1952
      %v1954 = vrot.slane %v1940, %v1953
      %v1955 = vcombine.low %v1947, %v1954
      %v1956 = vcombine.low %v1009, %v1013
      %v1957 = vcombine.low %v1016, %v1019
      %v1959 = vunpack.c.l.s4 1983009808
      %v1960 = vunpack.c.0.s8 %v1959
      %v1961 = vlaneseq
      %v1962 = vshrl.u32 %v1961, 7
      %v1963 = vsub.s32 %v1960, %v1962
      %v1964 = vrot.slane %v1956, %v1963
      %v1966 = vunpack.c.l.s4 1983009808
      %v1967 = vunpack.c.0.s8 %v1966
      %v1968 = vlaneseq
      %v1969 = vshrl.u32 %v1968, 7
      %v1970 = vsub.s32 %v1967, %v1969
      %v1971 = vrot.slane %v1957, %v1970
      %v1972 = vcombine.low %v1964, %v1971
      %v1973 = vcombine.low %v1022, %v1025
      %v1974 = vcombine.low %v1028, %v1031
      %v1976 = vunpack.c.l.s4 1983009808
      %v1977 = vunpack.c.0.s8 %v1976
      %v1978 = vlaneseq
      %v1979 = vshrl.u32 %v1978, 7
      %v1980 = vsub.s32 %v1977, %v1979
      %v1981 = vrot.slane %v1973, %v1980
      %v1983 = vunpack.c.l.s4 1983009808
      %v1984 = vunpack.c.0.s8 %v1983
      %v1985 = vlaneseq
      %v1986 = vshrl.u32 %v1985, 7
      %v1987 = vsub.s32 %v1984, %v1986
      %v1988 = vrot.slane %v1974, %v1987
      %v1989 = vcombine.low %v1981, %v1988
      %v1990 = vcombine.low %v1035, %v1038
      %v1991 = vcombine.low %v1041, %v1044
      %v1993 = vunpack.c.l.s4 1983009808
      %v1994 = vunpack.c.0.s8 %v1993
      %v1995 = vlaneseq
      %v1996 = vshrl.u32 %v1995, 7
      %v1997 = vsub.s32 %v1994, %v1996
      %v1998 = vrot.slane %v1990, %v1997
      %v2000 = vunpack.c.l.s4 1983009808
      %v2001 = vunpack.c.0.s8 %v2000
      %v2002 = vlaneseq
      %v2003 = vshrl.u32 %v2002, 7
      %v2004 = vsub.s32 %v2001, %v2003
      %v2005 = vrot.slane %v1991, %v2004
      %v2006 = vcombine.low %v1998, %v2005
      %v2007 = vcombine.low %v1047, %v1050
      %v2008 = vcombine.low %v1053, %v1057
      %v2010 = vunpack.c.l.s4 1983009808
      %v2011 = vunpack.c.0.s8 %v2010
      %v2012 = vlaneseq
      %v2013 = vshrl.u32 %v2012, 7
      %v2014 = vsub.s32 %v2011, %v2013
      %v2015 = vrot.slane %v2007, %v2014
      %v2017 = vunpack.c.l.s4 1983009808
      %v2018 = vunpack.c.0.s8 %v2017
      %v2019 = vlaneseq
      %v2020 = vshrl.u32 %v2019, 7
      %v2021 = vsub.s32 %v2018, %v2020
      %v2022 = vrot.slane %v2008, %v2021
      %v2023 = vcombine.low %v2015, %v2022
      %v2024 = vcombine.low %v1060, %v1063
      %v2025 = vcombine.low %v1066, %v1069
      %v2027 = vunpack.c.l.s4 1983009808
      %v2028 = vunpack.c.0.s8 %v2027
      %v2029 = vlaneseq
      %v2030 = vshrl.u32 %v2029, 7
      %v2031 = vsub.s32 %v2028, %v2030
      %v2032 = vrot.slane %v2024, %v2031
      %v2034 = vunpack.c.l.s4 1983009808
      %v2035 = vunpack.c.0.s8 %v2034
      %v2036 = vlaneseq
      %v2037 = vshrl.u32 %v2036, 7
      %v2038 = vsub.s32 %v2035, %v2037
      %v2039 = vrot.slane %v2025, %v2038
      %v2040 = vcombine.low %v2032, %v2039
      %v2041 = vcombine.low %v1072, %v1075
      %v2043 = vunpack.c.l.s4 1983009808
      %v2044 = vunpack.c.0.s8 %v2043
      %v2045 = vlaneseq
      %v2046 = vshrl.u32 %v2045, 7
      %v2047 = vsub.s32 %v2044, %v2046
      %v2048 = vrot.slane %v2041, %v2047
      %2049 = vrot.lane.b32.xlu0 %v1649, 4
      %v2050 = vpop.permute.xlu0 %2049
      %2051 = vrot.lane.b32.xlu0 %v1666, 4
      %v2052 = vpop.permute.xlu0 %2051
      %2053 = vrot.lane.b32.xlu0 %v1683, 4
      %v2054 = vpop.permute.xlu0 %2053
      %2055 = vrot.lane.b32.xlu0 %v1700, 4
      %v2056 = vpop.permute.xlu0 %2055
      %2057 = vrot.lane.b32.xlu0 %v1717, 4
      %v2058 = vpop.permute.xlu0 %2057
      %2059 = vrot.lane.b32.xlu0 %v1734, 4
      %v2060 = vpop.permute.xlu0 %2059
      %2061 = vrot.lane.b32.xlu0 %v1751, 4
      %v2062 = vpop.permute.xlu0 %2061
      %2063 = vrot.lane.b32.xlu0 %v1768, 4
      %v2064 = vpop.permute.xlu0 %2063
      %2065 = vrot.lane.b32.xlu0 %v1785, 4
      %v2066 = vpop.permute.xlu0 %2065
      %2067 = vrot.lane.b32.xlu0 %v1802, 4
      %v2068 = vpop.permute.xlu0 %2067
      %2069 = vrot.lane.b32.xlu0 %v1819, 4
      %v2070 = vpop.permute.xlu0 %2069
      %2071 = vrot.lane.b32.xlu0 %v1836, 4
      %v2072 = vpop.permute.xlu0 %2071
      %2073 = vrot.lane.b32.xlu0 %v1853, 4
      %v2074 = vpop.permute.xlu0 %2073
      %2075 = vrot.lane.b32.xlu0 %v1870, 4
      %v2076 = vpop.permute.xlu0 %2075
      %2077 = vrot.lane.b32.xlu0 %v1887, 4
      %v2078 = vpop.permute.xlu0 %2077
      %2079 = vrot.lane.b32.xlu0 %v1904, 4
      %v2080 = vpop.permute.xlu0 %2079
      %2081 = vrot.lane.b32.xlu0 %v1921, 4
      %v2082 = vpop.permute.xlu0 %2081
      %2083 = vrot.lane.b32.xlu0 %v1938, 4
      %v2084 = vpop.permute.xlu0 %2083
      %2085 = vrot.lane.b32.xlu0 %v1955, 4
      %v2086 = vpop.permute.xlu0 %2085
      %2087 = vrot.lane.b32.xlu0 %v1972, 4
      %v2088 = vpop.permute.xlu0 %2087
      %2089 = vrot.lane.b32.xlu0 %v1989, 4
      %v2090 = vpop.permute.xlu0 %2089
      %2091 = vrot.lane.b32.xlu0 %v2006, 4
      %v2092 = vpop.permute.xlu0 %2091
      %2093 = vrot.lane.b32.xlu0 %v2023, 4
      %v2094 = vpop.permute.xlu0 %2093
      %2095 = vrot.lane.b32.xlu0 %v2040, 4
      %v2096 = vpop.permute.xlu0 %2095
      %2097 = vrot.lane.b32.xlu0 %v2048, 4
      %v2098 = vpop.permute.xlu0 %2097
      %v2124 = vcombine.low %v300, %v299
      %v2125 = vcombine.low %v301, %v309
      %v2127 = vunpack.c.l.s4 1983009808
      %v2128 = vunpack.c.0.s8 %v2127
      %v2129 = vlaneseq
      %v2130 = vshrl.u32 %v2129, 7
      %v2131 = vsub.s32 %v2128, %v2130
      %v2132 = vrot.slane %v2124, %v2131
      %v2134 = vunpack.c.l.s4 1983009808
      %v2135 = vunpack.c.0.s8 %v2134
      %v2136 = vlaneseq
      %v2137 = vshrl.u32 %v2136, 7
      %v2138 = vsub.s32 %v2135, %v2137
      %v2139 = vrot.slane %v2125, %v2138
      %v2140 = vcombine.low %v2132, %v2139
      %v2141 = vcombine.low %v317, %v316
      %v2142 = vcombine.low %v747, %v333
      %v2144 = vunpack.c.l.s4 1983009808
      %v2145 = vunpack.c.0.s8 %v2144
      %v2146 = vlaneseq
      %v2147 = vshrl.u32 %v2146, 7
      %v2148 = vsub.s32 %v2145, %v2147
      %v2149 = vrot.slane %v2141, %v2148
      %v2151 = vunpack.c.l.s4 1983009808
      %v2152 = vunpack.c.0.s8 %v2151
      %v2153 = vlaneseq
      %v2154 = vshrl.u32 %v2153, 7
      %v2155 = vsub.s32 %v2152, %v2154
      %v2156 = vrot.slane %v2142, %v2155
      %v2157 = vcombine.low %v2149, %v2156
      %v2158 = vcombine.low %v332, %v334
      %v2159 = vcombine.low %v342, %v350
      %v2161 = vunpack.c.l.s4 1983009808
      %v2162 = vunpack.c.0.s8 %v2161
      %v2163 = vlaneseq
      %v2164 = vshrl.u32 %v2163, 7
      %v2165 = vsub.s32 %v2162, %v2164
      %v2166 = vrot.slane %v2158, %v2165
      %v2168 = vunpack.c.l.s4 1983009808
      %v2169 = vunpack.c.0.s8 %v2168
      %v2170 = vlaneseq
      %v2171 = vshrl.u32 %v2170, 7
      %v2172 = vsub.s32 %v2169, %v2171
      %v2173 = vrot.slane %v2159, %v2172
      %v2174 = vcombine.low %v2166, %v2173
      %v2175 = vcombine.low %v349, %v748
      %v2176 = vcombine.low %v366, %v365
      %v2178 = vunpack.c.l.s4 1983009808
      %v2179 = vunpack.c.0.s8 %v2178
      %v2180 = vlaneseq
      %v2181 = vshrl.u32 %v2180, 7
      %v2182 = vsub.s32 %v2179, %v2181
      %v2183 = vrot.slane %v2175, %v2182
      %v2185 = vunpack.c.l.s4 1983009808
      %v2186 = vunpack.c.0.s8 %v2185
      %v2187 = vlaneseq
      %v2188 = vshrl.u32 %v2187, 7
      %v2189 = vsub.s32 %v2186, %v2188
      %v2190 = vrot.slane %v2176, %v2189
      %v2191 = vcombine.low %v2183, %v2190
      %v2192 = vcombine.low %v367, %v375
      %v2193 = vcombine.low %v383, %v382
      %v2195 = vunpack.c.l.s4 1983009808
      %v2196 = vunpack.c.0.s8 %v2195
      %v2197 = vlaneseq
      %v2198 = vshrl.u32 %v2197, 7
      %v2199 = vsub.s32 %v2196, %v2198
      %v2200 = vrot.slane %v2192, %v2199
      %v2202 = vunpack.c.l.s4 1983009808
      %v2203 = vunpack.c.0.s8 %v2202
      %v2204 = vlaneseq
      %v2205 = vshrl.u32 %v2204, 7
      %v2206 = vsub.s32 %v2203, %v2205
      %v2207 = vrot.slane %v2193, %v2206
      %v2208 = vcombine.low %v2200, %v2207
      %v2209 = vcombine.low %v749, %v399
      %v2210 = vcombine.low %v398, %v400
      %v2212 = vunpack.c.l.s4 1983009808
      %v2213 = vunpack.c.0.s8 %v2212
      %v2214 = vlaneseq
      %v2215 = vshrl.u32 %v2214, 7
      %v2216 = vsub.s32 %v2213, %v2215
      %v2217 = vrot.slane %v2209, %v2216
      %v2219 = vunpack.c.l.s4 1983009808
      %v2220 = vunpack.c.0.s8 %v2219
      %v2221 = vlaneseq
      %v2222 = vshrl.u32 %v2221, 7
      %v2223 = vsub.s32 %v2220, %v2222
      %v2224 = vrot.slane %v2210, %v2223
      %v2225 = vcombine.low %v2217, %v2224
      %v2226 = vcombine.low %v408, %v416
      %v2227 = vcombine.low %v415, %v750
      %v2229 = vunpack.c.l.s4 1983009808
      %v2230 = vunpack.c.0.s8 %v2229
      %v2231 = vlaneseq
      %v2232 = vshrl.u32 %v2231, 7
      %v2233 = vsub.s32 %v2230, %v2232
      %v2234 = vrot.slane %v2226, %v2233
      %v2236 = vunpack.c.l.s4 1983009808
      %v2237 = vunpack.c.0.s8 %v2236
      %v2238 = vlaneseq
      %v2239 = vshrl.u32 %v2238, 7
      %v2240 = vsub.s32 %v2237, %v2239
      %v2241 = vrot.slane %v2227, %v2240
      %v2242 = vcombine.low %v2234, %v2241
      %v2243 = vcombine.low %v432, %v431
      %v2244 = vcombine.low %v433, %v441
      %v2246 = vunpack.c.l.s4 1983009808
      %v2247 = vunpack.c.0.s8 %v2246
      %v2248 = vlaneseq
      %v2249 = vshrl.u32 %v2248, 7
      %v2250 = vsub.s32 %v2247, %v2249
      %v2251 = vrot.slane %v2243, %v2250
      %v2253 = vunpack.c.l.s4 1983009808
      %v2254 = vunpack.c.0.s8 %v2253
      %v2255 = vlaneseq
      %v2256 = vshrl.u32 %v2255, 7
      %v2257 = vsub.s32 %v2254, %v2256
      %v2258 = vrot.slane %v2244, %v2257
      %v2259 = vcombine.low %v2251, %v2258
      %v2260 = vcombine.low %v449, %v448
      %v2261 = vcombine.low %v751, %v465
      %v2263 = vunpack.c.l.s4 1983009808
      %v2264 = vunpack.c.0.s8 %v2263
      %v2265 = vlaneseq
      %v2266 = vshrl.u32 %v2265, 7
      %v2267 = vsub.s32 %v2264, %v2266
      %v2268 = vrot.slane %v2260, %v2267
      %v2270 = vunpack.c.l.s4 1983009808
      %v2271 = vunpack.c.0.s8 %v2270
      %v2272 = vlaneseq
      %v2273 = vshrl.u32 %v2272, 7
      %v2274 = vsub.s32 %v2271, %v2273
      %v2275 = vrot.slane %v2261, %v2274
      %v2276 = vcombine.low %v2268, %v2275
      %v2277 = vcombine.low %v464, %v466
      %v2278 = vcombine.low %v474, %v482
      %v2280 = vunpack.c.l.s4 1983009808
      %v2281 = vunpack.c.0.s8 %v2280
      %v2282 = vlaneseq
      %v2283 = vshrl.u32 %v2282, 7
      %v2284 = vsub.s32 %v2281, %v2283
      %v2285 = vrot.slane %v2277, %v2284
      %v2287 = vunpack.c.l.s4 1983009808
      %v2288 = vunpack.c.0.s8 %v2287
      %v2289 = vlaneseq
      %v2290 = vshrl.u32 %v2289, 7
      %v2291 = vsub.s32 %v2288, %v2290
      %v2292 = vrot.slane %v2278, %v2291
      %v2293 = vcombine.low %v2285, %v2292
      %v2294 = vcombine.low %v481, %v752
      %v2295 = vcombine.low %v498, %v497
      %v2297 = vunpack.c.l.s4 1983009808
      %v2298 = vunpack.c.0.s8 %v2297
      %v2299 = vlaneseq
      %v2300 = vshrl.u32 %v2299, 7
      %v2301 = vsub.s32 %v2298, %v2300
      %v2302 = vrot.slane %v2294, %v2301
      %v2304 = vunpack.c.l.s4 1983009808
      %v2305 = vunpack.c.0.s8 %v2304
      %v2306 = vlaneseq
      %v2307 = vshrl.u32 %v2306, 7
      %v2308 = vsub.s32 %v2305, %v2307
      %v2309 = vrot.slane %v2295, %v2308
      %v2310 = vcombine.low %v2302, %v2309
      %v2311 = vcombine.low %v499, %v507
      %v2312 = vcombine.low %v515, %v514
      %v2314 = vunpack.c.l.s4 1983009808
      %v2315 = vunpack.c.0.s8 %v2314
      %v2316 = vlaneseq
      %v2317 = vshrl.u32 %v2316, 7
      %v2318 = vsub.s32 %v2315, %v2317
      %v2319 = vrot.slane %v2311, %v2318
      %v2321 = vunpack.c.l.s4 1983009808
      %v2322 = vunpack.c.0.s8 %v2321
      %v2323 = vlaneseq
      %v2324 = vshrl.u32 %v2323, 7
      %v2325 = vsub.s32 %v2322, %v2324
      %v2326 = vrot.slane %v2312, %v2325
      %v2327 = vcombine.low %v2319, %v2326
      %v2328 = vcombine.low %v753, %v531
      %v2329 = vcombine.low %v530, %v532
      %v2331 = vunpack.c.l.s4 1983009808
      %v2332 = vunpack.c.0.s8 %v2331
      %v2333 = vlaneseq
      %v2334 = vshrl.u32 %v2333, 7
      %v2335 = vsub.s32 %v2332, %v2334
      %v2336 = vrot.slane %v2328, %v2335
      %v2338 = vunpack.c.l.s4 1983009808
      %v2339 = vunpack.c.0.s8 %v2338
      %v2340 = vlaneseq
      %v2341 = vshrl.u32 %v2340, 7
      %v2342 = vsub.s32 %v2339, %v2341
      %v2343 = vrot.slane %v2329, %v2342
      %v2344 = vcombine.low %v2336, %v2343
      %v2345 = vcombine.low %v540, %v548
      %v2346 = vcombine.low %v547, %v754
      %v2348 = vunpack.c.l.s4 1983009808
      %v2349 = vunpack.c.0.s8 %v2348
      %v2350 = vlaneseq
      %v2351 = vshrl.u32 %v2350, 7
      %v2352 = vsub.s32 %v2349, %v2351
      %v2353 = vrot.slane %v2345, %v2352
      %v2355 = vunpack.c.l.s4 1983009808
      %v2356 = vunpack.c.0.s8 %v2355
      %v2357 = vlaneseq
      %v2358 = vshrl.u32 %v2357, 7
      %v2359 = vsub.s32 %v2356, %v2358
      %v2360 = vrot.slane %v2346, %v2359
      %v2361 = vcombine.low %v2353, %v2360
      %v2362 = vcombine.low %v564, %v563
      %v2363 = vcombine.low %v565, %v573
      %v2365 = vunpack.c.l.s4 1983009808
      %v2366 = vunpack.c.0.s8 %v2365
      %v2367 = vlaneseq
      %v2368 = vshrl.u32 %v2367, 7
      %v2369 = vsub.s32 %v2366, %v2368
      %v2370 = vrot.slane %v2362, %v2369
      %v2372 = vunpack.c.l.s4 1983009808
      %v2373 = vunpack.c.0.s8 %v2372
      %v2374 = vlaneseq
      %v2375 = vshrl.u32 %v2374, 7
      %v2376 = vsub.s32 %v2373, %v2375
      %v2377 = vrot.slane %v2363, %v2376
      %v2378 = vcombine.low %v2370, %v2377
      %v2379 = vcombine.low %v581, %v580
      %v2380 = vcombine.low %v755, %v597
      %v2382 = vunpack.c.l.s4 1983009808
      %v2383 = vunpack.c.0.s8 %v2382
      %v2384 = vlaneseq
      %v2385 = vshrl.u32 %v2384, 7
      %v2386 = vsub.s32 %v2383, %v2385
      %v2387 = vrot.slane %v2379, %v2386
      %v2389 = vunpack.c.l.s4 1983009808
      %v2390 = vunpack.c.0.s8 %v2389
      %v2391 = vlaneseq
      %v2392 = vshrl.u32 %v2391, 7
      %v2393 = vsub.s32 %v2390, %v2392
      %v2394 = vrot.slane %v2380, %v2393
      %v2395 = vcombine.low %v2387, %v2394
      %v2396 = vcombine.low %v596, %v598
      %v2397 = vcombine.low %v606, %v614
      %v2399 = vunpack.c.l.s4 1983009808
      %v2400 = vunpack.c.0.s8 %v2399
      %v2401 = vlaneseq
      %v2402 = vshrl.u32 %v2401, 7
      %v2403 = vsub.s32 %v2400, %v2402
      %v2404 = vrot.slane %v2396, %v2403
      %v2406 = vunpack.c.l.s4 1983009808
      %v2407 = vunpack.c.0.s8 %v2406
      %v2408 = vlaneseq
      %v2409 = vshrl.u32 %v2408, 7
      %v2410 = vsub.s32 %v2407, %v2409
      %v2411 = vrot.slane %v2397, %v2410
      %v2412 = vcombine.low %v2404, %v2411
      %v2413 = vcombine.low %v613, %v756
      %v2414 = vcombine.low %v630, %v629
      %v2416 = vunpack.c.l.s4 1983009808
      %v2417 = vunpack.c.0.s8 %v2416
      %v2418 = vlaneseq
      %v2419 = vshrl.u32 %v2418, 7
      %v2420 = vsub.s32 %v2417, %v2419
      %v2421 = vrot.slane %v2413, %v2420
      %v2423 = vunpack.c.l.s4 1983009808
      %v2424 = vunpack.c.0.s8 %v2423
      %v2425 = vlaneseq
      %v2426 = vshrl.u32 %v2425, 7
      %v2427 = vsub.s32 %v2424, %v2426
      %v2428 = vrot.slane %v2414, %v2427
      %v2429 = vcombine.low %v2421, %v2428
      %v2430 = vcombine.low %v631, %v639
      %v2431 = vcombine.low %v647, %v646
      %v2433 = vunpack.c.l.s4 1983009808
      %v2434 = vunpack.c.0.s8 %v2433
      %v2435 = vlaneseq
      %v2436 = vshrl.u32 %v2435, 7
      %v2437 = vsub.s32 %v2434, %v2436
      %v2438 = vrot.slane %v2430, %v2437
      %v2440 = vunpack.c.l.s4 1983009808
      %v2441 = vunpack.c.0.s8 %v2440
      %v2442 = vlaneseq
      %v2443 = vshrl.u32 %v2442, 7
      %v2444 = vsub.s32 %v2441, %v2443
      %v2445 = vrot.slane %v2431, %v2444
      %v2446 = vcombine.low %v2438, %v2445
      %v2447 = vcombine.low %v757, %v663
      %v2448 = vcombine.low %v662, %v664
      %v2450 = vunpack.c.l.s4 1983009808
      %v2451 = vunpack.c.0.s8 %v2450
      %v2452 = vlaneseq
      %v2453 = vshrl.u32 %v2452, 7
      %v2454 = vsub.s32 %v2451, %v2453
      %v2455 = vrot.slane %v2447, %v2454
      %v2457 = vunpack.c.l.s4 1983009808
      %v2458 = vunpack.c.0.s8 %v2457
      %v2459 = vlaneseq
      %v2460 = vshrl.u32 %v2459, 7
      %v2461 = vsub.s32 %v2458, %v2460
      %v2462 = vrot.slane %v2448, %v2461
      %v2463 = vcombine.low %v2455, %v2462
      %v2464 = vcombine.low %v672, %v680
      %v2465 = vcombine.low %v679, %v758
      %v2467 = vunpack.c.l.s4 1983009808
      %v2468 = vunpack.c.0.s8 %v2467
      %v2469 = vlaneseq
      %v2470 = vshrl.u32 %v2469, 7
      %v2471 = vsub.s32 %v2468, %v2470
      %v2472 = vrot.slane %v2464, %v2471
      %v2474 = vunpack.c.l.s4 1983009808
      %v2475 = vunpack.c.0.s8 %v2474
      %v2476 = vlaneseq
      %v2477 = vshrl.u32 %v2476, 7
      %v2478 = vsub.s32 %v2475, %v2477
      %v2479 = vrot.slane %v2465, %v2478
      %v2480 = vcombine.low %v2472, %v2479
      %v2481 = vcombine.low %v696, %v695
      %v2482 = vcombine.low %v697, %v705
      %v2484 = vunpack.c.l.s4 1983009808
      %v2485 = vunpack.c.0.s8 %v2484
      %v2486 = vlaneseq
      %v2487 = vshrl.u32 %v2486, 7
      %v2488 = vsub.s32 %v2485, %v2487
      %v2489 = vrot.slane %v2481, %v2488
      %v2491 = vunpack.c.l.s4 1983009808
      %v2492 = vunpack.c.0.s8 %v2491
      %v2493 = vlaneseq
      %v2494 = vshrl.u32 %v2493, 7
      %v2495 = vsub.s32 %v2492, %v2494
      %v2496 = vrot.slane %v2482, %v2495
      %v2497 = vcombine.low %v2489, %v2496
      %v2498 = vcombine.low %v713, %v712
      %v2499 = vcombine.low %v759, %v729
      %v2501 = vunpack.c.l.s4 1983009808
      %v2502 = vunpack.c.0.s8 %v2501
      %v2503 = vlaneseq
      %v2504 = vshrl.u32 %v2503, 7
      %v2505 = vsub.s32 %v2502, %v2504
      %v2506 = vrot.slane %v2498, %v2505
      %v2508 = vunpack.c.l.s4 1983009808
      %v2509 = vunpack.c.0.s8 %v2508
      %v2510 = vlaneseq
      %v2511 = vshrl.u32 %v2510, 7
      %v2512 = vsub.s32 %v2509, %v2511
      %v2513 = vrot.slane %v2499, %v2512
      %v2514 = vcombine.low %v2506, %v2513
      %v2515 = vcombine.low %v728, %v730
      %v2516 = vcombine.low %v738, %v746
      %v2518 = vunpack.c.l.s4 1983009808
      %v2519 = vunpack.c.0.s8 %v2518
      %v2520 = vlaneseq
      %v2521 = vshrl.u32 %v2520, 7
      %v2522 = vsub.s32 %v2519, %v2521
      %v2523 = vrot.slane %v2515, %v2522
      %v2525 = vunpack.c.l.s4 1983009808
      %v2526 = vunpack.c.0.s8 %v2525
      %v2527 = vlaneseq
      %v2528 = vshrl.u32 %v2527, 7
      %v2529 = vsub.s32 %v2526, %v2528
      %v2530 = vrot.slane %v2516, %v2529
      %v2531 = vcombine.low %v2523, %v2530
      %v2532 = vcombine.low %v745, %v760
      %v2534 = vunpack.c.l.s4 1983009808
      %v2535 = vunpack.c.0.s8 %v2534
      %v2536 = vlaneseq
      %v2537 = vshrl.u32 %v2536, 7
      %v2538 = vsub.s32 %v2535, %v2537
      %v2539 = vrot.slane %v2532, %v2538
      %2540 = vrot.lane.b32.xlu0 %v2140, 8
      %v2541 = vpop.permute.xlu0 %2540
      %2542 = vrot.lane.b32.xlu0 %v2157, 8
      %v2543 = vpop.permute.xlu0 %2542
      %2544 = vrot.lane.b32.xlu0 %v2174, 8
      %v2545 = vpop.permute.xlu0 %2544
      %2546 = vrot.lane.b32.xlu0 %v2191, 8
      %v2547 = vpop.permute.xlu0 %2546
      %2548 = vrot.lane.b32.xlu0 %v2208, 8
      %v2549 = vpop.permute.xlu0 %2548
      %2550 = vrot.lane.b32.xlu0 %v2225, 8
      %v2551 = vpop.permute.xlu0 %2550
      %2552 = vrot.lane.b32.xlu0 %v2242, 8
      %v2553 = vpop.permute.xlu0 %2552
      %2554 = vrot.lane.b32.xlu0 %v2259, 8
      %v2555 = vpop.permute.xlu0 %2554
      %2556 = vrot.lane.b32.xlu0 %v2276, 8
      %v2557 = vpop.permute.xlu0 %2556
      %2558 = vrot.lane.b32.xlu0 %v2293, 8
      %v2559 = vpop.permute.xlu0 %2558
      %2560 = vrot.lane.b32.xlu0 %v2310, 8
      %v2561 = vpop.permute.xlu0 %2560
      %2562 = vrot.lane.b32.xlu0 %v2327, 8
      %v2563 = vpop.permute.xlu0 %2562
      %2564 = vrot.lane.b32.xlu0 %v2344, 8
      %v2565 = vpop.permute.xlu0 %2564
      %2566 = vrot.lane.b32.xlu0 %v2361, 8
      %v2567 = vpop.permute.xlu0 %2566
      %2568 = vrot.lane.b32.xlu0 %v2378, 8
      %v2569 = vpop.permute.xlu0 %2568
      %2570 = vrot.lane.b32.xlu0 %v2395, 8
      %v2571 = vpop.permute.xlu0 %2570
      %2572 = vrot.lane.b32.xlu0 %v2412, 8
      %v2573 = vpop.permute.xlu0 %2572
      %2574 = vrot.lane.b32.xlu0 %v2429, 8
      %v2575 = vpop.permute.xlu0 %2574
      %2576 = vrot.lane.b32.xlu0 %v2446, 8
      %v2577 = vpop.permute.xlu0 %2576
      %2578 = vrot.lane.b32.xlu0 %v2463, 8
      %v2579 = vpop.permute.xlu0 %2578
      %2580 = vrot.lane.b32.xlu0 %v2480, 8
      %v2581 = vpop.permute.xlu0 %2580
      %2582 = vrot.lane.b32.xlu0 %v2497, 8
      %v2583 = vpop.permute.xlu0 %2582
      %2584 = vrot.lane.b32.xlu0 %v2514, 8
      %v2585 = vpop.permute.xlu0 %2584
      %2586 = vrot.lane.b32.xlu0 %v2531, 8
      %v2587 = vpop.permute.xlu0 %2586
      %2588 = vrot.lane.b32.xlu0 %v2539, 8
      %v2589 = vpop.permute.xlu0 %2588
      %v2615 = vcombine.low %v325, %v333
      %v2617 = vunpack.c.l.s4 1983009808
      %v2618 = vunpack.c.0.s8 %v2617
      %v2619 = vlaneseq
      %v2620 = vshrl.u32 %v2619, 7
      %v2621 = vsub.s32 %v2618, %v2620
      %v2622 = vrot.slane %v2615, %v2621
      %v2623 = vcombine.low %v2622, %v2166
      %v2624 = vcombine.low %v349, %v358
      %v2626 = vunpack.c.l.s4 1983009808
      %v2627 = vunpack.c.0.s8 %v2626
      %v2628 = vlaneseq
      %v2629 = vshrl.u32 %v2628, 7
      %v2630 = vsub.s32 %v2627, %v2629
      %v2631 = vrot.slane %v2624, %v2630
      %v2632 = vcombine.low %v2173, %v2631
      %v2633 = vcombine.low %v2190, %v2200
      %v2634 = vcombine.low %v391, %v399
      %v2636 = vunpack.c.l.s4 1983009808
      %v2637 = vunpack.c.0.s8 %v2636
      %v2638 = vlaneseq
      %v2639 = vshrl.u32 %v2638, 7
      %v2640 = vsub.s32 %v2637, %v2639
      %v2641 = vrot.slane %v2634, %v2640
      %v2642 = vcombine.low %v2207, %v2641
      %v2643 = vcombine.low %v2224, %v2234
      %v2644 = vcombine.low %v415, %v424
      %v2646 = vunpack.c.l.s4 1983009808
      %v2647 = vunpack.c.0.s8 %v2646
      %v2648 = vlaneseq
      %v2649 = vshrl.u32 %v2648, 7
      %v2650 = vsub.s32 %v2647, %v2649
      %v2651 = vrot.slane %v2644, %v2650
      %v2652 = vcombine.low %v2651, %v2251
      %v2653 = vcombine.low %v2258, %v2268
      %v2654 = vcombine.low %v457, %v465
      %v2656 = vunpack.c.l.s4 1983009808
      %v2657 = vunpack.c.0.s8 %v2656
      %v2658 = vlaneseq
      %v2659 = vshrl.u32 %v2658, 7
      %v2660 = vsub.s32 %v2657, %v2659
      %v2661 = vrot.slane %v2654, %v2660
      %v2662 = vcombine.low %v2661, %v2285
      %v2663 = vcombine.low %v481, %v490
      %v2665 = vunpack.c.l.s4 1983009808
      %v2666 = vunpack.c.0.s8 %v2665
      %v2667 = vlaneseq
      %v2668 = vshrl.u32 %v2667, 7
      %v2669 = vsub.s32 %v2666, %v2668
      %v2670 = vrot.slane %v2663, %v2669
      %v2671 = vcombine.low %v2292, %v2670
      %v2672 = vcombine.low %v2309, %v2319
      %v2673 = vcombine.low %v523, %v531
      %v2675 = vunpack.c.l.s4 1983009808
      %v2676 = vunpack.c.0.s8 %v2675
      %v2677 = vlaneseq
      %v2678 = vshrl.u32 %v2677, 7
      %v2679 = vsub.s32 %v2676, %v2678
      %v2680 = vrot.slane %v2673, %v2679
      %v2681 = vcombine.low %v2326, %v2680
      %v2682 = vcombine.low %v2343, %v2353
      %v2683 = vcombine.low %v547, %v556
      %v2685 = vunpack.c.l.s4 1983009808
      %v2686 = vunpack.c.0.s8 %v2685
      %v2687 = vlaneseq
      %v2688 = vshrl.u32 %v2687, 7
      %v2689 = vsub.s32 %v2686, %v2688
      %v2690 = vrot.slane %v2683, %v2689
      %v2691 = vcombine.low %v2690, %v2370
      %v2692 = vcombine.low %v2377, %v2387
      %v2693 = vcombine.low %v589, %v597
      %v2695 = vunpack.c.l.s4 1983009808
      %v2696 = vunpack.c.0.s8 %v2695
      %v2697 = vlaneseq
      %v2698 = vshrl.u32 %v2697, 7
      %v2699 = vsub.s32 %v2696, %v2698
      %v2700 = vrot.slane %v2693, %v2699
      %v2701 = vcombine.low %v2700, %v2404
      %v2702 = vcombine.low %v613, %v622
      %v2704 = vunpack.c.l.s4 1983009808
      %v2705 = vunpack.c.0.s8 %v2704
      %v2706 = vlaneseq
      %v2707 = vshrl.u32 %v2706, 7
      %v2708 = vsub.s32 %v2705, %v2707
      %v2709 = vrot.slane %v2702, %v2708
      %v2710 = vcombine.low %v2411, %v2709
      %v2711 = vcombine.low %v2428, %v2438
      %v2712 = vcombine.low %v655, %v663
      %v2714 = vunpack.c.l.s4 1983009808
      %v2715 = vunpack.c.0.s8 %v2714
      %v2716 = vlaneseq
      %v2717 = vshrl.u32 %v2716, 7
      %v2718 = vsub.s32 %v2715, %v2717
      %v2719 = vrot.slane %v2712, %v2718
      %v2720 = vcombine.low %v2445, %v2719
      %v2721 = vcombine.low %v2462, %v2472
      %v2722 = vcombine.low %v679, %v688
      %v2724 = vunpack.c.l.s4 1983009808
      %v2725 = vunpack.c.0.s8 %v2724
      %v2726 = vlaneseq
      %v2727 = vshrl.u32 %v2726, 7
      %v2728 = vsub.s32 %v2725, %v2727
      %v2729 = vrot.slane %v2722, %v2728
      %v2730 = vcombine.low %v2729, %v2489
      %v2731 = vcombine.low %v2496, %v2506
      %v2732 = vcombine.low %v721, %v729
      %v2734 = vunpack.c.l.s4 1983009808
      %v2735 = vunpack.c.0.s8 %v2734
      %v2736 = vlaneseq
      %v2737 = vshrl.u32 %v2736, 7
      %v2738 = vsub.s32 %v2735, %v2737
      %v2739 = vrot.slane %v2732, %v2738
      %v2740 = vcombine.low %v2739, %v2523
      %v2741 = vcombine.low %v745, %v1085
      %v2743 = vunpack.c.l.s4 1983009808
      %v2744 = vunpack.c.0.s8 %v2743
      %v2745 = vlaneseq
      %v2746 = vshrl.u32 %v2745, 7
      %v2747 = vsub.s32 %v2744, %v2746
      %v2748 = vrot.slane %v2741, %v2747
      %v2749 = vcombine.low %v2530, %v2748
      %v2750 = vcombine.low %v1093, %v1092
      %v2751 = vcombine.low %v1094, %v1102
      %v2753 = vunpack.c.l.s4 1983009808
      %v2754 = vunpack.c.0.s8 %v2753
      %v2755 = vlaneseq
      %v2756 = vshrl.u32 %v2755, 7
      %v2757 = vsub.s32 %v2754, %v2756
      %v2758 = vrot.slane %v2750, %v2757
      %v2760 = vunpack.c.l.s4 1983009808
      %v2761 = vunpack.c.0.s8 %v2760
      %v2762 = vlaneseq
      %v2763 = vshrl.u32 %v2762, 7
      %v2764 = vsub.s32 %v2761, %v2763
      %v2765 = vrot.slane %v2751, %v2764
      %v2766 = vcombine.low %v2758, %v2765
      %v2767 = vcombine.low %v1110, %v1109
      %v2769 = vunpack.c.l.s4 1983009808
      %v2770 = vunpack.c.0.s8 %v2769
      %v2771 = vlaneseq
      %v2772 = vshrl.u32 %v2771, 7
      %v2773 = vsub.s32 %v2770, %v2772
      %v2774 = vrot.slane %v2767, %v2773
      %2775 = vrot.lane.b32.xlu0 %v2623, 12
      %v2776 = vpop.permute.xlu0 %2775
      %2777 = vrot.lane.b32.xlu0 %v2632, 12
      %v2778 = vpop.permute.xlu0 %2777
      %2779 = vrot.lane.b32.xlu0 %v2633, 12
      %v2780 = vpop.permute.xlu0 %2779
      %2781 = vrot.lane.b32.xlu0 %v2642, 12
      %v2782 = vpop.permute.xlu0 %2781
      %2783 = vrot.lane.b32.xlu0 %v2643, 12
      %v2784 = vpop.permute.xlu0 %2783
      %2785 = vrot.lane.b32.xlu0 %v2652, 12
      %v2786 = vpop.permute.xlu0 %2785
      %2787 = vrot.lane.b32.xlu0 %v2653, 12
      %v2788 = vpop.permute.xlu0 %2787
      %2789 = vrot.lane.b32.xlu0 %v2662, 12
      %v2790 = vpop.permute.xlu0 %2789
      %2791 = vrot.lane.b32.xlu0 %v2671, 12
      %v2792 = vpop.permute.xlu0 %2791
      %2793 = vrot.lane.b32.xlu0 %v2672, 12
      %v2794 = vpop.permute.xlu0 %2793
      %2795 = vrot.lane.b32.xlu0 %v2681, 12
      %v2796 = vpop.permute.xlu0 %2795
      %2797 = vrot.lane.b32.xlu0 %v2682, 12
      %v2798 = vpop.permute.xlu0 %2797
      %2799 = vrot.lane.b32.xlu0 %v2691, 12
      %v2800 = vpop.permute.xlu0 %2799
      %2801 = vrot.lane.b32.xlu0 %v2692, 12
      %v2802 = vpop.permute.xlu0 %2801
      %2803 = vrot.lane.b32.xlu0 %v2701, 12
      %v2804 = vpop.permute.xlu0 %2803
      %2805 = vrot.lane.b32.xlu0 %v2710, 12
      %v2806 = vpop.permute.xlu0 %2805
      %2807 = vrot.lane.b32.xlu0 %v2711, 12
      %v2808 = vpop.permute.xlu0 %2807
      %2809 = vrot.lane.b32.xlu0 %v2720, 12
      %v2810 = vpop.permute.xlu0 %2809
      %2811 = vrot.lane.b32.xlu0 %v2721, 12
      %v2812 = vpop.permute.xlu0 %2811
      %2813 = vrot.lane.b32.xlu0 %v2730, 12
      %v2814 = vpop.permute.xlu0 %2813
      %2815 = vrot.lane.b32.xlu0 %v2731, 12
      %v2816 = vpop.permute.xlu0 %2815
      %2817 = vrot.lane.b32.xlu0 %v2740, 12
      %v2818 = vpop.permute.xlu0 %2817
      %2819 = vrot.lane.b32.xlu0 %v2749, 12
      %v2820 = vpop.permute.xlu0 %2819
      %2821 = vrot.lane.b32.xlu0 %v2766, 12
      %v2822 = vpop.permute.xlu0 %2821
      %2823 = vrot.lane.b32.xlu0 %v2774, 12
      %v2824 = vpop.permute.xlu0 %2823
      %v2850 = vcombine.low %v793, %v796
      %v2851 = vcombine.low %v799, %v802
      %v2853 = vunpack.c.l.s4 1983009808
      %v2854 = vunpack.c.0.s8 %v2853
      %v2855 = vlaneseq
      %v2856 = vshrl.u32 %v2855, 7
      %v2857 = vsub.s32 %v2854, %v2856
      %v2858 = vrot.slane %v2850, %v2857
      %v2860 = vunpack.c.l.s4 1983009808
      %v2861 = vunpack.c.0.s8 %v2860
      %v2862 = vlaneseq
      %v2863 = vshrl.u32 %v2862, 7
      %v2864 = vsub.s32 %v2861, %v2863
      %v2865 = vrot.slane %v2851, %v2864
      %v2866 = vcombine.low %v2858, %v2865
      %v2867 = vcombine.low %v805, %v808
      %v2868 = vcombine.low %v811, %v815
      %v2870 = vunpack.c.l.s4 1983009808
      %v2871 = vunpack.c.0.s8 %v2870
      %v2872 = vlaneseq
      %v2873 = vshrl.u32 %v2872, 7
      %v2874 = vsub.s32 %v2871, %v2873
      %v2875 = vrot.slane %v2867, %v2874
      %v2877 = vunpack.c.l.s4 1983009808
      %v2878 = vunpack.c.0.s8 %v2877
      %v2879 = vlaneseq
      %v2880 = vshrl.u32 %v2879, 7
      %v2881 = vsub.s32 %v2878, %v2880
      %v2882 = vrot.slane %v2868, %v2881
      %v2883 = vcombine.low %v2875, %v2882
      %v2884 = vcombine.low %v818, %v821
      %v2885 = vcombine.low %v824, %v827
      %v2887 = vunpack.c.l.s4 1983009808
      %v2888 = vunpack.c.0.s8 %v2887
      %v2889 = vlaneseq
      %v2890 = vshrl.u32 %v2889, 7
      %v2891 = vsub.s32 %v2888, %v2890
      %v2892 = vrot.slane %v2884, %v2891
      %v2894 = vunpack.c.l.s4 1983009808
      %v2895 = vunpack.c.0.s8 %v2894
      %v2896 = vlaneseq
      %v2897 = vshrl.u32 %v2896, 7
      %v2898 = vsub.s32 %v2895, %v2897
      %v2899 = vrot.slane %v2885, %v2898
      %v2900 = vcombine.low %v2892, %v2899
      %v2901 = vcombine.low %v830, %v833
      %v2902 = vcombine.low %v837, %v840
      %v2904 = vunpack.c.l.s4 1983009808
      %v2905 = vunpack.c.0.s8 %v2904
      %v2906 = vlaneseq
      %v2907 = vshrl.u32 %v2906, 7
      %v2908 = vsub.s32 %v2905, %v2907
      %v2909 = vrot.slane %v2901, %v2908
      %v2911 = vunpack.c.l.s4 1983009808
      %v2912 = vunpack.c.0.s8 %v2911
      %v2913 = vlaneseq
      %v2914 = vshrl.u32 %v2913, 7
      %v2915 = vsub.s32 %v2912, %v2914
      %v2916 = vrot.slane %v2902, %v2915
      %v2917 = vcombine.low %v2909, %v2916
      %v2918 = vcombine.low %v843, %v846
      %v2919 = vcombine.low %v849, %v852
      %v2921 = vunpack.c.l.s4 1983009808
      %v2922 = vunpack.c.0.s8 %v2921
      %v2923 = vlaneseq
      %v2924 = vshrl.u32 %v2923, 7
      %v2925 = vsub.s32 %v2922, %v2924
      %v2926 = vrot.slane %v2918, %v2925
      %v2928 = vunpack.c.l.s4 1983009808
      %v2929 = vunpack.c.0.s8 %v2928
      %v2930 = vlaneseq
      %v2931 = vshrl.u32 %v2930, 7
      %v2932 = vsub.s32 %v2929, %v2931
      %v2933 = vrot.slane %v2919, %v2932
      %v2934 = vcombine.low %v2926, %v2933
      %v2935 = vcombine.low %v855, %v859
      %v2936 = vcombine.low %v862, %v865
      %v2938 = vunpack.c.l.s4 1983009808
      %v2939 = vunpack.c.0.s8 %v2938
      %v2940 = vlaneseq
      %v2941 = vshrl.u32 %v2940, 7
      %v2942 = vsub.s32 %v2939, %v2941
      %v2943 = vrot.slane %v2935, %v2942
      %v2945 = vunpack.c.l.s4 1983009808
      %v2946 = vunpack.c.0.s8 %v2945
      %v2947 = vlaneseq
      %v2948 = vshrl.u32 %v2947, 7
      %v2949 = vsub.s32 %v2946, %v2948
      %v2950 = vrot.slane %v2936, %v2949
      %v2951 = vcombine.low %v2943, %v2950
      %v2952 = vcombine.low %v868, %v871
      %v2953 = vcombine.low %v874, %v877
      %v2955 = vunpack.c.l.s4 1983009808
      %v2956 = vunpack.c.0.s8 %v2955
      %v2957 = vlaneseq
      %v2958 = vshrl.u32 %v2957, 7
      %v2959 = vsub.s32 %v2956, %v2958
      %v2960 = vrot.slane %v2952, %v2959
      %v2962 = vunpack.c.l.s4 1983009808
      %v2963 = vunpack.c.0.s8 %v2962
      %v2964 = vlaneseq
      %v2965 = vshrl.u32 %v2964, 7
      %v2966 = vsub.s32 %v2963, %v2965
      %v2967 = vrot.slane %v2953, %v2966
      %v2968 = vcombine.low %v2960, %v2967
      %v2969 = vcombine.low %v881, %v884
      %v2970 = vcombine.low %v887, %v890
      %v2972 = vunpack.c.l.s4 1983009808
      %v2973 = vunpack.c.0.s8 %v2972
      %v2974 = vlaneseq
      %v2975 = vshrl.u32 %v2974, 7
      %v2976 = vsub.s32 %v2973, %v2975
      %v2977 = vrot.slane %v2969, %v2976
      %v2979 = vunpack.c.l.s4 1983009808
      %v2980 = vunpack.c.0.s8 %v2979
      %v2981 = vlaneseq
      %v2982 = vshrl.u32 %v2981, 7
      %v2983 = vsub.s32 %v2980, %v2982
      %v2984 = vrot.slane %v2970, %v2983
      %v2985 = vcombine.low %v2977, %v2984
      %v2986 = vcombine.low %v893, %v896
      %v2987 = vcombine.low %v899, %v903
      %v2989 = vunpack.c.l.s4 1983009808
      %v2990 = vunpack.c.0.s8 %v2989
      %v2991 = vlaneseq
      %v2992 = vshrl.u32 %v2991, 7
      %v2993 = vsub.s32 %v2990, %v2992
      %v2994 = vrot.slane %v2986, %v2993
      %v2996 = vunpack.c.l.s4 1983009808
      %v2997 = vunpack.c.0.s8 %v2996
      %v2998 = vlaneseq
      %v2999 = vshrl.u32 %v2998, 7
      %v3000 = vsub.s32 %v2997, %v2999
      %v3001 = vrot.slane %v2987, %v3000
      %v3002 = vcombine.low %v2994, %v3001
      %v3003 = vcombine.low %v906, %v909
      %v3004 = vcombine.low %v912, %v915
      %v3006 = vunpack.c.l.s4 1983009808
      %v3007 = vunpack.c.0.s8 %v3006
      %v3008 = vlaneseq
      %v3009 = vshrl.u32 %v3008, 7
      %v3010 = vsub.s32 %v3007, %v3009
      %v3011 = vrot.slane %v3003, %v3010
      %v3013 = vunpack.c.l.s4 1983009808
      %v3014 = vunpack.c.0.s8 %v3013
      %v3015 = vlaneseq
      %v3016 = vshrl.u32 %v3015, 7
      %v3017 = vsub.s32 %v3014, %v3016
      %v3018 = vrot.slane %v3004, %v3017
      %v3019 = vcombine.low %v3011, %v3018
      %v3020 = vcombine.low %v918, %v921
      %v3021 = vcombine.low %v925, %v928
      %v3023 = vunpack.c.l.s4 1983009808
      %v3024 = vunpack.c.0.s8 %v3023
      %v3025 = vlaneseq
      %v3026 = vshrl.u32 %v3025, 7
      %v3027 = vsub.s32 %v3024, %v3026
      %v3028 = vrot.slane %v3020, %v3027
      %v3030 = vunpack.c.l.s4 1983009808
      %v3031 = vunpack.c.0.s8 %v3030
      %v3032 = vlaneseq
      %v3033 = vshrl.u32 %v3032, 7
      %v3034 = vsub.s32 %v3031, %v3033
      %v3035 = vrot.slane %v3021, %v3034
      %v3036 = vcombine.low %v3028, %v3035
      %v3037 = vcombine.low %v931, %v934
      %v3038 = vcombine.low %v937, %v940
      %v3040 = vunpack.c.l.s4 1983009808
      %v3041 = vunpack.c.0.s8 %v3040
      %v3042 = vlaneseq
      %v3043 = vshrl.u32 %v3042, 7
      %v3044 = vsub.s32 %v3041, %v3043
      %v3045 = vrot.slane %v3037, %v3044
      %v3047 = vunpack.c.l.s4 1983009808
      %v3048 = vunpack.c.0.s8 %v3047
      %v3049 = vlaneseq
      %v3050 = vshrl.u32 %v3049, 7
      %v3051 = vsub.s32 %v3048, %v3050
      %v3052 = vrot.slane %v3038, %v3051
      %v3053 = vcombine.low %v3045, %v3052
      %v3054 = vcombine.low %v943, %v947
      %v3055 = vcombine.low %v950, %v953
      %v3057 = vunpack.c.l.s4 1983009808
      %v3058 = vunpack.c.0.s8 %v3057
      %v3059 = vlaneseq
      %v3060 = vshrl.u32 %v3059, 7
      %v3061 = vsub.s32 %v3058, %v3060
      %v3062 = vrot.slane %v3054, %v3061
      %v3064 = vunpack.c.l.s4 1983009808
      %v3065 = vunpack.c.0.s8 %v3064
      %v3066 = vlaneseq
      %v3067 = vshrl.u32 %v3066, 7
      %v3068 = vsub.s32 %v3065, %v3067
      %v3069 = vrot.slane %v3055, %v3068
      %v3070 = vcombine.low %v3062, %v3069
      %v3071 = vcombine.low %v956, %v959
      %v3072 = vcombine.low %v962, %v965
      %v3074 = vunpack.c.l.s4 1983009808
      %v3075 = vunpack.c.0.s8 %v3074
      %v3076 = vlaneseq
      %v3077 = vshrl.u32 %v3076, 7
      %v3078 = vsub.s32 %v3075, %v3077
      %v3079 = vrot.slane %v3071, %v3078
      %v3081 = vunpack.c.l.s4 1983009808
      %v3082 = vunpack.c.0.s8 %v3081
      %v3083 = vlaneseq
      %v3084 = vshrl.u32 %v3083, 7
      %v3085 = vsub.s32 %v3082, %v3084
      %v3086 = vrot.slane %v3072, %v3085
      %v3087 = vcombine.low %v3079, %v3086
      %v3088 = vcombine.low %v969, %v972
      %v3089 = vcombine.low %v975, %v978
      %v3091 = vunpack.c.l.s4 1983009808
      %v3092 = vunpack.c.0.s8 %v3091
      %v3093 = vlaneseq
      %v3094 = vshrl.u32 %v3093, 7
      %v3095 = vsub.s32 %v3092, %v3094
      %v3096 = vrot.slane %v3088, %v3095
      %v3098 = vunpack.c.l.s4 1983009808
      %v3099 = vunpack.c.0.s8 %v3098
      %v3100 = vlaneseq
      %v3101 = vshrl.u32 %v3100, 7
      %v3102 = vsub.s32 %v3099, %v3101
      %v3103 = vrot.slane %v3089, %v3102
      %v3104 = vcombine.low %v3096, %v3103
      %v3105 = vcombine.low %v981, %v984
      %v3106 = vcombine.low %v987, %v991
      %v3108 = vunpack.c.l.s4 1983009808
      %v3109 = vunpack.c.0.s8 %v3108
      %v3110 = vlaneseq
      %v3111 = vshrl.u32 %v3110, 7
      %v3112 = vsub.s32 %v3109, %v3111
      %v3113 = vrot.slane %v3105, %v3112
      %v3115 = vunpack.c.l.s4 1983009808
      %v3116 = vunpack.c.0.s8 %v3115
      %v3117 = vlaneseq
      %v3118 = vshrl.u32 %v3117, 7
      %v3119 = vsub.s32 %v3116, %v3118
      %v3120 = vrot.slane %v3106, %v3119
      %v3121 = vcombine.low %v3113, %v3120
      %v3122 = vcombine.low %v994, %v997
      %v3123 = vcombine.low %v1000, %v1003
      %v3125 = vunpack.c.l.s4 1983009808
      %v3126 = vunpack.c.0.s8 %v3125
      %v3127 = vlaneseq
      %v3128 = vshrl.u32 %v3127, 7
      %v3129 = vsub.s32 %v3126, %v3128
      %v3130 = vrot.slane %v3122, %v3129
      %v3132 = vunpack.c.l.s4 1983009808
      %v3133 = vunpack.c.0.s8 %v3132
      %v3134 = vlaneseq
      %v3135 = vshrl.u32 %v3134, 7
      %v3136 = vsub.s32 %v3133, %v3135
      %v3137 = vrot.slane %v3123, %v3136
      %v3138 = vcombine.low %v3130, %v3137
      %v3139 = vcombine.low %v1006, %v1009
      %v3140 = vcombine.low %v1013, %v1016
      %v3142 = vunpack.c.l.s4 1983009808
      %v3143 = vunpack.c.0.s8 %v3142
      %v3144 = vlaneseq
      %v3145 = vshrl.u32 %v3144, 7
      %v3146 = vsub.s32 %v3143, %v3145
      %v3147 = vrot.slane %v3139, %v3146
      %v3149 = vunpack.c.l.s4 1983009808
      %v3150 = vunpack.c.0.s8 %v3149
      %v3151 = vlaneseq
      %v3152 = vshrl.u32 %v3151, 7
      %v3153 = vsub.s32 %v3150, %v3152
      %v3154 = vrot.slane %v3140, %v3153
      %v3155 = vcombine.low %v3147, %v3154
      %v3156 = vcombine.low %v1019, %v1022
      %v3157 = vcombine.low %v1025, %v1028
      %v3159 = vunpack.c.l.s4 1983009808
      %v3160 = vunpack.c.0.s8 %v3159
      %v3161 = vlaneseq
      %v3162 = vshrl.u32 %v3161, 7
      %v3163 = vsub.s32 %v3160, %v3162
      %v3164 = vrot.slane %v3156, %v3163
      %v3166 = vunpack.c.l.s4 1983009808
      %v3167 = vunpack.c.0.s8 %v3166
      %v3168 = vlaneseq
      %v3169 = vshrl.u32 %v3168, 7
      %v3170 = vsub.s32 %v3167, %v3169
      %v3171 = vrot.slane %v3157, %v3170
      %v3172 = vcombine.low %v3164, %v3171
      %v3173 = vcombine.low %v1031, %v1035
      %v3174 = vcombine.low %v1038, %v1041
      %v3176 = vunpack.c.l.s4 1983009808
      %v3177 = vunpack.c.0.s8 %v3176
      %v3178 = vlaneseq
      %v3179 = vshrl.u32 %v3178, 7
      %v3180 = vsub.s32 %v3177, %v3179
      %v3181 = vrot.slane %v3173, %v3180
      %v3183 = vunpack.c.l.s4 1983009808
      %v3184 = vunpack.c.0.s8 %v3183
      %v3185 = vlaneseq
      %v3186 = vshrl.u32 %v3185, 7
      %v3187 = vsub.s32 %v3184, %v3186
      %v3188 = vrot.slane %v3174, %v3187
      %v3189 = vcombine.low %v3181, %v3188
      %v3190 = vcombine.low %v1044, %v1047
      %v3191 = vcombine.low %v1050, %v1053
      %v3193 = vunpack.c.l.s4 1983009808
      %v3194 = vunpack.c.0.s8 %v3193
      %v3195 = vlaneseq
      %v3196 = vshrl.u32 %v3195, 7
      %v3197 = vsub.s32 %v3194, %v3196
      %v3198 = vrot.slane %v3190, %v3197
      %v3200 = vunpack.c.l.s4 1983009808
      %v3201 = vunpack.c.0.s8 %v3200
      %v3202 = vlaneseq
      %v3203 = vshrl.u32 %v3202, 7
      %v3204 = vsub.s32 %v3201, %v3203
      %v3205 = vrot.slane %v3191, %v3204
      %v3206 = vcombine.low %v3198, %v3205
      %v3207 = vcombine.low %v1057, %v1060
      %v3208 = vcombine.low %v1063, %v1066
      %v3210 = vunpack.c.l.s4 1983009808
      %v3211 = vunpack.c.0.s8 %v3210
      %v3212 = vlaneseq
      %v3213 = vshrl.u32 %v3212, 7
      %v3214 = vsub.s32 %v3211, %v3213
      %v3215 = vrot.slane %v3207, %v3214
      %v3217 = vunpack.c.l.s4 1983009808
      %v3218 = vunpack.c.0.s8 %v3217
      %v3219 = vlaneseq
      %v3220 = vshrl.u32 %v3219, 7
      %v3221 = vsub.s32 %v3218, %v3220
      %v3222 = vrot.slane %v3208, %v3221
      %v3223 = vcombine.low %v3215, %v3222
      %v3224 = vcombine.low %v1069, %v1072
      %v3225 = vcombine.low %v1075, %v1115
      %v3227 = vunpack.c.l.s4 1983009808
      %v3228 = vunpack.c.0.s8 %v3227
      %v3229 = vlaneseq
      %v3230 = vshrl.u32 %v3229, 7
      %v3231 = vsub.s32 %v3228, %v3230
      %v3232 = vrot.slane %v3224, %v3231
      %v3234 = vunpack.c.l.s4 1983009808
      %v3235 = vunpack.c.0.s8 %v3234
      %v3236 = vlaneseq
      %v3237 = vshrl.u32 %v3236, 7
      %v3238 = vsub.s32 %v3235, %v3237
      %v3239 = vrot.slane %v3225, %v3238
      %v3240 = vcombine.low %v3232, %v3239
      %v3241 = vcombine.low %v1118, %v1121
      %v3242 = vcombine.low %v1124, %v1127
      %v3244 = vunpack.c.l.s4 1983009808
      %v3245 = vunpack.c.0.s8 %v3244
      %v3246 = vlaneseq
      %v3247 = vshrl.u32 %v3246, 7
      %v3248 = vsub.s32 %v3245, %v3247
      %v3249 = vrot.slane %v3241, %v3248
      %v3251 = vunpack.c.l.s4 1983009808
      %v3252 = vunpack.c.0.s8 %v3251
      %v3253 = vlaneseq
      %v3254 = vshrl.u32 %v3253, 7
      %v3255 = vsub.s32 %v3252, %v3254
      %v3256 = vrot.slane %v3242, %v3255
      %v3257 = vcombine.low %v3249, %v3256
      %v3258 = vcombine.low %v1130, %v1133
      %v3260 = vunpack.c.l.s4 1983009808
      %v3261 = vunpack.c.0.s8 %v3260
      %v3262 = vlaneseq
      %v3263 = vshrl.u32 %v3262, 7
      %v3264 = vsub.s32 %v3261, %v3263
      %v3265 = vrot.slane %v3258, %v3264
      %3266 = vrot.lane.b32.xlu0 %v2866, 16
      %v3267 = vpop.permute.xlu0 %3266
      %3268 = vrot.lane.b32.xlu0 %v2883, 16
      %v3269 = vpop.permute.xlu0 %3268
      %3270 = vrot.lane.b32.xlu0 %v2900, 16
      %v3271 = vpop.permute.xlu0 %3270
      %3272 = vrot.lane.b32.xlu0 %v2917, 16
      %v3273 = vpop.permute.xlu0 %3272
      %3274 = vrot.lane.b32.xlu0 %v2934, 16
      %v3275 = vpop.permute.xlu0 %3274
      %3276 = vrot.lane.b32.xlu0 %v2951, 16
      %v3277 = vpop.permute.xlu0 %3276
      %3278 = vrot.lane.b32.xlu0 %v2968, 16
      %v3279 = vpop.permute.xlu0 %3278
      %3280 = vrot.lane.b32.xlu0 %v2985, 16
      %v3281 = vpop.permute.xlu0 %3280
      %3282 = vrot.lane.b32.xlu0 %v3002, 16
      %v3283 = vpop.permute.xlu0 %3282
      %3284 = vrot.lane.b32.xlu0 %v3019, 16
      %v3285 = vpop.permute.xlu0 %3284
      %3286 = vrot.lane.b32.xlu0 %v3036, 16
      %v3287 = vpop.permute.xlu0 %3286
      %3288 = vrot.lane.b32.xlu0 %v3053, 16
      %v3289 = vpop.permute.xlu0 %3288
      %3290 = vrot.lane.b32.xlu0 %v3070, 16
      %v3291 = vpop.permute.xlu0 %3290
      %3292 = vrot.lane.b32.xlu0 %v3087, 16
      %v3293 = vpop.permute.xlu0 %3292
      %3294 = vrot.lane.b32.xlu0 %v3104, 16
      %v3295 = vpop.permute.xlu0 %3294
      %3296 = vrot.lane.b32.xlu0 %v3121, 16
      %v3297 = vpop.permute.xlu0 %3296
      %3298 = vrot.lane.b32.xlu0 %v3138, 16
      %v3299 = vpop.permute.xlu0 %3298
      %3300 = vrot.lane.b32.xlu0 %v3155, 16
      %v3301 = vpop.permute.xlu0 %3300
      %3302 = vrot.lane.b32.xlu0 %v3172, 16
      %v3303 = vpop.permute.xlu0 %3302
      %3304 = vrot.lane.b32.xlu0 %v3189, 16
      %v3305 = vpop.permute.xlu0 %3304
      %3306 = vrot.lane.b32.xlu0 %v3206, 16
      %v3307 = vpop.permute.xlu0 %3306
      %3308 = vrot.lane.b32.xlu0 %v3223, 16
      %v3309 = vpop.permute.xlu0 %3308
      %3310 = vrot.lane.b32.xlu0 %v3240, 16
      %v3311 = vpop.permute.xlu0 %3310
      %3312 = vrot.lane.b32.xlu0 %v3257, 16
      %v3313 = vpop.permute.xlu0 %3312
      %3314 = vrot.lane.b32.xlu0 %v3265, 16
      %v3315 = vpop.permute.xlu0 %3314
      %v3341 = vcombine.low %v748, %v366
      %v3343 = vunpack.c.l.s4 1983009808
      %v3344 = vunpack.c.0.s8 %v3343
      %v3345 = vlaneseq
      %v3346 = vshrl.u32 %v3345, 7
      %v3347 = vsub.s32 %v3344, %v3346
      %v3348 = vrot.slane %v3341, %v3347
      %v3349 = vcombine.low %v1251, %v3348
      %v3350 = vcombine.low %v382, %v749
      %v3352 = vunpack.c.l.s4 1983009808
      %v3353 = vunpack.c.0.s8 %v3352
      %v3354 = vlaneseq
      %v3355 = vshrl.u32 %v3354, 7
      %v3356 = vsub.s32 %v3353, %v3355
      %v3357 = vrot.slane %v3350, %v3356
      %v3358 = vcombine.low %v3357, %v1292
      %v3359 = vcombine.low %v750, %v432
      %v3361 = vunpack.c.l.s4 1983009808
      %v3362 = vunpack.c.0.s8 %v3361
      %v3363 = vlaneseq
      %v3364 = vshrl.u32 %v3363, 7
      %v3365 = vsub.s32 %v3362, %v3364
      %v3366 = vrot.slane %v3359, %v3365
      %v3367 = vcombine.low %v3366, %v1326
      %v3368 = vcombine.low %v448, %v751
      %v3370 = vunpack.c.l.s4 1983009808
      %v3371 = vunpack.c.0.s8 %v3370
      %v3372 = vlaneseq
      %v3373 = vshrl.u32 %v3372, 7
      %v3374 = vsub.s32 %v3371, %v3373
      %v3375 = vrot.slane %v3368, %v3374
      %v3376 = vcombine.low %v1336, %v3375
      %v3377 = vcombine.low %v752, %v498
      %v3379 = vunpack.c.l.s4 1983009808
      %v3380 = vunpack.c.0.s8 %v3379
      %v3381 = vlaneseq
      %v3382 = vshrl.u32 %v3381, 7
      %v3383 = vsub.s32 %v3380, %v3382
      %v3384 = vrot.slane %v3377, %v3383
      %v3385 = vcombine.low %v1370, %v3384
      %v3386 = vcombine.low %v514, %v753
      %v3388 = vunpack.c.l.s4 1983009808
      %v3389 = vunpack.c.0.s8 %v3388
      %v3390 = vlaneseq
      %v3391 = vshrl.u32 %v3390, 7
      %v3392 = vsub.s32 %v3389, %v3391
      %v3393 = vrot.slane %v3386, %v3392
      %v3394 = vcombine.low %v3393, %v1411
      %v3395 = vcombine.low %v754, %v564
      %v3397 = vunpack.c.l.s4 1983009808
      %v3398 = vunpack.c.0.s8 %v3397
      %v3399 = vlaneseq
      %v3400 = vshrl.u32 %v3399, 7
      %v3401 = vsub.s32 %v3398, %v3400
      %v3402 = vrot.slane %v3395, %v3401
      %v3403 = vcombine.low %v3402, %v1445
      %v3404 = vcombine.low %v580, %v755
      %v3406 = vunpack.c.l.s4 1983009808
      %v3407 = vunpack.c.0.s8 %v3406
      %v3408 = vlaneseq
      %v3409 = vshrl.u32 %v3408, 7
      %v3410 = vsub.s32 %v3407, %v3409
      %v3411 = vrot.slane %v3404, %v3410
      %v3412 = vcombine.low %v1455, %v3411
      %v3413 = vcombine.low %v756, %v630
      %v3415 = vunpack.c.l.s4 1983009808
      %v3416 = vunpack.c.0.s8 %v3415
      %v3417 = vlaneseq
      %v3418 = vshrl.u32 %v3417, 7
      %v3419 = vsub.s32 %v3416, %v3418
      %v3420 = vrot.slane %v3413, %v3419
      %v3421 = vcombine.low %v1489, %v3420
      %v3422 = vcombine.low %v646, %v757
      %v3424 = vunpack.c.l.s4 1983009808
      %v3425 = vunpack.c.0.s8 %v3424
      %v3426 = vlaneseq
      %v3427 = vshrl.u32 %v3426, 7
      %v3428 = vsub.s32 %v3425, %v3427
      %v3429 = vrot.slane %v3422, %v3428
      %v3430 = vcombine.low %v3429, %v1530
      %v3431 = vcombine.low %v758, %v696
      %v3433 = vunpack.c.l.s4 1983009808
      %v3434 = vunpack.c.0.s8 %v3433
      %v3435 = vlaneseq
      %v3436 = vshrl.u32 %v3435, 7
      %v3437 = vsub.s32 %v3434, %v3436
      %v3438 = vrot.slane %v3431, %v3437
      %v3439 = vcombine.low %v3438, %v1564
      %v3440 = vcombine.low %v712, %v759
      %v3442 = vunpack.c.l.s4 1983009808
      %v3443 = vunpack.c.0.s8 %v3442
      %v3444 = vlaneseq
      %v3445 = vshrl.u32 %v3444, 7
      %v3446 = vsub.s32 %v3443, %v3445
      %v3447 = vrot.slane %v3440, %v3446
      %v3448 = vcombine.low %v1574, %v3447
      %v3449 = vcombine.low %v760, %v1093
      %v3451 = vunpack.c.l.s4 1983009808
      %v3452 = vunpack.c.0.s8 %v3451
      %v3453 = vlaneseq
      %v3454 = vshrl.u32 %v3453, 7
      %v3455 = vsub.s32 %v3452, %v3454
      %v3456 = vrot.slane %v3449, %v3455
      %v3457 = vcombine.low %v1607, %v3456
      %v3458 = vcombine.low %v1092, %v1094
      %v3459 = vcombine.low %v1102, %v1110
      %v3461 = vunpack.c.l.s4 1983009808
      %v3462 = vunpack.c.0.s8 %v3461
      %v3463 = vlaneseq
      %v3464 = vshrl.u32 %v3463, 7
      %v3465 = vsub.s32 %v3462, %v3464
      %v3466 = vrot.slane %v3458, %v3465
      %v3468 = vunpack.c.l.s4 1983009808
      %v3469 = vunpack.c.0.s8 %v3468
      %v3470 = vlaneseq
      %v3471 = vshrl.u32 %v3470, 7
      %v3472 = vsub.s32 %v3469, %v3471
      %v3473 = vrot.slane %v3459, %v3472
      %v3474 = vcombine.low %v3466, %v3473
      %v3475 = vcombine.low %v1109, %v1111
      %v3477 = vunpack.c.l.s4 1983009808
      %v3478 = vunpack.c.0.s8 %v3477
      %v3479 = vlaneseq
      %v3480 = vshrl.u32 %v3479, 7
      %v3481 = vsub.s32 %v3478, %v3480
      %v3482 = vrot.slane %v3475, %v3481
      %3483 = vrot.lane.b32.xlu0 %v1242, 20
      %v3484 = vpop.permute.xlu0 %3483
      %3485 = vrot.lane.b32.xlu0 %v3349, 20
      %v3486 = vpop.permute.xlu0 %3485
      %3487 = vrot.lane.b32.xlu0 %v1276, 20
      %v3488 = vpop.permute.xlu0 %3487
      %3489 = vrot.lane.b32.xlu0 %v3358, 20
      %v3490 = vpop.permute.xlu0 %3489
      %3491 = vrot.lane.b32.xlu0 %v1310, 20
      %v3492 = vpop.permute.xlu0 %3491
      %3493 = vrot.lane.b32.xlu0 %v3367, 20
      %v3494 = vpop.permute.xlu0 %3493
      %3495 = vrot.lane.b32.xlu0 %v3376, 20
      %v3496 = vpop.permute.xlu0 %3495
      %3497 = vrot.lane.b32.xlu0 %v1361, 20
      %v3498 = vpop.permute.xlu0 %3497
      %3499 = vrot.lane.b32.xlu0 %v3385, 20
      %v3500 = vpop.permute.xlu0 %3499
      %3501 = vrot.lane.b32.xlu0 %v1395, 20
      %v3502 = vpop.permute.xlu0 %3501
      %3503 = vrot.lane.b32.xlu0 %v3394, 20
      %v3504 = vpop.permute.xlu0 %3503
      %3505 = vrot.lane.b32.xlu0 %v1429, 20
      %v3506 = vpop.permute.xlu0 %3505
      %3507 = vrot.lane.b32.xlu0 %v3403, 20
      %v3508 = vpop.permute.xlu0 %3507
      %3509 = vrot.lane.b32.xlu0 %v3412, 20
      %v3510 = vpop.permute.xlu0 %3509
      %3511 = vrot.lane.b32.xlu0 %v1480, 20
      %v3512 = vpop.permute.xlu0 %3511
      %3513 = vrot.lane.b32.xlu0 %v3421, 20
      %v3514 = vpop.permute.xlu0 %3513
      %3515 = vrot.lane.b32.xlu0 %v1514, 20
      %v3516 = vpop.permute.xlu0 %3515
      %3517 = vrot.lane.b32.xlu0 %v3430, 20
      %v3518 = vpop.permute.xlu0 %3517
      %3519 = vrot.lane.b32.xlu0 %v1548, 20
      %v3520 = vpop.permute.xlu0 %3519
      %3521 = vrot.lane.b32.xlu0 %v3439, 20
      %v3522 = vpop.permute.xlu0 %3521
      %3523 = vrot.lane.b32.xlu0 %v3448, 20
      %v3524 = vpop.permute.xlu0 %3523
      %3525 = vrot.lane.b32.xlu0 %v1599, 20
      %v3526 = vpop.permute.xlu0 %3525
      %3527 = vrot.lane.b32.xlu0 %v3457, 20
      %v3528 = vpop.permute.xlu0 %3527
      %3529 = vrot.lane.b32.xlu0 %v3474, 20
      %v3530 = vpop.permute.xlu0 %3529
      %3531 = vrot.lane.b32.xlu0 %v3482, 20
      %v3532 = vpop.permute.xlu0 %3531
      %v3558 = vcombine.low %v1258, %v1268
      %v3559 = vcombine.low %v1275, %v1285
      %v3560 = vcombine.low %v1292, %v1302
      %v3561 = vcombine.low %v1309, %v1319
      %v3562 = vcombine.low %v1326, %v1336
      %v3563 = vcombine.low %v1343, %v1353
      %v3564 = vcombine.low %v1360, %v1370
      %v3565 = vcombine.low %v1377, %v1387
      %v3566 = vcombine.low %v1394, %v1404
      %v3567 = vcombine.low %v1411, %v1421
      %v3568 = vcombine.low %v1428, %v1438
      %v3569 = vcombine.low %v1445, %v1455
      %v3570 = vcombine.low %v1462, %v1472
      %v3571 = vcombine.low %v1479, %v1489
      %v3572 = vcombine.low %v1496, %v1506
      %v3573 = vcombine.low %v1513, %v1523
      %v3574 = vcombine.low %v1530, %v1540
      %v3575 = vcombine.low %v1547, %v1557
      %v3576 = vcombine.low %v1564, %v1574
      %v3577 = vcombine.low %v1581, %v1591
      %v3578 = vcombine.low %v1598, %v1607
      %v3579 = vcombine.low %v1085, %v1093
      %v3581 = vunpack.c.l.s4 1983009808
      %v3582 = vunpack.c.0.s8 %v3581
      %v3583 = vlaneseq
      %v3584 = vshrl.u32 %v3583, 7
      %v3585 = vsub.s32 %v3582, %v3584
      %v3586 = vrot.slane %v3579, %v3585
      %v3587 = vcombine.low %v3586, %v3466
      %v3588 = vcombine.low %v1109, %v1143
      %v3590 = vunpack.c.l.s4 1983009808
      %v3591 = vunpack.c.0.s8 %v3590
      %v3592 = vlaneseq
      %v3593 = vshrl.u32 %v3592, 7
      %v3594 = vsub.s32 %v3591, %v3593
      %v3595 = vrot.slane %v3588, %v3594
      %v3596 = vcombine.low %v3473, %v3595
      %v3597 = vcombine.low %v1151, %v1150
      %v3598 = vcombine.low %v1152, %v1160
      %v3600 = vunpack.c.l.s4 1983009808
      %v3601 = vunpack.c.0.s8 %v3600
      %v3602 = vlaneseq
      %v3603 = vshrl.u32 %v3602, 7
      %v3604 = vsub.s32 %v3601, %v3603
      %v3605 = vrot.slane %v3597, %v3604
      %v3607 = vunpack.c.l.s4 1983009808
      %v3608 = vunpack.c.0.s8 %v3607
      %v3609 = vlaneseq
      %v3610 = vshrl.u32 %v3609, 7
      %v3611 = vsub.s32 %v3608, %v3610
      %v3612 = vrot.slane %v3598, %v3611
      %v3613 = vcombine.low %v3605, %v3612
      %v3614 = vcombine.low %v1168, %v1167
      %v3616 = vunpack.c.l.s4 1983009808
      %v3617 = vunpack.c.0.s8 %v3616
      %v3618 = vlaneseq
      %v3619 = vshrl.u32 %v3618, 7
      %v3620 = vsub.s32 %v3617, %v3619
      %v3621 = vrot.slane %v3614, %v3620
      %3622 = vrot.lane.b32.xlu0 %v3558, 24
      %v3623 = vpop.permute.xlu0 %3622
      %3624 = vrot.lane.b32.xlu0 %v3559, 24
      %v3625 = vpop.permute.xlu0 %3624
      %3626 = vrot.lane.b32.xlu0 %v3560, 24
      %v3627 = vpop.permute.xlu0 %3626
      %3628 = vrot.lane.b32.xlu0 %v3561, 24
      %v3629 = vpop.permute.xlu0 %3628
      %3630 = vrot.lane.b32.xlu0 %v3562, 24
      %v3631 = vpop.permute.xlu0 %3630
      %3632 = vrot.lane.b32.xlu0 %v3563, 24
      %v3633 = vpop.permute.xlu0 %3632
      %3634 = vrot.lane.b32.xlu0 %v3564, 24
      %v3635 = vpop.permute.xlu0 %3634
      %3636 = vrot.lane.b32.xlu0 %v3565, 24
      %v3637 = vpop.permute.xlu0 %3636
      %3638 = vrot.lane.b32.xlu0 %v3566, 24
      %v3639 = vpop.permute.xlu0 %3638
      %3640 = vrot.lane.b32.xlu0 %v3567, 24
      %v3641 = vpop.permute.xlu0 %3640
      %3642 = vrot.lane.b32.xlu0 %v3568, 24
      %v3643 = vpop.permute.xlu0 %3642
      %3644 = vrot.lane.b32.xlu0 %v3569, 24
      %v3645 = vpop.permute.xlu0 %3644
      %3646 = vrot.lane.b32.xlu0 %v3570, 24
      %v3647 = vpop.permute.xlu0 %3646
      %3648 = vrot.lane.b32.xlu0 %v3571, 24
      %v3649 = vpop.permute.xlu0 %3648
      %3650 = vrot.lane.b32.xlu0 %v3572, 24
      %v3651 = vpop.permute.xlu0 %3650
      %3652 = vrot.lane.b32.xlu0 %v3573, 24
      %v3653 = vpop.permute.xlu0 %3652
      %3654 = vrot.lane.b32.xlu0 %v3574, 24
      %v3655 = vpop.permute.xlu0 %3654
      %3656 = vrot.lane.b32.xlu0 %v3575, 24
      %v3657 = vpop.permute.xlu0 %3656
      %3658 = vrot.lane.b32.xlu0 %v3576, 24
      %v3659 = vpop.permute.xlu0 %3658
      %3660 = vrot.lane.b32.xlu0 %v3577, 24
      %v3661 = vpop.permute.xlu0 %3660
      %3662 = vrot.lane.b32.xlu0 %v3578, 24
      %v3663 = vpop.permute.xlu0 %3662
      %3664 = vrot.lane.b32.xlu0 %v3587, 24
      %v3665 = vpop.permute.xlu0 %3664
      %3666 = vrot.lane.b32.xlu0 %v3596, 24
      %v3667 = vpop.permute.xlu0 %3666
      %3668 = vrot.lane.b32.xlu0 %v3613, 24
      %v3669 = vpop.permute.xlu0 %3668
      %3670 = vrot.lane.b32.xlu0 %v3621, 24
      %v3671 = vpop.permute.xlu0 %3670
      %v3697 = vcombine.low %v1699, %v1709
      %v3698 = vcombine.low %v1716, %v1726
      %v3699 = vcombine.low %v1733, %v1743
      %v3700 = vcombine.low %v1750, %v1760
      %v3701 = vcombine.low %v1767, %v1777
      %v3702 = vcombine.low %v1784, %v1794
      %v3703 = vcombine.low %v1801, %v1811
      %v3704 = vcombine.low %v1818, %v1828
      %v3705 = vcombine.low %v1835, %v1845
      %v3706 = vcombine.low %v1852, %v1862
      %v3707 = vcombine.low %v1869, %v1879
      %v3708 = vcombine.low %v1886, %v1896
      %v3709 = vcombine.low %v1903, %v1913
      %v3710 = vcombine.low %v1920, %v1930
      %v3711 = vcombine.low %v1937, %v1947
      %v3712 = vcombine.low %v1954, %v1964
      %v3713 = vcombine.low %v1971, %v1981
      %v3714 = vcombine.low %v1988, %v1998
      %v3715 = vcombine.low %v2005, %v2015
      %v3716 = vcombine.low %v2022, %v2032
      %v3717 = vcombine.low %v2039, %v2048
      %v3718 = vcombine.low %v1115, %v1118
      %v3719 = vcombine.low %v1121, %v1124
      %v3721 = vunpack.c.l.s4 1983009808
      %v3722 = vunpack.c.0.s8 %v3721
      %v3723 = vlaneseq
      %v3724 = vshrl.u32 %v3723, 7
      %v3725 = vsub.s32 %v3722, %v3724
      %v3726 = vrot.slane %v3718, %v3725
      %v3728 = vunpack.c.l.s4 1983009808
      %v3729 = vunpack.c.0.s8 %v3728
      %v3730 = vlaneseq
      %v3731 = vshrl.u32 %v3730, 7
      %v3732 = vsub.s32 %v3729, %v3731
      %v3733 = vrot.slane %v3719, %v3732
      %v3734 = vcombine.low %v3726, %v3733
      %v3735 = vcombine.low %v1127, %v1130
      %v3736 = vcombine.low %v1133, %v1173
      %v3738 = vunpack.c.l.s4 1983009808
      %v3739 = vunpack.c.0.s8 %v3738
      %v3740 = vlaneseq
      %v3741 = vshrl.u32 %v3740, 7
      %v3742 = vsub.s32 %v3739, %v3741
      %v3743 = vrot.slane %v3735, %v3742
      %v3745 = vunpack.c.l.s4 1983009808
      %v3746 = vunpack.c.0.s8 %v3745
      %v3747 = vlaneseq
      %v3748 = vshrl.u32 %v3747, 7
      %v3749 = vsub.s32 %v3746, %v3748
      %v3750 = vrot.slane %v3736, %v3749
      %v3751 = vcombine.low %v3743, %v3750
      %v3752 = vcombine.low %v1176, %v1179
      %v3753 = vcombine.low %v1182, %v1185
      %v3755 = vunpack.c.l.s4 1983009808
      %v3756 = vunpack.c.0.s8 %v3755
      %v3757 = vlaneseq
      %v3758 = vshrl.u32 %v3757, 7
      %v3759 = vsub.s32 %v3756, %v3758
      %v3760 = vrot.slane %v3752, %v3759
      %v3762 = vunpack.c.l.s4 1983009808
      %v3763 = vunpack.c.0.s8 %v3762
      %v3764 = vlaneseq
      %v3765 = vshrl.u32 %v3764, 7
      %v3766 = vsub.s32 %v3763, %v3765
      %v3767 = vrot.slane %v3753, %v3766
      %v3768 = vcombine.low %v3760, %v3767
      %v3769 = vcombine.low %v1188, %v1191
      %v3771 = vunpack.c.l.s4 1983009808
      %v3772 = vunpack.c.0.s8 %v3771
      %v3773 = vlaneseq
      %v3774 = vshrl.u32 %v3773, 7
      %v3775 = vsub.s32 %v3772, %v3774
      %v3776 = vrot.slane %v3769, %v3775
      %3777 = vrot.lane.b32.xlu0 %v3697, 28
      %v3778 = vpop.permute.xlu0 %3777
      %3779 = vrot.lane.b32.xlu0 %v3698, 28
      %v3780 = vpop.permute.xlu0 %3779
      %3781 = vrot.lane.b32.xlu0 %v3699, 28
      %v3782 = vpop.permute.xlu0 %3781
      %3783 = vrot.lane.b32.xlu0 %v3700, 28
      %v3784 = vpop.permute.xlu0 %3783
      %3785 = vrot.lane.b32.xlu0 %v3701, 28
      %v3786 = vpop.permute.xlu0 %3785
      %3787 = vrot.lane.b32.xlu0 %v3702, 28
      %v3788 = vpop.permute.xlu0 %3787
      %3789 = vrot.lane.b32.xlu0 %v3703, 28
      %v3790 = vpop.permute.xlu0 %3789
      %3791 = vrot.lane.b32.xlu0 %v3704, 28
      %v3792 = vpop.permute.xlu0 %3791
      %3793 = vrot.lane.b32.xlu0 %v3705, 28
      %v3794 = vpop.permute.xlu0 %3793
      %3795 = vrot.lane.b32.xlu0 %v3706, 28
      %v3796 = vpop.permute.xlu0 %3795
      %3797 = vrot.lane.b32.xlu0 %v3707, 28
      %v3798 = vpop.permute.xlu0 %3797
      %3799 = vrot.lane.b32.xlu0 %v3708, 28
      %v3800 = vpop.permute.xlu0 %3799
      %3801 = vrot.lane.b32.xlu0 %v3709, 28
      %v3802 = vpop.permute.xlu0 %3801
      %3803 = vrot.lane.b32.xlu0 %v3710, 28
      %v3804 = vpop.permute.xlu0 %3803
      %3805 = vrot.lane.b32.xlu0 %v3711, 28
      %v3806 = vpop.permute.xlu0 %3805
      %3807 = vrot.lane.b32.xlu0 %v3712, 28
      %v3808 = vpop.permute.xlu0 %3807
      %3809 = vrot.lane.b32.xlu0 %v3713, 28
      %v3810 = vpop.permute.xlu0 %3809
      %3811 = vrot.lane.b32.xlu0 %v3714, 28
      %v3812 = vpop.permute.xlu0 %3811
      %3813 = vrot.lane.b32.xlu0 %v3715, 28
      %v3814 = vpop.permute.xlu0 %3813
      %3815 = vrot.lane.b32.xlu0 %v3716, 28
      %v3816 = vpop.permute.xlu0 %3815
      %3817 = vrot.lane.b32.xlu0 %v3717, 28
      %v3818 = vpop.permute.xlu0 %3817
      %3819 = vrot.lane.b32.xlu0 %v3734, 28
      %v3820 = vpop.permute.xlu0 %3819
      %3821 = vrot.lane.b32.xlu0 %v3751, 28
      %v3822 = vpop.permute.xlu0 %3821
      %3823 = vrot.lane.b32.xlu0 %v3768, 28
      %v3824 = vpop.permute.xlu0 %3823
      %3825 = vrot.lane.b32.xlu0 %v3776, 28
      %v3826 = vpop.permute.xlu0 %3825
      %v3852 = vcombine.low %v2207, %v2217
      %v3853 = vcombine.low %v2241, %v2251
      %v3854 = vcombine.low %v2275, %v2285
      %v3855 = vcombine.low %v2292, %v2302
      %v3856 = vcombine.low %v2326, %v2336
      %v3857 = vcombine.low %v2360, %v2370
      %v3858 = vcombine.low %v2394, %v2404
      %v3859 = vcombine.low %v2411, %v2421
      %v3860 = vcombine.low %v2445, %v2455
      %v3861 = vcombine.low %v2479, %v2489
      %v3862 = vcombine.low %v2513, %v2523
      %v3863 = vcombine.low %v2530, %v2539
      %v3864 = vcombine.low %v1111, %v1151
      %v3866 = vunpack.c.l.s4 1983009808
      %v3867 = vunpack.c.0.s8 %v3866
      %v3868 = vlaneseq
      %v3869 = vshrl.u32 %v3868, 7
      %v3870 = vsub.s32 %v3867, %v3869
      %v3871 = vrot.slane %v3864, %v3870
      %v3872 = vcombine.low %v2774, %v3871
      %v3873 = vcombine.low %v1150, %v1152
      %v3874 = vcombine.low %v1160, %v1168
      %v3876 = vunpack.c.l.s4 1983009808
      %v3877 = vunpack.c.0.s8 %v3876
      %v3878 = vlaneseq
      %v3879 = vshrl.u32 %v3878, 7
      %v3880 = vsub.s32 %v3877, %v3879
      %v3881 = vrot.slane %v3873, %v3880
      %v3883 = vunpack.c.l.s4 1983009808
      %v3884 = vunpack.c.0.s8 %v3883
      %v3885 = vlaneseq
      %v3886 = vshrl.u32 %v3885, 7
      %v3887 = vsub.s32 %v3884, %v3886
      %v3888 = vrot.slane %v3874, %v3887
      %v3889 = vcombine.low %v3881, %v3888
      %v3890 = vcombine.low %v1167, %v1169
      %v3892 = vunpack.c.l.s4 1983009808
      %v3893 = vunpack.c.0.s8 %v3892
      %v3894 = vlaneseq
      %v3895 = vshrl.u32 %v3894, 7
      %v3896 = vsub.s32 %v3893, %v3895
      %v3897 = vrot.slane %v3890, %v3896
      %3898 = vrot.lane.b32.xlu0 %v2633, 32
      %v3899 = vpop.permute.xlu0 %3898
      %3900 = vrot.lane.b32.xlu0 %v3852, 32
      %v3901 = vpop.permute.xlu0 %3900
      %3902 = vrot.lane.b32.xlu0 %v2643, 32
      %v3903 = vpop.permute.xlu0 %3902
      %3904 = vrot.lane.b32.xlu0 %v3853, 32
      %v3905 = vpop.permute.xlu0 %3904
      %3906 = vrot.lane.b32.xlu0 %v2653, 32
      %v3907 = vpop.permute.xlu0 %3906
      %3908 = vrot.lane.b32.xlu0 %v3854, 32
      %v3909 = vpop.permute.xlu0 %3908
      %3910 = vrot.lane.b32.xlu0 %v3855, 32
      %v3911 = vpop.permute.xlu0 %3910
      %3912 = vrot.lane.b32.xlu0 %v2672, 32
      %v3913 = vpop.permute.xlu0 %3912
      %3914 = vrot.lane.b32.xlu0 %v3856, 32
      %v3915 = vpop.permute.xlu0 %3914
      %3916 = vrot.lane.b32.xlu0 %v2682, 32
      %v3917 = vpop.permute.xlu0 %3916
      %3918 = vrot.lane.b32.xlu0 %v3857, 32
      %v3919 = vpop.permute.xlu0 %3918
      %3920 = vrot.lane.b32.xlu0 %v2692, 32
      %v3921 = vpop.permute.xlu0 %3920
      %3922 = vrot.lane.b32.xlu0 %v3858, 32
      %v3923 = vpop.permute.xlu0 %3922
      %3924 = vrot.lane.b32.xlu0 %v3859, 32
      %v3925 = vpop.permute.xlu0 %3924
      %3926 = vrot.lane.b32.xlu0 %v2711, 32
      %v3927 = vpop.permute.xlu0 %3926
      %3928 = vrot.lane.b32.xlu0 %v3860, 32
      %v3929 = vpop.permute.xlu0 %3928
      %3930 = vrot.lane.b32.xlu0 %v2721, 32
      %v3931 = vpop.permute.xlu0 %3930
      %3932 = vrot.lane.b32.xlu0 %v3861, 32
      %v3933 = vpop.permute.xlu0 %3932
      %3934 = vrot.lane.b32.xlu0 %v2731, 32
      %v3935 = vpop.permute.xlu0 %3934
      %3936 = vrot.lane.b32.xlu0 %v3862, 32
      %v3937 = vpop.permute.xlu0 %3936
      %3938 = vrot.lane.b32.xlu0 %v3863, 32
      %v3939 = vpop.permute.xlu0 %3938
      %3940 = vrot.lane.b32.xlu0 %v2766, 32
      %v3941 = vpop.permute.xlu0 %3940
      %3942 = vrot.lane.b32.xlu0 %v3872, 32
      %v3943 = vpop.permute.xlu0 %3942
      %3944 = vrot.lane.b32.xlu0 %v3889, 32
      %v3945 = vpop.permute.xlu0 %3944
      %3946 = vrot.lane.b32.xlu0 %v3897, 32
      %v3947 = vpop.permute.xlu0 %3946
      %vm3973 = vcmask 31744
      %v3974 = vsel %vm3973, %v1208, %v2050
      %v3975 = vsel %vm3973, %v1225, %v2052
      %v3976 = vsel %vm3973, %v1242, %v2054
      %v3977 = vsel %vm3973, %v1259, %v2056
      %v3978 = vsel %vm3973, %v1276, %v2058
      %v3979 = vsel %vm3973, %v1293, %v2060
      %v3980 = vsel %vm3973, %v1310, %v2062
      %v3981 = vsel %vm3973, %v1327, %v2064
      %v3982 = vsel %vm3973, %v1344, %v2066
      %v3983 = vsel %vm3973, %v1361, %v2068
      %v3984 = vsel %vm3973, %v1378, %v2070
      %v3985 = vsel %vm3973, %v1395, %v2072
      %v3986 = vsel %vm3973, %v1412, %v2074
      %v3987 = vsel %vm3973, %v1429, %v2076
      %v3988 = vsel %vm3973, %v1446, %v2078
      %v3989 = vsel %vm3973, %v1463, %v2080
      %v3990 = vsel %vm3973, %v1480, %v2082
      %v3991 = vsel %vm3973, %v1497, %v2084
      %v3992 = vsel %vm3973, %v1514, %v2086
      %v3993 = vsel %vm3973, %v1531, %v2088
      %v3994 = vsel %vm3973, %v1548, %v2090
      %v3995 = vsel %vm3973, %v1565, %v2092
      %v3996 = vsel %vm3973, %v1582, %v2094
      %v3997 = vsel %vm3973, %v1599, %v2096
      %v3998 = vsel %vm3973, %v1607, %v2098
      %vm3999 = vcmask 64512
      %v4000 = vsel %vm3999, %v3974, %v2541
      %v4001 = vsel %vm3999, %v3975, %v2543
      %v4002 = vsel %vm3999, %v3976, %v2545
      %v4003 = vsel %vm3999, %v3977, %v2547
      %v4004 = vsel %vm3999, %v3978, %v2549
      %v4005 = vsel %vm3999, %v3979, %v2551
      %v4006 = vsel %vm3999, %v3980, %v2553
      %v4007 = vsel %vm3999, %v3981, %v2555
      %v4008 = vsel %vm3999, %v3982, %v2557
      %v4009 = vsel %vm3999, %v3983, %v2559
      %v4010 = vsel %vm3999, %v3984, %v2561
      %v4011 = vsel %vm3999, %v3985, %v2563
      %v4012 = vsel %vm3999, %v3986, %v2565
      %v4013 = vsel %vm3999, %v3987, %v2567
      %v4014 = vsel %vm3999, %v3988, %v2569
      %v4015 = vsel %vm3999, %v3989, %v2571
      %v4016 = vsel %vm3999, %v3990, %v2573
      %v4017 = vsel %vm3999, %v3991, %v2575
      %v4018 = vsel %vm3999, %v3992, %v2577
      %v4019 = vsel %vm3999, %v3993, %v2579
      %v4020 = vsel %vm3999, %v3994, %v2581
      %v4021 = vsel %vm3999, %v3995, %v2583
      %v4022 = vsel %vm3999, %v3996, %v2585
      %v4023 = vsel %vm3999, %v3997, %v2587
      %v4024 = vsel %vm3999, %v3998, %v2589
      %vm4025 = vcmask 97280
      %v4026 = vsel %vm4025, %v4000, %v2776
      %v4027 = vsel %vm4025, %v4001, %v2778
      %v4028 = vsel %vm4025, %v4002, %v2780
      %v4029 = vsel %vm4025, %v4003, %v2782
      %v4030 = vsel %vm4025, %v4004, %v2784
      %v4031 = vsel %vm4025, %v4005, %v2786
      %v4032 = vsel %vm4025, %v4006, %v2788
      %v4033 = vsel %vm4025, %v4007, %v2790
      %v4034 = vsel %vm4025, %v4008, %v2792
      %v4035 = vsel %vm4025, %v4009, %v2794
      %v4036 = vsel %vm4025, %v4010, %v2796
      %v4037 = vsel %vm4025, %v4011, %v2798
      %v4038 = vsel %vm4025, %v4012, %v2800
      %v4039 = vsel %vm4025, %v4013, %v2802
      %v4040 = vsel %vm4025, %v4014, %v2804
      %v4041 = vsel %vm4025, %v4015, %v2806
      %v4042 = vsel %vm4025, %v4016, %v2808
      %v4043 = vsel %vm4025, %v4017, %v2810
      %v4044 = vsel %vm4025, %v4018, %v2812
      %v4045 = vsel %vm4025, %v4019, %v2814
      %v4046 = vsel %vm4025, %v4020, %v2816
      %v4047 = vsel %vm4025, %v4021, %v2818
      %v4048 = vsel %vm4025, %v4022, %v2820
      %v4049 = vsel %vm4025, %v4023, %v2822
      %v4050 = vsel %vm4025, %v4024, %v2824
      %vm4051 = vcmask 130048
      %v4052 = vsel %vm4051, %v4026, %v3267
      %v4053 = vsel %vm4051, %v4027, %v3269
      %v4054 = vsel %vm4051, %v4028, %v3271
      %v4055 = vsel %vm4051, %v4029, %v3273
      %v4056 = vsel %vm4051, %v4030, %v3275
      %v4057 = vsel %vm4051, %v4031, %v3277
      %v4058 = vsel %vm4051, %v4032, %v3279
      %v4059 = vsel %vm4051, %v4033, %v3281
      %v4060 = vsel %vm4051, %v4034, %v3283
      %v4061 = vsel %vm4051, %v4035, %v3285
      %v4062 = vsel %vm4051, %v4036, %v3287
      %v4063 = vsel %vm4051, %v4037, %v3289
      %v4064 = vsel %vm4051, %v4038, %v3291
      %v4065 = vsel %vm4051, %v4039, %v3293
      %v4066 = vsel %vm4051, %v4040, %v3295
      %v4067 = vsel %vm4051, %v4041, %v3297
      %v4068 = vsel %vm4051, %v4042, %v3299
      %v4069 = vsel %vm4051, %v4043, %v3301
      %v4070 = vsel %vm4051, %v4044, %v3303
      %v4071 = vsel %vm4051, %v4045, %v3305
      %v4072 = vsel %vm4051, %v4046, %v3307
      %v4073 = vsel %vm4051, %v4047, %v3309
      %v4074 = vsel %vm4051, %v4048, %v3311
      %v4075 = vsel %vm4051, %v4049, %v3313
      %v4076 = vsel %vm4051, %v4050, %v3315
      %vm4077 = vcmask 162816
      %v4078 = vsel %vm4077, %v4052, %v3484
      %v4079 = vsel %vm4077, %v4053, %v3486
      %v4080 = vsel %vm4077, %v4054, %v3488
      %v4081 = vsel %vm4077, %v4055, %v3490
      %v4082 = vsel %vm4077, %v4056, %v3492
      %v4083 = vsel %vm4077, %v4057, %v3494
      %v4084 = vsel %vm4077, %v4058, %v3496
      %v4085 = vsel %vm4077, %v4059, %v3498
      %v4086 = vsel %vm4077, %v4060, %v3500
      %v4087 = vsel %vm4077, %v4061, %v3502
      %v4088 = vsel %vm4077, %v4062, %v3504
      %v4089 = vsel %vm4077, %v4063, %v3506
      %v4090 = vsel %vm4077, %v4064, %v3508
      %v4091 = vsel %vm4077, %v4065, %v3510
      %v4092 = vsel %vm4077, %v4066, %v3512
      %v4093 = vsel %vm4077, %v4067, %v3514
      %v4094 = vsel %vm4077, %v4068, %v3516
      %v4095 = vsel %vm4077, %v4069, %v3518
      %v4096 = vsel %vm4077, %v4070, %v3520
      %v4097 = vsel %vm4077, %v4071, %v3522
      %v4098 = vsel %vm4077, %v4072, %v3524
      %v4099 = vsel %vm4077, %v4073, %v3526
      %v4100 = vsel %vm4077, %v4074, %v3528
      %v4101 = vsel %vm4077, %v4075, %v3530
      %v4102 = vsel %vm4077, %v4076, %v3532
      %vm4103 = vcmask 195584
      %v4104 = vsel %vm4103, %v4078, %v3623
      %v4105 = vsel %vm4103, %v4079, %v3625
      %v4106 = vsel %vm4103, %v4080, %v3627
      %v4107 = vsel %vm4103, %v4081, %v3629
      %v4108 = vsel %vm4103, %v4082, %v3631
      %v4109 = vsel %vm4103, %v4083, %v3633
      %v4110 = vsel %vm4103, %v4084, %v3635
      %v4111 = vsel %vm4103, %v4085, %v3637
      %v4112 = vsel %vm4103, %v4086, %v3639
      %v4113 = vsel %vm4103, %v4087, %v3641
      %v4114 = vsel %vm4103, %v4088, %v3643
      %v4115 = vsel %vm4103, %v4089, %v3645
      %v4116 = vsel %vm4103, %v4090, %v3647
      %v4117 = vsel %vm4103, %v4091, %v3649
      %v4118 = vsel %vm4103, %v4092, %v3651
      %v4119 = vsel %vm4103, %v4093, %v3653
      %v4120 = vsel %vm4103, %v4094, %v3655
      %v4121 = vsel %vm4103, %v4095, %v3657
      %v4122 = vsel %vm4103, %v4096, %v3659
      %v4123 = vsel %vm4103, %v4097, %v3661
      %v4124 = vsel %vm4103, %v4098, %v3663
      %v4125 = vsel %vm4103, %v4099, %v3665
      %v4126 = vsel %vm4103, %v4100, %v3667
      %v4127 = vsel %vm4103, %v4101, %v3669
      %v4128 = vsel %vm4103, %v4102, %v3671
      %vm4129 = vcmask 228352
      %v4130 = vsel %vm4129, %v4104, %v3778
      %v4131 = vsel %vm4129, %v4105, %v3780
      %v4132 = vsel %vm4129, %v4106, %v3782
      %v4133 = vsel %vm4129, %v4107, %v3784
      %v4134 = vsel %vm4129, %v4108, %v3786
      %v4135 = vsel %vm4129, %v4109, %v3788
      %v4136 = vsel %vm4129, %v4110, %v3790
      %v4137 = vsel %vm4129, %v4111, %v3792
      %v4138 = vsel %vm4129, %v4112, %v3794
      %v4139 = vsel %vm4129, %v4113, %v3796
      %v4140 = vsel %vm4129, %v4114, %v3798
      %v4141 = vsel %vm4129, %v4115, %v3800
      %v4142 = vsel %vm4129, %v4116, %v3802
      %v4143 = vsel %vm4129, %v4117, %v3804
      %v4144 = vsel %vm4129, %v4118, %v3806
      %v4145 = vsel %vm4129, %v4119, %v3808
      %v4146 = vsel %vm4129, %v4120, %v3810
      %v4147 = vsel %vm4129, %v4121, %v3812
      %v4148 = vsel %vm4129, %v4122, %v3814
      %v4149 = vsel %vm4129, %v4123, %v3816
      %v4150 = vsel %vm4129, %v4124, %v3818
      %v4151 = vsel %vm4129, %v4125, %v3820
      %v4152 = vsel %vm4129, %v4126, %v3822
      %v4153 = vsel %vm4129, %v4127, %v3824
      %v4154 = vsel %vm4129, %v4128, %v3826
      %vm4155 = vcmask 261120
      %v4156 = vsel %vm4155, %v4130, %v3899
      %v4157 = vsel %vm4155, %v4131, %v3901
      %v4158 = vsel %vm4155, %v4132, %v3903
      %v4159 = vsel %vm4155, %v4133, %v3905
      %v4160 = vsel %vm4155, %v4134, %v3907
      %v4161 = vsel %vm4155, %v4135, %v3909
      %v4162 = vsel %vm4155, %v4136, %v3911
      %v4163 = vsel %vm4155, %v4137, %v3913
      %v4164 = vsel %vm4155, %v4138, %v3915
      %v4165 = vsel %vm4155, %v4139, %v3917
      %v4166 = vsel %vm4155, %v4140, %v3919
      %v4167 = vsel %vm4155, %v4141, %v3921
      %v4168 = vsel %vm4155, %v4142, %v3923
      %v4169 = vsel %vm4155, %v4143, %v3925
      %v4170 = vsel %vm4155, %v4144, %v3927
      %v4171 = vsel %vm4155, %v4145, %v3929
      %v4172 = vsel %vm4155, %v4146, %v3931
      %v4173 = vsel %vm4155, %v4147, %v3933
      %v4174 = vsel %vm4155, %v4148, %v3935
      %v4175 = vsel %vm4155, %v4149, %v3937
      %v4176 = vsel %vm4155, %v4150, %v3939
      %v4177 = vsel %vm4155, %v4151, %v3941
      %v4178 = vsel %vm4155, %v4152, %v3943
      %v4179 = vsel %vm4155, %v4153, %v3945
      %v4180 = vsel %vm4155, %v4154, %v3947
      %v4181 = vld [vmem:[%s1] sm:$0xff]
      %v4182 = vld [vmem:[%s1 + $0x8] sm:$0xff]
      %v4183 = vld [vmem:[%s1 + $0x10] sm:$0xff]
      %v4184 = vld [vmem:[%s1 + $0x18] sm:$0xff]
      %v4185 = vld [vmem:[%s1 + $0x20] sm:$0xf]
      %v4186 = vld [vmem:[%s2] sm:$0x1]
      %v4188 = vlaneseq
      %v4189 = vshrl.u32 %v4188, 7
      %v4190 = vsub.s32 0, %v4189
      %v4191 = vrot.slane %v4186, %v4190
      %vm4193 = vcmask 293888
      %v4195 = vsel %vm4193, %v4156, 0
      %v4198 = vsel %vm4193, %v4157, 0
      %v4201 = vsel %vm4193, %v4158, 0
      %v4204 = vsel %vm4193, %v4159, 0
      %v4207 = vsel %vm4193, %v4160, 0
      %v4210 = vsel %vm4193, %v4161, 0
      %v4213 = vsel %vm4193, %v4162, 0
      %v4216 = vsel %vm4193, %v4163, 0
      %v4219 = vsel %vm4193, %v4164, 0
      %v4222 = vsel %vm4193, %v4165, 0
      %v4225 = vsel %vm4193, %v4166, 0
      %v4228 = vsel %vm4193, %v4167, 0
      %v4231 = vsel %vm4193, %v4168, 0
      %v4234 = vsel %vm4193, %v4169, 0
      %v4237 = vsel %vm4193, %v4170, 0
      %v4240 = vsel %vm4193, %v4171, 0
      %v4243 = vsel %vm4193, %v4172, 0
      %v4246 = vsel %vm4193, %v4173, 0
      %v4249 = vsel %vm4193, %v4174, 0
      %v4252 = vsel %vm4193, %v4175, 0
      %v4255 = vsel %vm4193, %v4176, 0
      %v4258 = vsel %vm4193, %v4177, 0
      %v4261 = vsel %vm4193, %v4178, 0
      %v4264 = vsel %vm4193, %v4179, 0
      %v4267 = vsel %vm4193, %v4180, 0
      %vm4269 = vcmask 1043456
      %v4271 = vsel %vm4269, %v4185, 0
      %4273 = vmatprep.subr.mxu0 0.0
      %4274 = vmatpush1.msra.mxu0 %v4181
      %4275 = vmatprep.subr.mxu0 0.0
      %4276 = vmatpush1.msra.mxu0 %v4182
      %4277 = vmatprep.subr.mxu0 0.0
      %4278 = vmatpush1.msra.mxu0 %v4183
      %4279 = vmatprep.subr.mxu0 0.0
      %4280 = vmatpush1.msra.mxu0 %v4184
      %4281 = vmatprep.subr.mxu0 0.0
      %4282 = vmatpush1.msra.mxu0 %v4271
      %4283 = vmatprep.subr.mxu0 0.0
      %4284 = vmatpush1.msra.mxu0 0.0
      %4285 = vmatprep.subr.mxu0 0.0
      %4286 = vmatpush1.msra.mxu0 0.0
      %4287 = vmatprep.subr.mxu0 0.0
      %4288 = vmatpush1.msra.mxu0 0.0
      %4289 = vmatprep.subr.mxu0 0.0
      %4290 = vmatpush1.msra.mxu0 0.0
      %4291 = vmatprep.subr.mxu0 0.0
      %4292 = vmatpush1.msra.mxu0 0.0
      %4293 = vmatprep.subr.mxu0 0.0
      %4294 = vmatpush1.msra.mxu0 0.0
      %4295 = vmatprep.subr.mxu0 0.0
      %4296 = vmatpush1.msra.mxu0 0.0
      %4297 = vmatprep.subr.mxu0 0.0
      %4298 = vmatpush1.msra.mxu0 0.0
      %4299 = vmatprep.subr.mxu0 0.0
      %4300 = vmatpush1.msra.mxu0 0.0
      %4301 = vmatprep.subr.mxu0 0.0
      %4302 = vmatpush1.msra.mxu0 0.0
      %4303 = vmatprep.subr.mxu0 0.0
      %4304 = vmatpush1.msra.mxu0 0.0
      %4305 = vmatprep.subr.mxu0 0.0
      %4306 = vmatpush1.msra.mxu0 0.0
      %4307 = vmatprep.subr.mxu0 0.0
      %4308 = vmatpush1.msra.mxu0 0.0
      %4309 = vmatprep.subr.mxu0 0.0
      %4310 = vmatpush1.msra.mxu0 0.0
      %4311 = vmatprep.subr.mxu0 0.0
      %4312 = vmatpush1.msra.mxu0 0.0
      %4313 = vmatprep.subr.mxu0 0.0
      %4314 = vmatpush1.msra.mxu0 0.0
      %4315 = vmatprep.subr.mxu0 0.0
      %4316 = vmatpush1.msra.mxu0 0.0
      %4317 = vmatprep.subr.mxu0 0.0
      %4318 = vmatpush1.msra.mxu0 0.0
      %4319 = vmatprep.subr.mxu0 0.0
      %4320 = vmatpush1.msra.mxu0 0.0
      %4321 = vmatprep.subr.mxu0 0.0
      %4322 = vmatpush1.msra.mxu0 0.0
      %4323 = vmatprep.subr.mxu0 0.0
      %4324 = vmatpush1.msra.mxu0 0.0
      %4325 = vmatprep.subr.mxu0 0.0
      %4326 = vmatpush1.msra.mxu0 0.0
      %4327 = vmatprep.subr.mxu0 0.0
      %4328 = vmatpush1.msra.mxu0 0.0
      %4329 = vmatprep.subr.mxu0 0.0
      %4330 = vmatpush1.msra.mxu0 0.0
      %4331 = vmatprep.subr.mxu0 0.0
      %4332 = vmatpush1.msra.mxu0 0.0
      %4333 = vmatprep.subr.mxu0 0.0
      %4334 = vmatpush1.msra.mxu0 0.0
      %4335 = vmatprep.subr.mxu0 0.0
      %4336 = vmatpush1.msra.mxu0 0.0
      %4337 = vmatprep.mubr.f32.mxu0 0.0
      %4338 = vmatmul.mubr.f32.gmra.mrb[0].mxu0 %v4195
      %v4339 = vpop.f32.mrb[0].mxu0
      %v4340 = vadd.f32 %v4191, %v4339
      %v4341 = vpop.f32.mrb[0].mxu0
      %4342 = vmatprep.mubr.f32.mxu0 0.0
      %4343 = vmatmul.mubr.f32.gmra.mrb[0].mxu0 %v4198
      %v4344 = vpop.f32.mrb[0].mxu0
      %v4345 = vadd.f32 %v4191, %v4344
      %v4346 = vpop.f32.mrb[0].mxu0
      %4347 = vmatprep.mubr.f32.mxu0 0.0
      %4348 = vmatmul.mubr.f32.gmra.mrb[0].mxu0 %v4201
      %v4349 = vpop.f32.mrb[0].mxu0
      %v4350 = vadd.f32 %v4191, %v4349
      %v4351 = vpop.f32.mrb[0].mxu0
      %4352 = vmatprep.mubr.f32.mxu0 0.0
      %4353 = vmatmul.mubr.f32.gmra.mrb[0].mxu0 %v4204
      %v4354 = vpop.f32.mrb[0].mxu0
      %v4355 = vadd.f32 %v4191, %v4354
      %v4356 = vpop.f32.mrb[0].mxu0
      %4357 = vmatprep.mubr.f32.mxu0 0.0
      %4358 = vmatmul.mubr.f32.gmra.mrb[0].mxu0 %v4207
      %v4359 = vpop.f32.mrb[0].mxu0
      %v4360 = vadd.f32 %v4191, %v4359
      %v4361 = vpop.f32.mrb[0].mxu0
      %4362 = vmatprep.mubr.f32.mxu0 0.0
      %4363 = vmatmul.mubr.f32.gmra.mrb[0].mxu0 %v4210
      %v4364 = vpop.f32.mrb[0].mxu0
      %v4365 = vadd.f32 %v4191, %v4364
      %v4366 = vpop.f32.mrb[0].mxu0
      %4367 = vmatprep.mubr.f32.mxu0 0.0
      %4368 = vmatmul.mubr.f32.gmra.mrb[0].mxu0 %v4213
      %v4369 = vpop.f32.mrb[0].mxu0
      %v4370 = vadd.f32 %v4191, %v4369
      %v4371 = vpop.f32.mrb[0].mxu0
      %4372 = vmatprep.mubr.f32.mxu0 0.0
      %4373 = vmatmul.mubr.f32.gmra.mrb[0].mxu0 %v4216
      %v4374 = vpop.f32.mrb[0].mxu0
      %v4375 = vadd.f32 %v4191, %v4374
      %v4376 = vpop.f32.mrb[0].mxu0
      %4377 = vmatprep.mubr.f32.mxu0 0.0
      %4378 = vmatmul.mubr.f32.gmra.mrb[0].mxu0 %v4219
      %v4379 = vpop.f32.mrb[0].mxu0
      %v4380 = vadd.f32 %v4191, %v4379
      %v4381 = vpop.f32.mrb[0].mxu0
      %4382 = vmatprep.mubr.f32.mxu0 0.0
      %4383 = vmatmul.mubr.f32.gmra.mrb[0].mxu0 %v4222
      %v4384 = vpop.f32.mrb[0].mxu0
      %v4385 = vadd.f32 %v4191, %v4384
      %v4386 = vpop.f32.mrb[0].mxu0
      %4387 = vmatprep.mubr.f32.mxu0 0.0
      %4388 = vmatmul.mubr.f32.gmra.mrb[0].mxu0 %v4225
      %v4389 = vpop.f32.mrb[0].mxu0
      %v4390 = vadd.f32 %v4191, %v4389
      %v4391 = vpop.f32.mrb[0].mxu0
      %4392 = vmatprep.mubr.f32.mxu0 0.0
      %4393 = vmatmul.mubr.f32.gmra.mrb[0].mxu0 %v4228
      %v4394 = vpop.f32.mrb[0].mxu0
      %v4395 = vadd.f32 %v4191, %v4394
      %v4396 = vpop.f32.mrb[0].mxu0
      %4397 = vmatprep.mubr.f32.mxu0 0.0
      %4398 = vmatmul.mubr.f32.gmra.mrb[0].mxu0 %v4231
      %v4399 = vpop.f32.mrb[0].mxu0
      %v4400 = vadd.f32 %v4191, %v4399
      %v4401 = vpop.f32.mrb[0].mxu0
      %4402 = vmatprep.mubr.f32.mxu0 0.0
      %4403 = vmatmul.mubr.f32.gmra.mrb[0].mxu0 %v4234
      %v4404 = vpop.f32.mrb[0].mxu0
      %v4405 = vadd.f32 %v4191, %v4404
      %v4406 = vpop.f32.mrb[0].mxu0
      %4407 = vmatprep.mubr.f32.mxu0 0.0
      %4408 = vmatmul.mubr.f32.gmra.mrb[0].mxu0 %v4237
      %v4409 = vpop.f32.mrb[0].mxu0
      %v4410 = vadd.f32 %v4191, %v4409
      %v4411 = vpop.f32.mrb[0].mxu0
      %4412 = vmatprep.mubr.f32.mxu0 0.0
      %4413 = vmatmul.mubr.f32.gmra.mrb[0].mxu0 %v4240
      %v4414 = vpop.f32.mrb[0].mxu0
      %v4415 = vadd.f32 %v4191, %v4414
      %v4416 = vpop.f32.mrb[0].mxu0
      %4417 = vmatprep.mubr.f32.mxu0 0.0
      %4418 = vmatmul.mubr.f32.gmra.mrb[0].mxu0 %v4243
      %v4419 = vpop.f32.mrb[0].mxu0
      %v4420 = vadd.f32 %v4191, %v4419
      %v4421 = vpop.f32.mrb[0].mxu0
      %4422 = vmatprep.mubr.f32.mxu0 0.0
      %4423 = vmatmul.mubr.f32.gmra.mrb[0].mxu0 %v4246
      %v4424 = vpop.f32.mrb[0].mxu0
      %v4425 = vadd.f32 %v4191, %v4424
      %v4426 = vpop.f32.mrb[0].mxu0
      %4427 = vmatprep.mubr.f32.mxu0 0.0
      %4428 = vmatmul.mubr.f32.gmra.mrb[0].mxu0 %v4249
      %v4429 = vpop.f32.mrb[0].mxu0
      %v4430 = vadd.f32 %v4191, %v4429
      %v4431 = vpop.f32.mrb[0].mxu0
      %4432 = vmatprep.mubr.f32.mxu0 0.0
      %4433 = vmatmul.mubr.f32.gmra.mrb[0].mxu0 %v4252
      %v4434 = vpop.f32.mrb[0].mxu0
      %v4435 = vadd.f32 %v4191, %v4434
      %v4436 = vpop.f32.mrb[0].mxu0
      %4437 = vmatprep.mubr.f32.mxu0 0.0
      %4438 = vmatmul.mubr.f32.gmra.mrb[0].mxu0 %v4255
      %v4439 = vpop.f32.mrb[0].mxu0
      %v4440 = vadd.f32 %v4191, %v4439
      %v4441 = vpop.f32.mrb[0].mxu0
      %4442 = vmatprep.mubr.f32.mxu0 0.0
      %4443 = vmatmul.mubr.f32.gmra.mrb[0].mxu0 %v4258
      %v4444 = vpop.f32.mrb[0].mxu0
      %v4445 = vadd.f32 %v4191, %v4444
      %v4446 = vpop.f32.mrb[0].mxu0
      %4447 = vmatprep.mubr.f32.mxu0 0.0
      %4448 = vmatmul.mubr.f32.gmra.mrb[0].mxu0 %v4261
      %v4449 = vpop.f32.mrb[0].mxu0
      %v4450 = vadd.f32 %v4191, %v4449
      %v4451 = vpop.f32.mrb[0].mxu0
      %4452 = vmatprep.mubr.f32.mxu0 0.0
      %4453 = vmatmul.mubr.f32.gmra.mrb[0].mxu0 %v4264
      %v4454 = vpop.f32.mrb[0].mxu0
      %v4455 = vadd.f32 %v4191, %v4454
      %v4456 = vpop.f32.mrb[0].mxu0
      %4457 = vmatprep.mubr.f32.mxu0 0.0
      %4458 = vmatmul.mubr.f32.gmra.mrb[0].mxu0 %v4267
      %v4459 = vpop.f32.mrb[0].mxu0
      %v4460 = vadd.f32 %v4191, %v4459
      %v4461 = vpop.f32.mrb[0].mxu0
      %4462 = vdwg.mxu0
      %v4463 = vmax.f32 %v4340, 0.0
      %v4464 = vmax.f32 %v4345, 0.0
      %v4465 = vmax.f32 %v4350, 0.0
      %v4466 = vmax.f32 %v4355, 0.0
      %v4467 = vmax.f32 %v4360, 0.0
      %v4468 = vmax.f32 %v4365, 0.0
      %v4469 = vmax.f32 %v4370, 0.0
      %v4470 = vmax.f32 %v4375, 0.0
      %v4471 = vmax.f32 %v4380, 0.0
      %v4472 = vmax.f32 %v4385, 0.0
      %v4473 = vmax.f32 %v4390, 0.0
      %v4474 = vmax.f32 %v4395, 0.0
      %v4475 = vmax.f32 %v4400, 0.0
      %v4476 = vmax.f32 %v4405, 0.0
      %v4477 = vmax.f32 %v4410, 0.0
      %v4478 = vmax.f32 %v4415, 0.0
      %v4479 = vmax.f32 %v4420, 0.0
      %v4480 = vmax.f32 %v4425, 0.0
      %v4481 = vmax.f32 %v4430, 0.0
      %v4482 = vmax.f32 %v4435, 0.0
      %v4483 = vmax.f32 %v4440, 0.0
      %v4484 = vmax.f32 %v4445, 0.0
      %v4485 = vmax.f32 %v4450, 0.0
      %v4486 = vmax.f32 %v4455, 0.0
      %v4487 = vmax.f32 %v4460, 0.0
      %v4513 = vcombine.high %v4463, %v4463
      %v4515 = vunpack.c.l.s4 1983009808
      %v4516 = vunpack.c.0.s8 %v4515
      %v4517 = vlaneseq
      %v4518 = vshrl.u32 %v4517, 7
      %v4519 = vsub.s32 %v4516, %v4518
      %v4520 = vrot.slane %v4463, %v4519
      %v4522 = vunpack.c.l.s4 1983009808
      %v4523 = vunpack.c.0.s8 %v4522
      %v4524 = vlaneseq
      %v4525 = vshrl.u32 %v4524, 7
      %v4526 = vsub.s32 %v4523, %v4525
      %v4527 = vrot.slane %v4513, %v4526
      %v4528 = vcombine.high %v4520, %v4520
      %v4529 = vcombine.high %v4527, %v4527
      %v4530 = vcombine.high %v4464, %v4464
      %v4532 = vunpack.c.l.s4 1983009808
      %v4533 = vunpack.c.0.s8 %v4532
      %v4534 = vlaneseq
      %v4535 = vshrl.u32 %v4534, 7
      %v4536 = vsub.s32 %v4533, %v4535
      %v4537 = vrot.slane %v4464, %v4536
      %v4539 = vunpack.c.l.s4 1983009808
      %v4540 = vunpack.c.0.s8 %v4539
      %v4541 = vlaneseq
      %v4542 = vshrl.u32 %v4541, 7
      %v4543 = vsub.s32 %v4540, %v4542
      %v4544 = vrot.slane %v4530, %v4543
      %v4545 = vcombine.high %v4537, %v4537
      %v4546 = vcombine.high %v4544, %v4544
      %v4547 = vcombine.high %v4465, %v4465
      %v4549 = vunpack.c.l.s4 1983009808
      %v4550 = vunpack.c.0.s8 %v4549
      %v4551 = vlaneseq
      %v4552 = vshrl.u32 %v4551, 7
      %v4553 = vsub.s32 %v4550, %v4552
      %v4554 = vrot.slane %v4465, %v4553
      %v4556 = vunpack.c.l.s4 1983009808
      %v4557 = vunpack.c.0.s8 %v4556
      %v4558 = vlaneseq
      %v4559 = vshrl.u32 %v4558, 7
      %v4560 = vsub.s32 %v4557, %v4559
      %v4561 = vrot.slane %v4547, %v4560
      %v4562 = vcombine.high %v4554, %v4554
      %v4563 = vcombine.high %v4561, %v4561
      %v4564 = vcombine.high %v4466, %v4466
      %v4566 = vunpack.c.l.s4 1983009808
      %v4567 = vunpack.c.0.s8 %v4566
      %v4568 = vlaneseq
      %v4569 = vshrl.u32 %v4568, 7
      %v4570 = vsub.s32 %v4567, %v4569
      %v4571 = vrot.slane %v4466, %v4570
      %v4573 = vunpack.c.l.s4 1983009808
      %v4574 = vunpack.c.0.s8 %v4573
      %v4575 = vlaneseq
      %v4576 = vshrl.u32 %v4575, 7
      %v4577 = vsub.s32 %v4574, %v4576
      %v4578 = vrot.slane %v4564, %v4577
      %v4579 = vcombine.high %v4571, %v4571
      %v4580 = vcombine.high %v4578, %v4578
      %v4581 = vcombine.high %v4467, %v4467
      %v4583 = vunpack.c.l.s4 1983009808
      %v4584 = vunpack.c.0.s8 %v4583
      %v4585 = vlaneseq
      %v4586 = vshrl.u32 %v4585, 7
      %v4587 = vsub.s32 %v4584, %v4586
      %v4588 = vrot.slane %v4467, %v4587
      %v4590 = vunpack.c.l.s4 1983009808
      %v4591 = vunpack.c.0.s8 %v4590
      %v4592 = vlaneseq
      %v4593 = vshrl.u32 %v4592, 7
      %v4594 = vsub.s32 %v4591, %v4593
      %v4595 = vrot.slane %v4581, %v4594
      %v4596 = vcombine.high %v4588, %v4588
      %v4597 = vcombine.high %v4595, %v4595
      %v4598 = vcombine.high %v4468, %v4468
      %v4600 = vunpack.c.l.s4 1983009808
      %v4601 = vunpack.c.0.s8 %v4600
      %v4602 = vlaneseq
      %v4603 = vshrl.u32 %v4602, 7
      %v4604 = vsub.s32 %v4601, %v4603
      %v4605 = vrot.slane %v4468, %v4604
      %v4607 = vunpack.c.l.s4 1983009808
      %v4608 = vunpack.c.0.s8 %v4607
      %v4609 = vlaneseq
      %v4610 = vshrl.u32 %v4609, 7
      %v4611 = vsub.s32 %v4608, %v4610
      %v4612 = vrot.slane %v4598, %v4611
      %v4613 = vcombine.high %v4605, %v4605
      %v4614 = vcombine.high %v4612, %v4612
      %v4615 = vcombine.high %v4469, %v4469
      %v4617 = vunpack.c.l.s4 1983009808
      %v4618 = vunpack.c.0.s8 %v4617
      %v4619 = vlaneseq
      %v4620 = vshrl.u32 %v4619, 7
      %v4621 = vsub.s32 %v4618, %v4620
      %v4622 = vrot.slane %v4469, %v4621
      %v4624 = vunpack.c.l.s4 1983009808
      %v4625 = vunpack.c.0.s8 %v4624
      %v4626 = vlaneseq
      %v4627 = vshrl.u32 %v4626, 7
      %v4628 = vsub.s32 %v4625, %v4627
      %v4629 = vrot.slane %v4615, %v4628
      %v4630 = vcombine.high %v4622, %v4622
      %v4631 = vcombine.high %v4629, %v4629
      %v4632 = vcombine.high %v4470, %v4470
      %v4634 = vunpack.c.l.s4 1983009808
      %v4635 = vunpack.c.0.s8 %v4634
      %v4636 = vlaneseq
      %v4637 = vshrl.u32 %v4636, 7
      %v4638 = vsub.s32 %v4635, %v4637
      %v4639 = vrot.slane %v4470, %v4638
      %v4641 = vunpack.c.l.s4 1983009808
      %v4642 = vunpack.c.0.s8 %v4641
      %v4643 = vlaneseq
      %v4644 = vshrl.u32 %v4643, 7
      %v4645 = vsub.s32 %v4642, %v4644
      %v4646 = vrot.slane %v4632, %v4645
      %v4647 = vcombine.high %v4639, %v4639
      %v4648 = vcombine.high %v4646, %v4646
      %v4649 = vcombine.high %v4471, %v4471
      %v4651 = vunpack.c.l.s4 1983009808
      %v4652 = vunpack.c.0.s8 %v4651
      %v4653 = vlaneseq
      %v4654 = vshrl.u32 %v4653, 7
      %v4655 = vsub.s32 %v4652, %v4654
      %v4656 = vrot.slane %v4471, %v4655
      %v4658 = vunpack.c.l.s4 1983009808
      %v4659 = vunpack.c.0.s8 %v4658
      %v4660 = vlaneseq
      %v4661 = vshrl.u32 %v4660, 7
      %v4662 = vsub.s32 %v4659, %v4661
      %v4663 = vrot.slane %v4649, %v4662
      %v4664 = vcombine.high %v4656, %v4656
      %v4665 = vcombine.high %v4663, %v4663
      %v4666 = vcombine.high %v4472, %v4472
      %v4668 = vunpack.c.l.s4 1983009808
      %v4669 = vunpack.c.0.s8 %v4668
      %v4670 = vlaneseq
      %v4671 = vshrl.u32 %v4670, 7
      %v4672 = vsub.s32 %v4669, %v4671
      %v4673 = vrot.slane %v4472, %v4672
      %v4675 = vunpack.c.l.s4 1983009808
      %v4676 = vunpack.c.0.s8 %v4675
      %v4677 = vlaneseq
      %v4678 = vshrl.u32 %v4677, 7
      %v4679 = vsub.s32 %v4676, %v4678
      %v4680 = vrot.slane %v4666, %v4679
      %v4681 = vcombine.high %v4673, %v4673
      %v4682 = vcombine.high %v4680, %v4680
      %v4683 = vcombine.high %v4473, %v4473
      %v4685 = vunpack.c.l.s4 1983009808
      %v4686 = vunpack.c.0.s8 %v4685
      %v4687 = vlaneseq
      %v4688 = vshrl.u32 %v4687, 7
      %v4689 = vsub.s32 %v4686, %v4688
      %v4690 = vrot.slane %v4473, %v4689
      %v4692 = vunpack.c.l.s4 1983009808
      %v4693 = vunpack.c.0.s8 %v4692
      %v4694 = vlaneseq
      %v4695 = vshrl.u32 %v4694, 7
      %v4696 = vsub.s32 %v4693, %v4695
      %v4697 = vrot.slane %v4683, %v4696
      %v4698 = vcombine.high %v4690, %v4690
      %v4699 = vcombine.high %v4697, %v4697
      %v4700 = vcombine.high %v4474, %v4474
      %v4702 = vunpack.c.l.s4 1983009808
      %v4703 = vunpack.c.0.s8 %v4702
      %v4704 = vlaneseq
      %v4705 = vshrl.u32 %v4704, 7
      %v4706 = vsub.s32 %v4703, %v4705
      %v4707 = vrot.slane %v4474, %v4706
      %v4709 = vunpack.c.l.s4 1983009808
      %v4710 = vunpack.c.0.s8 %v4709
      %v4711 = vlaneseq
      %v4712 = vshrl.u32 %v4711, 7
      %v4713 = vsub.s32 %v4710, %v4712
      %v4714 = vrot.slane %v4700, %v4713
      %v4715 = vcombine.high %v4707, %v4707
      %v4716 = vcombine.high %v4714, %v4714
      %v4717 = vcombine.high %v4475, %v4475
      %v4719 = vunpack.c.l.s4 1983009808
      %v4720 = vunpack.c.0.s8 %v4719
      %v4721 = vlaneseq
      %v4722 = vshrl.u32 %v4721, 7
      %v4723 = vsub.s32 %v4720, %v4722
      %v4724 = vrot.slane %v4475, %v4723
      %v4726 = vunpack.c.l.s4 1983009808
      %v4727 = vunpack.c.0.s8 %v4726
      %v4728 = vlaneseq
      %v4729 = vshrl.u32 %v4728, 7
      %v4730 = vsub.s32 %v4727, %v4729
      %v4731 = vrot.slane %v4717, %v4730
      %v4732 = vcombine.high %v4724, %v4724
      %v4733 = vcombine.high %v4731, %v4731
      %v4734 = vcombine.high %v4476, %v4476
      %v4736 = vunpack.c.l.s4 1983009808
      %v4737 = vunpack.c.0.s8 %v4736
      %v4738 = vlaneseq
      %v4739 = vshrl.u32 %v4738, 7
      %v4740 = vsub.s32 %v4737, %v4739
      %v4741 = vrot.slane %v4476, %v4740
      %v4743 = vunpack.c.l.s4 1983009808
      %v4744 = vunpack.c.0.s8 %v4743
      %v4745 = vlaneseq
      %v4746 = vshrl.u32 %v4745, 7
      %v4747 = vsub.s32 %v4744, %v4746
      %v4748 = vrot.slane %v4734, %v4747
      %v4749 = vcombine.high %v4741, %v4741
      %v4750 = vcombine.high %v4748, %v4748
      %v4751 = vcombine.high %v4477, %v4477
      %v4753 = vunpack.c.l.s4 1983009808
      %v4754 = vunpack.c.0.s8 %v4753
      %v4755 = vlaneseq
      %v4756 = vshrl.u32 %v4755, 7
      %v4757 = vsub.s32 %v4754, %v4756
      %v4758 = vrot.slane %v4477, %v4757
      %v4760 = vunpack.c.l.s4 1983009808
      %v4761 = vunpack.c.0.s8 %v4760
      %v4762 = vlaneseq
      %v4763 = vshrl.u32 %v4762, 7
      %v4764 = vsub.s32 %v4761, %v4763
      %v4765 = vrot.slane %v4751, %v4764
      %v4766 = vcombine.high %v4758, %v4758
      %v4767 = vcombine.high %v4765, %v4765
      %v4768 = vcombine.high %v4478, %v4478
      %v4770 = vunpack.c.l.s4 1983009808
      %v4771 = vunpack.c.0.s8 %v4770
      %v4772 = vlaneseq
      %v4773 = vshrl.u32 %v4772, 7
      %v4774 = vsub.s32 %v4771, %v4773
      %v4775 = vrot.slane %v4478, %v4774
      %v4777 = vunpack.c.l.s4 1983009808
      %v4778 = vunpack.c.0.s8 %v4777
      %v4779 = vlaneseq
      %v4780 = vshrl.u32 %v4779, 7
      %v4781 = vsub.s32 %v4778, %v4780
      %v4782 = vrot.slane %v4768, %v4781
      %v4783 = vcombine.high %v4775, %v4775
      %v4784 = vcombine.high %v4782, %v4782
      %v4785 = vcombine.high %v4479, %v4479
      %v4787 = vunpack.c.l.s4 1983009808
      %v4788 = vunpack.c.0.s8 %v4787
      %v4789 = vlaneseq
      %v4790 = vshrl.u32 %v4789, 7
      %v4791 = vsub.s32 %v4788, %v4790
      %v4792 = vrot.slane %v4479, %v4791
      %v4794 = vunpack.c.l.s4 1983009808
      %v4795 = vunpack.c.0.s8 %v4794
      %v4796 = vlaneseq
      %v4797 = vshrl.u32 %v4796, 7
      %v4798 = vsub.s32 %v4795, %v4797
      %v4799 = vrot.slane %v4785, %v4798
      %v4800 = vcombine.high %v4792, %v4792
      %v4801 = vcombine.high %v4799, %v4799
      %v4802 = vcombine.high %v4480, %v4480
      %v4804 = vunpack.c.l.s4 1983009808
      %v4805 = vunpack.c.0.s8 %v4804
      %v4806 = vlaneseq
      %v4807 = vshrl.u32 %v4806, 7
      %v4808 = vsub.s32 %v4805, %v4807
      %v4809 = vrot.slane %v4480, %v4808
      %v4811 = vunpack.c.l.s4 1983009808
      %v4812 = vunpack.c.0.s8 %v4811
      %v4813 = vlaneseq
      %v4814 = vshrl.u32 %v4813, 7
      %v4815 = vsub.s32 %v4812, %v4814
      %v4816 = vrot.slane %v4802, %v4815
      %v4817 = vcombine.high %v4809, %v4809
      %v4818 = vcombine.high %v4816, %v4816
      %v4819 = vcombine.high %v4481, %v4481
      %v4821 = vunpack.c.l.s4 1983009808
      %v4822 = vunpack.c.0.s8 %v4821
      %v4823 = vlaneseq
      %v4824 = vshrl.u32 %v4823, 7
      %v4825 = vsub.s32 %v4822, %v4824
      %v4826 = vrot.slane %v4481, %v4825
      %v4828 = vunpack.c.l.s4 1983009808
      %v4829 = vunpack.c.0.s8 %v4828
      %v4830 = vlaneseq
      %v4831 = vshrl.u32 %v4830, 7
      %v4832 = vsub.s32 %v4829, %v4831
      %v4833 = vrot.slane %v4819, %v4832
      %v4834 = vcombine.high %v4826, %v4826
      %v4835 = vcombine.high %v4833, %v4833
      %v4836 = vcombine.high %v4482, %v4482
      %v4838 = vunpack.c.l.s4 1983009808
      %v4839 = vunpack.c.0.s8 %v4838
      %v4840 = vlaneseq
      %v4841 = vshrl.u32 %v4840, 7
      %v4842 = vsub.s32 %v4839, %v4841
      %v4843 = vrot.slane %v4482, %v4842
      %v4845 = vunpack.c.l.s4 1983009808
      %v4846 = vunpack.c.0.s8 %v4845
      %v4847 = vlaneseq
      %v4848 = vshrl.u32 %v4847, 7
      %v4849 = vsub.s32 %v4846, %v4848
      %v4850 = vrot.slane %v4836, %v4849
      %v4851 = vcombine.high %v4843, %v4843
      %v4852 = vcombine.high %v4850, %v4850
      %v4853 = vcombine.high %v4483, %v4483
      %v4855 = vunpack.c.l.s4 1983009808
      %v4856 = vunpack.c.0.s8 %v4855
      %v4857 = vlaneseq
      %v4858 = vshrl.u32 %v4857, 7
      %v4859 = vsub.s32 %v4856, %v4858
      %v4860 = vrot.slane %v4483, %v4859
      %v4862 = vunpack.c.l.s4 1983009808
      %v4863 = vunpack.c.0.s8 %v4862
      %v4864 = vlaneseq
      %v4865 = vshrl.u32 %v4864, 7
      %v4866 = vsub.s32 %v4863, %v4865
      %v4867 = vrot.slane %v4853, %v4866
      %v4868 = vcombine.high %v4860, %v4860
      %v4869 = vcombine.high %v4867, %v4867
      %v4870 = vcombine.high %v4484, %v4484
      %v4872 = vunpack.c.l.s4 1983009808
      %v4873 = vunpack.c.0.s8 %v4872
      %v4874 = vlaneseq
      %v4875 = vshrl.u32 %v4874, 7
      %v4876 = vsub.s32 %v4873, %v4875
      %v4877 = vrot.slane %v4484, %v4876
      %v4879 = vunpack.c.l.s4 1983009808
      %v4880 = vunpack.c.0.s8 %v4879
      %v4881 = vlaneseq
      %v4882 = vshrl.u32 %v4881, 7
      %v4883 = vsub.s32 %v4880, %v4882
      %v4884 = vrot.slane %v4870, %v4883
      %v4885 = vcombine.high %v4877, %v4877
      %v4886 = vcombine.high %v4884, %v4884
      %v4887 = vcombine.high %v4485, %v4485
      %v4889 = vunpack.c.l.s4 1983009808
      %v4890 = vunpack.c.0.s8 %v4889
      %v4891 = vlaneseq
      %v4892 = vshrl.u32 %v4891, 7
      %v4893 = vsub.s32 %v4890, %v4892
      %v4894 = vrot.slane %v4485, %v4893
      %v4896 = vunpack.c.l.s4 1983009808
      %v4897 = vunpack.c.0.s8 %v4896
      %v4898 = vlaneseq
      %v4899 = vshrl.u32 %v4898, 7
      %v4900 = vsub.s32 %v4897, %v4899
      %v4901 = vrot.slane %v4887, %v4900
      %v4902 = vcombine.high %v4894, %v4894
      %v4903 = vcombine.high %v4901, %v4901
      %v4904 = vcombine.high %v4486, %v4486
      %v4906 = vunpack.c.l.s4 1983009808
      %v4907 = vunpack.c.0.s8 %v4906
      %v4908 = vlaneseq
      %v4909 = vshrl.u32 %v4908, 7
      %v4910 = vsub.s32 %v4907, %v4909
      %v4911 = vrot.slane %v4486, %v4910
      %v4913 = vunpack.c.l.s4 1983009808
      %v4914 = vunpack.c.0.s8 %v4913
      %v4915 = vlaneseq
      %v4916 = vshrl.u32 %v4915, 7
      %v4917 = vsub.s32 %v4914, %v4916
      %v4918 = vrot.slane %v4904, %v4917
      %v4919 = vcombine.high %v4911, %v4911
      %v4920 = vcombine.high %v4918, %v4918
      %v4922 = vunpack.c.l.s4 1983009808
      %v4923 = vunpack.c.0.s8 %v4922
      %v4924 = vlaneseq
      %v4925 = vshrl.u32 %v4924, 7
      %v4926 = vsub.s32 %v4923, %v4925
      %v4927 = vrot.slane %v4487, %v4926
      %v4928 = vcombine.high %v4927, %v4927
      %v4929 = vrot.slane %v4520, 7
      %v4930 = vrot.slane %v4929, 2
      %v4931 = vrot.slane %v4528, 7
      %v4932 = vsel %vm767, %v4930, %v4931
      %v4933 = vrot.slane %v4931, 2
      %v4934 = vrot.slane %v4527, 7
      %v4935 = vsel %vm767, %v4933, %v4934
      %v4936 = vrot.slane %v4934, 2
      %v4937 = vrot.slane %v4529, 7
      %v4938 = vsel %vm767, %v4936, %v4937
      %v4939 = vrot.slane %v4937, 2
      %v4940 = vrot.slane %v4537, 7
      %v4941 = vsel %vm767, %v4939, %v4940
      %v4942 = vrot.slane %v4940, 2
      %v4943 = vrot.slane %v4545, 7
      %v4944 = vsel %vm767, %v4942, %v4943
      %v4945 = vrot.slane %v4943, 2
      %v4946 = vrot.slane %v4544, 7
      %v4947 = vsel %vm767, %v4945, %v4946
      %v4948 = vrot.slane %v4546, 7
      %v4949 = vrot.slane %v4948, 2
      %v4950 = vrot.slane %v4554, 7
      %v4951 = vsel %vm767, %v4949, %v4950
      %v4952 = vrot.slane %v4950, 2
      %v4953 = vrot.slane %v4562, 7
      %v4954 = vsel %vm767, %v4952, %v4953
      %v4955 = vrot.slane %v4953, 2
      %v4956 = vrot.slane %v4561, 7
      %v4957 = vsel %vm767, %v4955, %v4956
      %v4958 = vrot.slane %v4956, 2
      %v4959 = vrot.slane %v4563, 7
      %v4960 = vsel %vm767, %v4958, %v4959
      %v4961 = vrot.slane %v4959, 2
      %v4962 = vrot.slane %v4571, 7
      %v4963 = vsel %vm767, %v4961, %v4962
      %v4964 = vrot.slane %v4962, 2
      %v4965 = vrot.slane %v4579, 7
      %v4966 = vsel %vm767, %v4964, %v4965
      %v4967 = vrot.slane %v4578, 7
      %v4968 = vrot.slane %v4967, 2
      %v4969 = vrot.slane %v4580, 7
      %v4970 = vsel %vm767, %v4968, %v4969
      %v4971 = vrot.slane %v4969, 2
      %v4972 = vrot.slane %v4588, 7
      %v4973 = vsel %vm767, %v4971, %v4972
      %v4974 = vrot.slane %v4972, 2
      %v4975 = vrot.slane %v4596, 7
      %v4976 = vsel %vm767, %v4974, %v4975
      %v4977 = vrot.slane %v4975, 2
      %v4978 = vrot.slane %v4595, 7
      %v4979 = vsel %vm767, %v4977, %v4978
      %v4980 = vrot.slane %v4978, 2
      %v4981 = vrot.slane %v4597, 7
      %v4982 = vsel %vm767, %v4980, %v4981
      %v4983 = vrot.slane %v4981, 2
      %v4984 = vrot.slane %v4605, 7
      %v4985 = vsel %vm767, %v4983, %v4984
      %v4986 = vrot.slane %v4613, 7
      %v4987 = vrot.slane %v4986, 2
      %v4988 = vrot.slane %v4612, 7
      %v4989 = vsel %vm767, %v4987, %v4988
      %v4990 = vrot.slane %v4988, 2
      %v4991 = vrot.slane %v4614, 7
      %v4992 = vsel %vm767, %v4990, %v4991
      %v4993 = vrot.slane %v4991, 2
      %v4994 = vrot.slane %v4622, 7
      %v4995 = vsel %vm767, %v4993, %v4994
      %v4996 = vrot.slane %v4994, 2
      %v4997 = vrot.slane %v4630, 7
      %v4998 = vsel %vm767, %v4996, %v4997
      %v4999 = vrot.slane %v4997, 2
      %v5000 = vrot.slane %v4629, 7
      %v5001 = vsel %vm767, %v4999, %v5000
      %v5002 = vrot.slane %v5000, 2
      %v5003 = vrot.slane %v4631, 7
      %v5004 = vsel %vm767, %v5002, %v5003
      %v5005 = vrot.slane %v4639, 7
      %v5006 = vrot.slane %v5005, 2
      %v5007 = vrot.slane %v4647, 7
      %v5008 = vsel %vm767, %v5006, %v5007
      %v5009 = vrot.slane %v5007, 2
      %v5010 = vrot.slane %v4646, 7
      %v5011 = vsel %vm767, %v5009, %v5010
      %v5012 = vrot.slane %v5010, 2
      %v5013 = vrot.slane %v4648, 7
      %v5014 = vsel %vm767, %v5012, %v5013
      %v5015 = vrot.slane %v5013, 2
      %v5016 = vrot.slane %v4656, 7
      %v5017 = vsel %vm767, %v5015, %v5016
      %v5018 = vrot.slane %v5016, 2
      %v5019 = vrot.slane %v4664, 7
      %v5020 = vsel %vm767, %v5018, %v5019
      %v5021 = vrot.slane %v5019, 2
      %v5022 = vrot.slane %v4663, 7
      %v5023 = vsel %vm767, %v5021, %v5022
      %v5024 = vrot.slane %v4665, 7
      %v5025 = vrot.slane %v5024, 2
      %v5026 = vrot.slane %v4673, 7
      %v5027 = vsel %vm767, %v5025, %v5026
      %v5028 = vrot.slane %v5026, 2
      %v5029 = vrot.slane %v4681, 7
      %v5030 = vsel %vm767, %v5028, %v5029
      %v5031 = vrot.slane %v5029, 2
      %v5032 = vrot.slane %v4680, 7
      %v5033 = vsel %vm767, %v5031, %v5032
      %v5034 = vrot.slane %v5032, 2
      %v5035 = vrot.slane %v4682, 7
      %v5036 = vsel %vm767, %v5034, %v5035
      %v5037 = vrot.slane %v5035, 2
      %v5038 = vrot.slane %v4690, 7
      %v5039 = vsel %vm767, %v5037, %v5038
      %v5040 = vrot.slane %v5038, 2
      %v5041 = vrot.slane %v4698, 7
      %v5042 = vsel %vm767, %v5040, %v5041
      %v5043 = vrot.slane %v4697, 7
      %v5044 = vrot.slane %v5043, 2
      %v5045 = vrot.slane %v4699, 7
      %v5046 = vsel %vm767, %v5044, %v5045
      %v5047 = vrot.slane %v5045, 2
      %v5048 = vrot.slane %v4707, 7
      %v5049 = vsel %vm767, %v5047, %v5048
      %v5050 = vrot.slane %v5048, 2
      %v5051 = vrot.slane %v4715, 7
      %v5052 = vsel %vm767, %v5050, %v5051
      %v5053 = vrot.slane %v5051, 2
      %v5054 = vrot.slane %v4714, 7
      %v5055 = vsel %vm767, %v5053, %v5054
      %v5056 = vrot.slane %v5054, 2
      %v5057 = vrot.slane %v4716, 7
      %v5058 = vsel %vm767, %v5056, %v5057
      %v5059 = vrot.slane %v5057, 2
      %v5060 = vrot.slane %v4724, 7
      %v5061 = vsel %vm767, %v5059, %v5060
      %v5062 = vrot.slane %v4732, 7
      %v5063 = vrot.slane %v5062, 2
      %v5064 = vrot.slane %v4731, 7
      %v5065 = vsel %vm767, %v5063, %v5064
      %v5066 = vrot.slane %v5064, 2
      %v5067 = vrot.slane %v4733, 7
      %v5068 = vsel %vm767, %v5066, %v5067
      %v5069 = vrot.slane %v5067, 2
      %v5070 = vrot.slane %v4741, 7
      %v5071 = vsel %vm767, %v5069, %v5070
      %v5072 = vrot.slane %v5070, 2
      %v5073 = vrot.slane %v4749, 7
      %v5074 = vsel %vm767, %v5072, %v5073
      %v5075 = vrot.slane %v5073, 2
      %v5076 = vrot.slane %v4748, 7
      %v5077 = vsel %vm767, %v5075, %v5076
      %v5078 = vrot.slane %v5076, 2
      %v5079 = vrot.slane %v4750, 7
      %v5080 = vsel %vm767, %v5078, %v5079
      %v5081 = vrot.slane %v4758, 7
      %v5082 = vrot.slane %v5081, 2
      %v5083 = vrot.slane %v4766, 7
      %v5084 = vsel %vm767, %v5082, %v5083
      %v5085 = vrot.slane %v5083, 2
      %v5086 = vrot.slane %v4765, 7
      %v5087 = vsel %vm767, %v5085, %v5086
      %v5088 = vrot.slane %v5086, 2
      %v5089 = vrot.slane %v4767, 7
      %v5090 = vsel %vm767, %v5088, %v5089
      %v5091 = vrot.slane %v5089, 2
      %v5092 = vrot.slane %v4775, 7
      %v5093 = vsel %vm767, %v5091, %v5092
      %v5094 = vrot.slane %v5092, 2
      %v5095 = vrot.slane %v4783, 7
      %v5096 = vsel %vm767, %v5094, %v5095
      %v5097 = vrot.slane %v5095, 2
      %v5098 = vrot.slane %v4782, 7
      %v5099 = vsel %vm767, %v5097, %v5098
      %v5100 = vrot.slane %v4784, 7
      %v5101 = vrot.slane %v5100, 2
      %v5102 = vrot.slane %v4792, 7
      %v5103 = vsel %vm767, %v5101, %v5102
      %v5104 = vrot.slane %v5102, 2
      %v5105 = vrot.slane %v4800, 7
      %v5106 = vsel %vm767, %v5104, %v5105
      %v5107 = vrot.slane %v5105, 2
      %v5108 = vrot.slane %v4799, 7
      %v5109 = vsel %vm767, %v5107, %v5108
      %v5110 = vrot.slane %v5108, 2
      %v5111 = vrot.slane %v4801, 7
      %v5112 = vsel %vm767, %v5110, %v5111
      %v5113 = vrot.slane %v5111, 2
      %v5114 = vrot.slane %v4809, 7
      %v5115 = vsel %vm767, %v5113, %v5114
      %v5116 = vrot.slane %v5114, 2
      %v5117 = vrot.slane %v4817, 7
      %v5118 = vsel %vm767, %v5116, %v5117
      %v5119 = vrot.slane %v4816, 7
      %v5120 = vrot.slane %v5119, 2
      %v5121 = vrot.slane %v4818, 7
      %v5122 = vsel %vm767, %v5120, %v5121
      %v5123 = vrot.slane %v5121, 2
      %v5124 = vrot.slane %v4826, 7
      %v5125 = vsel %vm767, %v5123, %v5124
      %v5126 = vrot.slane %v5124, 2
      %v5127 = vrot.slane %v4834, 7
      %v5128 = vsel %vm767, %v5126, %v5127
      %v5129 = vrot.slane %v5127, 2
      %v5130 = vrot.slane %v4833, 7
      %v5131 = vsel %vm767, %v5129, %v5130
      %v5132 = vrot.slane %v5130, 2
      %v5133 = vrot.slane %v4835, 7
      %v5134 = vsel %vm767, %v5132, %v5133
      %v5135 = vrot.slane %v5133, 2
      %v5136 = vrot.slane %v4843, 7
      %v5137 = vsel %vm767, %v5135, %v5136
      %v5138 = vrot.slane %v4851, 7
      %v5139 = vrot.slane %v5138, 2
      %v5140 = vrot.slane %v4850, 7
      %v5141 = vsel %vm767, %v5139, %v5140
      %v5142 = vrot.slane %v5140, 2
      %v5143 = vrot.slane %v4852, 7
      %v5144 = vsel %vm767, %v5142, %v5143
      %v5145 = vrot.slane %v5143, 2
      %v5146 = vrot.slane %v4860, 7
      %v5147 = vsel %vm767, %v5145, %v5146
      %v5148 = vrot.slane %v5146, 2
      %v5149 = vrot.slane %v4868, 7
      %v5150 = vsel %vm767, %v5148, %v5149
      %v5151 = vrot.slane %v5149, 2
      %v5152 = vrot.slane %v4867, 7
      %v5153 = vsel %vm767, %v5151, %v5152
      %v5154 = vrot.slane %v5152, 2
      %v5155 = vrot.slane %v4869, 7
      %v5156 = vsel %vm767, %v5154, %v5155
      %v5157 = vrot.slane %v4877, 7
      %v5158 = vrot.slane %v5157, 2
      %v5159 = vrot.slane %v4885, 7
      %v5160 = vsel %vm767, %v5158, %v5159
      %v5161 = vrot.slane %v5159, 2
      %v5162 = vrot.slane %v4884, 7
      %v5163 = vsel %vm767, %v5161, %v5162
      %v5164 = vrot.slane %v5162, 2
      %v5165 = vrot.slane %v4886, 7
      %v5166 = vsel %vm767, %v5164, %v5165
      %v5167 = vrot.slane %v5165, 2
      %v5168 = vrot.slane %v4894, 7
      %v5169 = vsel %vm767, %v5167, %v5168
      %v5170 = vrot.slane %v5168, 2
      %v5171 = vrot.slane %v4902, 7
      %v5172 = vsel %vm767, %v5170, %v5171
      %v5173 = vrot.slane %v5171, 2
      %v5174 = vrot.slane %v4901, 7
      %v5175 = vsel %vm767, %v5173, %v5174
      %v5176 = vrot.slane %v4903, 7
      %v5177 = vrot.slane %v5176, 2
      %v5178 = vrot.slane %v4911, 7
      %v5179 = vsel %vm767, %v5177, %v5178
      %v5180 = vrot.slane %v5178, 2
      %v5181 = vrot.slane %v4919, 7
      %v5182 = vsel %vm767, %v5180, %v5181
      %v5183 = vrot.slane %v5181, 2
      %v5184 = vrot.slane %v4918, 7
      %v5185 = vsel %vm767, %v5183, %v5184
      %v5186 = vrot.slane %v5184, 2
      %v5187 = vrot.slane %v4920, 7
      %v5188 = vsel %vm767, %v5186, %v5187
      %v5189 = vrot.slane %v5187, 2
      %v5190 = vrot.slane %v4927, 7
      %v5191 = vsel %vm767, %v5189, %v5190
      %v5192 = vrot.slane %v5190, 2
      %v5193 = vrot.slane %v4928, 7
      %v5194 = vsel %vm767, %v5192, %v5193
      %v5195 = vcombine.low %v4520, %v4528
      %v5196 = vcombine.low %v4527, %v4529
      %v5198 = vunpack.c.l.s4 1983009808
      %v5199 = vunpack.c.0.s8 %v5198
      %v5200 = vlaneseq
      %v5201 = vshrl.u32 %v5200, 7
      %v5202 = vsub.s32 %v5199, %v5201
      %v5203 = vrot.slane %v5195, %v5202
      %v5205 = vunpack.c.l.s4 1983009808
      %v5206 = vunpack.c.0.s8 %v5205
      %v5207 = vlaneseq
      %v5208 = vshrl.u32 %v5207, 7
      %v5209 = vsub.s32 %v5206, %v5208
      %v5210 = vrot.slane %v5196, %v5209
      %v5211 = vcombine.low %v5203, %v5210
      %v5212 = vcombine.low %v4537, %v4545
      %v5213 = vcombine.low %v4546, %v4554
      %v5215 = vunpack.c.l.s4 1983009808
      %v5216 = vunpack.c.0.s8 %v5215
      %v5217 = vlaneseq
      %v5218 = vshrl.u32 %v5217, 7
      %v5219 = vsub.s32 %v5216, %v5218
      %v5220 = vrot.slane %v5212, %v5219
      %v5222 = vunpack.c.l.s4 1983009808
      %v5223 = vunpack.c.0.s8 %v5222
      %v5224 = vlaneseq
      %v5225 = vshrl.u32 %v5224, 7
      %v5226 = vsub.s32 %v5223, %v5225
      %v5227 = vrot.slane %v5213, %v5226
      %v5228 = vcombine.low %v5220, %v5227
      %v5229 = vcombine.low %v4562, %v4561
      %v5230 = vcombine.low %v4563, %v4571
      %v5232 = vunpack.c.l.s4 1983009808
      %v5233 = vunpack.c.0.s8 %v5232
      %v5234 = vlaneseq
      %v5235 = vshrl.u32 %v5234, 7
      %v5236 = vsub.s32 %v5233, %v5235
      %v5237 = vrot.slane %v5229, %v5236
      %v5239 = vunpack.c.l.s4 1983009808
      %v5240 = vunpack.c.0.s8 %v5239
      %v5241 = vlaneseq
      %v5242 = vshrl.u32 %v5241, 7
      %v5243 = vsub.s32 %v5240, %v5242
      %v5244 = vrot.slane %v5230, %v5243
      %v5245 = vcombine.low %v5237, %v5244
      %v5246 = vcombine.low %v4578, %v4580
      %v5247 = vcombine.low %v4588, %v4596
      %v5249 = vunpack.c.l.s4 1983009808
      %v5250 = vunpack.c.0.s8 %v5249
      %v5251 = vlaneseq
      %v5252 = vshrl.u32 %v5251, 7
      %v5253 = vsub.s32 %v5250, %v5252
      %v5254 = vrot.slane %v5246, %v5253
      %v5256 = vunpack.c.l.s4 1983009808
      %v5257 = vunpack.c.0.s8 %v5256
      %v5258 = vlaneseq
      %v5259 = vshrl.u32 %v5258, 7
      %v5260 = vsub.s32 %v5257, %v5259
      %v5261 = vrot.slane %v5247, %v5260
      %v5262 = vcombine.low %v5254, %v5261
      %v5263 = vcombine.low %v4595, %v4597
      %v5264 = vcombine.low %v4613, %v4612
      %v5266 = vunpack.c.l.s4 1983009808
      %v5267 = vunpack.c.0.s8 %v5266
      %v5268 = vlaneseq
      %v5269 = vshrl.u32 %v5268, 7
      %v5270 = vsub.s32 %v5267, %v5269
      %v5271 = vrot.slane %v5263, %v5270
      %v5273 = vunpack.c.l.s4 1983009808
      %v5274 = vunpack.c.0.s8 %v5273
      %v5275 = vlaneseq
      %v5276 = vshrl.u32 %v5275, 7
      %v5277 = vsub.s32 %v5274, %v5276
      %v5278 = vrot.slane %v5264, %v5277
      %v5279 = vcombine.low %v5271, %v5278
      %v5280 = vcombine.low %v4614, %v4622
      %v5281 = vcombine.low %v4630, %v4629
      %v5283 = vunpack.c.l.s4 1983009808
      %v5284 = vunpack.c.0.s8 %v5283
      %v5285 = vlaneseq
      %v5286 = vshrl.u32 %v5285, 7
      %v5287 = vsub.s32 %v5284, %v5286
      %v5288 = vrot.slane %v5280, %v5287
      %v5290 = vunpack.c.l.s4 1983009808
      %v5291 = vunpack.c.0.s8 %v5290
      %v5292 = vlaneseq
      %v5293 = vshrl.u32 %v5292, 7
      %v5294 = vsub.s32 %v5291, %v5293
      %v5295 = vrot.slane %v5281, %v5294
      %v5296 = vcombine.low %v5288, %v5295
      %v5297 = vcombine.low %v4639, %v4647
      %v5298 = vcombine.low %v4646, %v4648
      %v5300 = vunpack.c.l.s4 1983009808
      %v5301 = vunpack.c.0.s8 %v5300
      %v5302 = vlaneseq
      %v5303 = vshrl.u32 %v5302, 7
      %v5304 = vsub.s32 %v5301, %v5303
      %v5305 = vrot.slane %v5297, %v5304
      %v5307 = vunpack.c.l.s4 1983009808
      %v5308 = vunpack.c.0.s8 %v5307
      %v5309 = vlaneseq
      %v5310 = vshrl.u32 %v5309, 7
      %v5311 = vsub.s32 %v5308, %v5310
      %v5312 = vrot.slane %v5298, %v5311
      %v5313 = vcombine.low %v5305, %v5312
      %v5314 = vcombine.low %v4656, %v4664
      %v5315 = vcombine.low %v4665, %v4673
      %v5317 = vunpack.c.l.s4 1983009808
      %v5318 = vunpack.c.0.s8 %v5317
      %v5319 = vlaneseq
      %v5320 = vshrl.u32 %v5319, 7
      %v5321 = vsub.s32 %v5318, %v5320
      %v5322 = vrot.slane %v5314, %v5321
      %v5324 = vunpack.c.l.s4 1983009808
      %v5325 = vunpack.c.0.s8 %v5324
      %v5326 = vlaneseq
      %v5327 = vshrl.u32 %v5326, 7
      %v5328 = vsub.s32 %v5325, %v5327
      %v5329 = vrot.slane %v5315, %v5328
      %v5330 = vcombine.low %v5322, %v5329
      %v5331 = vcombine.low %v4681, %v4680
      %v5332 = vcombine.low %v4682, %v4690
      %v5334 = vunpack.c.l.s4 1983009808
      %v5335 = vunpack.c.0.s8 %v5334
      %v5336 = vlaneseq
      %v5337 = vshrl.u32 %v5336, 7
      %v5338 = vsub.s32 %v5335, %v5337
      %v5339 = vrot.slane %v5331, %v5338
      %v5341 = vunpack.c.l.s4 1983009808
      %v5342 = vunpack.c.0.s8 %v5341
      %v5343 = vlaneseq
      %v5344 = vshrl.u32 %v5343, 7
      %v5345 = vsub.s32 %v5342, %v5344
      %v5346 = vrot.slane %v5332, %v5345
      %v5347 = vcombine.low %v5339, %v5346
      %v5348 = vcombine.low %v4697, %v4699
      %v5349 = vcombine.low %v4707, %v4715
      %v5351 = vunpack.c.l.s4 1983009808
      %v5352 = vunpack.c.0.s8 %v5351
      %v5353 = vlaneseq
      %v5354 = vshrl.u32 %v5353, 7
      %v5355 = vsub.s32 %v5352, %v5354
      %v5356 = vrot.slane %v5348, %v5355
      %v5358 = vunpack.c.l.s4 1983009808
      %v5359 = vunpack.c.0.s8 %v5358
      %v5360 = vlaneseq
      %v5361 = vshrl.u32 %v5360, 7
      %v5362 = vsub.s32 %v5359, %v5361
      %v5363 = vrot.slane %v5349, %v5362
      %v5364 = vcombine.low %v5356, %v5363
      %v5365 = vcombine.low %v4714, %v4716
      %v5366 = vcombine.low %v4732, %v4731
      %v5368 = vunpack.c.l.s4 1983009808
      %v5369 = vunpack.c.0.s8 %v5368
      %v5370 = vlaneseq
      %v5371 = vshrl.u32 %v5370, 7
      %v5372 = vsub.s32 %v5369, %v5371
      %v5373 = vrot.slane %v5365, %v5372
      %v5375 = vunpack.c.l.s4 1983009808
      %v5376 = vunpack.c.0.s8 %v5375
      %v5377 = vlaneseq
      %v5378 = vshrl.u32 %v5377, 7
      %v5379 = vsub.s32 %v5376, %v5378
      %v5380 = vrot.slane %v5366, %v5379
      %v5381 = vcombine.low %v5373, %v5380
      %v5382 = vcombine.low %v4733, %v4741
      %v5383 = vcombine.low %v4749, %v4748
      %v5385 = vunpack.c.l.s4 1983009808
      %v5386 = vunpack.c.0.s8 %v5385
      %v5387 = vlaneseq
      %v5388 = vshrl.u32 %v5387, 7
      %v5389 = vsub.s32 %v5386, %v5388
      %v5390 = vrot.slane %v5382, %v5389
      %v5392 = vunpack.c.l.s4 1983009808
      %v5393 = vunpack.c.0.s8 %v5392
      %v5394 = vlaneseq
      %v5395 = vshrl.u32 %v5394, 7
      %v5396 = vsub.s32 %v5393, %v5395
      %v5397 = vrot.slane %v5383, %v5396
      %v5398 = vcombine.low %v5390, %v5397
      %v5399 = vcombine.low %v4758, %v4766
      %v5400 = vcombine.low %v4765, %v4767
      %v5402 = vunpack.c.l.s4 1983009808
      %v5403 = vunpack.c.0.s8 %v5402
      %v5404 = vlaneseq
      %v5405 = vshrl.u32 %v5404, 7
      %v5406 = vsub.s32 %v5403, %v5405
      %v5407 = vrot.slane %v5399, %v5406
      %v5409 = vunpack.c.l.s4 1983009808
      %v5410 = vunpack.c.0.s8 %v5409
      %v5411 = vlaneseq
      %v5412 = vshrl.u32 %v5411, 7
      %v5413 = vsub.s32 %v5410, %v5412
      %v5414 = vrot.slane %v5400, %v5413
      %v5415 = vcombine.low %v5407, %v5414
      %v5416 = vcombine.low %v4775, %v4783
      %v5417 = vcombine.low %v4784, %v4792
      %v5419 = vunpack.c.l.s4 1983009808
      %v5420 = vunpack.c.0.s8 %v5419
      %v5421 = vlaneseq
      %v5422 = vshrl.u32 %v5421, 7
      %v5423 = vsub.s32 %v5420, %v5422
      %v5424 = vrot.slane %v5416, %v5423
      %v5426 = vunpack.c.l.s4 1983009808
      %v5427 = vunpack.c.0.s8 %v5426
      %v5428 = vlaneseq
      %v5429 = vshrl.u32 %v5428, 7
      %v5430 = vsub.s32 %v5427, %v5429
      %v5431 = vrot.slane %v5417, %v5430
      %v5432 = vcombine.low %v5424, %v5431
      %v5433 = vcombine.low %v4800, %v4799
      %v5434 = vcombine.low %v4801, %v4809
      %v5436 = vunpack.c.l.s4 1983009808
      %v5437 = vunpack.c.0.s8 %v5436
      %v5438 = vlaneseq
      %v5439 = vshrl.u32 %v5438, 7
      %v5440 = vsub.s32 %v5437, %v5439
      %v5441 = vrot.slane %v5433, %v5440
      %v5443 = vunpack.c.l.s4 1983009808
      %v5444 = vunpack.c.0.s8 %v5443
      %v5445 = vlaneseq
      %v5446 = vshrl.u32 %v5445, 7
      %v5447 = vsub.s32 %v5444, %v5446
      %v5448 = vrot.slane %v5434, %v5447
      %v5449 = vcombine.low %v5441, %v5448
      %v5450 = vcombine.low %v4816, %v4818
      %v5451 = vcombine.low %v4826, %v4834
      %v5453 = vunpack.c.l.s4 1983009808
      %v5454 = vunpack.c.0.s8 %v5453
      %v5455 = vlaneseq
      %v5456 = vshrl.u32 %v5455, 7
      %v5457 = vsub.s32 %v5454, %v5456
      %v5458 = vrot.slane %v5450, %v5457
      %v5460 = vunpack.c.l.s4 1983009808
      %v5461 = vunpack.c.0.s8 %v5460
      %v5462 = vlaneseq
      %v5463 = vshrl.u32 %v5462, 7
      %v5464 = vsub.s32 %v5461, %v5463
      %v5465 = vrot.slane %v5451, %v5464
      %v5466 = vcombine.low %v5458, %v5465
      %v5467 = vcombine.low %v4833, %v4835
      %v5468 = vcombine.low %v4851, %v4850
      %v5470 = vunpack.c.l.s4 1983009808
      %v5471 = vunpack.c.0.s8 %v5470
      %v5472 = vlaneseq
      %v5473 = vshrl.u32 %v5472, 7
      %v5474 = vsub.s32 %v5471, %v5473
      %v5475 = vrot.slane %v5467, %v5474
      %v5477 = vunpack.c.l.s4 1983009808
      %v5478 = vunpack.c.0.s8 %v5477
      %v5479 = vlaneseq
      %v5480 = vshrl.u32 %v5479, 7
      %v5481 = vsub.s32 %v5478, %v5480
      %v5482 = vrot.slane %v5468, %v5481
      %v5483 = vcombine.low %v5475, %v5482
      %v5484 = vcombine.low %v4852, %v4860
      %v5485 = vcombine.low %v4868, %v4867
      %v5487 = vunpack.c.l.s4 1983009808
      %v5488 = vunpack.c.0.s8 %v5487
      %v5489 = vlaneseq
      %v5490 = vshrl.u32 %v5489, 7
      %v5491 = vsub.s32 %v5488, %v5490
      %v5492 = vrot.slane %v5484, %v5491
      %v5494 = vunpack.c.l.s4 1983009808
      %v5495 = vunpack.c.0.s8 %v5494
      %v5496 = vlaneseq
      %v5497 = vshrl.u32 %v5496, 7
      %v5498 = vsub.s32 %v5495, %v5497
      %v5499 = vrot.slane %v5485, %v5498
      %v5500 = vcombine.low %v5492, %v5499
      %v5519 = vcombine.low %v4932, %v4935
      %v5520 = vcombine.low %v4938, %v4941
      %v5522 = vunpack.c.l.s4 1983009808
      %v5523 = vunpack.c.0.s8 %v5522
      %v5524 = vlaneseq
      %v5525 = vshrl.u32 %v5524, 7
      %v5526 = vsub.s32 %v5523, %v5525
      %v5527 = vrot.slane %v5519, %v5526
      %v5529 = vunpack.c.l.s4 1983009808
      %v5530 = vunpack.c.0.s8 %v5529
      %v5531 = vlaneseq
      %v5532 = vshrl.u32 %v5531, 7
      %v5533 = vsub.s32 %v5530, %v5532
      %v5534 = vrot.slane %v5520, %v5533
      %v5535 = vcombine.low %v5527, %v5534
      %v5536 = vcombine.low %v4944, %v4947
      %v5537 = vcombine.low %v4951, %v4954
      %v5539 = vunpack.c.l.s4 1983009808
      %v5540 = vunpack.c.0.s8 %v5539
      %v5541 = vlaneseq
      %v5542 = vshrl.u32 %v5541, 7
      %v5543 = vsub.s32 %v5540, %v5542
      %v5544 = vrot.slane %v5536, %v5543
      %v5546 = vunpack.c.l.s4 1983009808
      %v5547 = vunpack.c.0.s8 %v5546
      %v5548 = vlaneseq
      %v5549 = vshrl.u32 %v5548, 7
      %v5550 = vsub.s32 %v5547, %v5549
      %v5551 = vrot.slane %v5537, %v5550
      %v5552 = vcombine.low %v5544, %v5551
      %v5553 = vcombine.low %v4957, %v4960
      %v5554 = vcombine.low %v4963, %v4966
      %v5556 = vunpack.c.l.s4 1983009808
      %v5557 = vunpack.c.0.s8 %v5556
      %v5558 = vlaneseq
      %v5559 = vshrl.u32 %v5558, 7
      %v5560 = vsub.s32 %v5557, %v5559
      %v5561 = vrot.slane %v5553, %v5560
      %v5563 = vunpack.c.l.s4 1983009808
      %v5564 = vunpack.c.0.s8 %v5563
      %v5565 = vlaneseq
      %v5566 = vshrl.u32 %v5565, 7
      %v5567 = vsub.s32 %v5564, %v5566
      %v5568 = vrot.slane %v5554, %v5567
      %v5569 = vcombine.low %v5561, %v5568
      %v5570 = vcombine.low %v4970, %v4973
      %v5571 = vcombine.low %v4976, %v4979
      %v5573 = vunpack.c.l.s4 1983009808
      %v5574 = vunpack.c.0.s8 %v5573
      %v5575 = vlaneseq
      %v5576 = vshrl.u32 %v5575, 7
      %v5577 = vsub.s32 %v5574, %v5576
      %v5578 = vrot.slane %v5570, %v5577
      %v5580 = vunpack.c.l.s4 1983009808
      %v5581 = vunpack.c.0.s8 %v5580
      %v5582 = vlaneseq
      %v5583 = vshrl.u32 %v5582, 7
      %v5584 = vsub.s32 %v5581, %v5583
      %v5585 = vrot.slane %v5571, %v5584
      %v5586 = vcombine.low %v5578, %v5585
      %v5587 = vcombine.low %v4982, %v4985
      %v5588 = vcombine.low %v4989, %v4992
      %v5590 = vunpack.c.l.s4 1983009808
      %v5591 = vunpack.c.0.s8 %v5590
      %v5592 = vlaneseq
      %v5593 = vshrl.u32 %v5592, 7
      %v5594 = vsub.s32 %v5591, %v5593
      %v5595 = vrot.slane %v5587, %v5594
      %v5597 = vunpack.c.l.s4 1983009808
      %v5598 = vunpack.c.0.s8 %v5597
      %v5599 = vlaneseq
      %v5600 = vshrl.u32 %v5599, 7
      %v5601 = vsub.s32 %v5598, %v5600
      %v5602 = vrot.slane %v5588, %v5601
      %v5603 = vcombine.low %v5595, %v5602
      %v5604 = vcombine.low %v4995, %v4998
      %v5605 = vcombine.low %v5001, %v5004
      %v5607 = vunpack.c.l.s4 1983009808
      %v5608 = vunpack.c.0.s8 %v5607
      %v5609 = vlaneseq
      %v5610 = vshrl.u32 %v5609, 7
      %v5611 = vsub.s32 %v5608, %v5610
      %v5612 = vrot.slane %v5604, %v5611
      %v5614 = vunpack.c.l.s4 1983009808
      %v5615 = vunpack.c.0.s8 %v5614
      %v5616 = vlaneseq
      %v5617 = vshrl.u32 %v5616, 7
      %v5618 = vsub.s32 %v5615, %v5617
      %v5619 = vrot.slane %v5605, %v5618
      %v5620 = vcombine.low %v5612, %v5619
      %v5621 = vcombine.low %v5008, %v5011
      %v5622 = vcombine.low %v5014, %v5017
      %v5624 = vunpack.c.l.s4 1983009808
      %v5625 = vunpack.c.0.s8 %v5624
      %v5626 = vlaneseq
      %v5627 = vshrl.u32 %v5626, 7
      %v5628 = vsub.s32 %v5625, %v5627
      %v5629 = vrot.slane %v5621, %v5628
      %v5631 = vunpack.c.l.s4 1983009808
      %v5632 = vunpack.c.0.s8 %v5631
      %v5633 = vlaneseq
      %v5634 = vshrl.u32 %v5633, 7
      %v5635 = vsub.s32 %v5632, %v5634
      %v5636 = vrot.slane %v5622, %v5635
      %v5637 = vcombine.low %v5629, %v5636
      %v5638 = vcombine.low %v5020, %v5023
      %v5639 = vcombine.low %v5027, %v5030
      %v5641 = vunpack.c.l.s4 1983009808
      %v5642 = vunpack.c.0.s8 %v5641
      %v5643 = vlaneseq
      %v5644 = vshrl.u32 %v5643, 7
      %v5645 = vsub.s32 %v5642, %v5644
      %v5646 = vrot.slane %v5638, %v5645
      %v5648 = vunpack.c.l.s4 1983009808
      %v5649 = vunpack.c.0.s8 %v5648
      %v5650 = vlaneseq
      %v5651 = vshrl.u32 %v5650, 7
      %v5652 = vsub.s32 %v5649, %v5651
      %v5653 = vrot.slane %v5639, %v5652
      %v5654 = vcombine.low %v5646, %v5653
      %v5655 = vcombine.low %v5033, %v5036
      %v5656 = vcombine.low %v5039, %v5042
      %v5658 = vunpack.c.l.s4 1983009808
      %v5659 = vunpack.c.0.s8 %v5658
      %v5660 = vlaneseq
      %v5661 = vshrl.u32 %v5660, 7
      %v5662 = vsub.s32 %v5659, %v5661
      %v5663 = vrot.slane %v5655, %v5662
      %v5665 = vunpack.c.l.s4 1983009808
      %v5666 = vunpack.c.0.s8 %v5665
      %v5667 = vlaneseq
      %v5668 = vshrl.u32 %v5667, 7
      %v5669 = vsub.s32 %v5666, %v5668
      %v5670 = vrot.slane %v5656, %v5669
      %v5671 = vcombine.low %v5663, %v5670
      %v5672 = vcombine.low %v5046, %v5049
      %v5673 = vcombine.low %v5052, %v5055
      %v5675 = vunpack.c.l.s4 1983009808
      %v5676 = vunpack.c.0.s8 %v5675
      %v5677 = vlaneseq
      %v5678 = vshrl.u32 %v5677, 7
      %v5679 = vsub.s32 %v5676, %v5678
      %v5680 = vrot.slane %v5672, %v5679
      %v5682 = vunpack.c.l.s4 1983009808
      %v5683 = vunpack.c.0.s8 %v5682
      %v5684 = vlaneseq
      %v5685 = vshrl.u32 %v5684, 7
      %v5686 = vsub.s32 %v5683, %v5685
      %v5687 = vrot.slane %v5673, %v5686
      %v5688 = vcombine.low %v5680, %v5687
      %v5689 = vcombine.low %v5058, %v5061
      %v5690 = vcombine.low %v5065, %v5068
      %v5692 = vunpack.c.l.s4 1983009808
      %v5693 = vunpack.c.0.s8 %v5692
      %v5694 = vlaneseq
      %v5695 = vshrl.u32 %v5694, 7
      %v5696 = vsub.s32 %v5693, %v5695
      %v5697 = vrot.slane %v5689, %v5696
      %v5699 = vunpack.c.l.s4 1983009808
      %v5700 = vunpack.c.0.s8 %v5699
      %v5701 = vlaneseq
      %v5702 = vshrl.u32 %v5701, 7
      %v5703 = vsub.s32 %v5700, %v5702
      %v5704 = vrot.slane %v5690, %v5703
      %v5705 = vcombine.low %v5697, %v5704
      %v5706 = vcombine.low %v5071, %v5074
      %v5707 = vcombine.low %v5077, %v5080
      %v5709 = vunpack.c.l.s4 1983009808
      %v5710 = vunpack.c.0.s8 %v5709
      %v5711 = vlaneseq
      %v5712 = vshrl.u32 %v5711, 7
      %v5713 = vsub.s32 %v5710, %v5712
      %v5714 = vrot.slane %v5706, %v5713
      %v5716 = vunpack.c.l.s4 1983009808
      %v5717 = vunpack.c.0.s8 %v5716
      %v5718 = vlaneseq
      %v5719 = vshrl.u32 %v5718, 7
      %v5720 = vsub.s32 %v5717, %v5719
      %v5721 = vrot.slane %v5707, %v5720
      %v5722 = vcombine.low %v5714, %v5721
      %v5723 = vcombine.low %v5084, %v5087
      %v5724 = vcombine.low %v5090, %v5093
      %v5726 = vunpack.c.l.s4 1983009808
      %v5727 = vunpack.c.0.s8 %v5726
      %v5728 = vlaneseq
      %v5729 = vshrl.u32 %v5728, 7
      %v5730 = vsub.s32 %v5727, %v5729
      %v5731 = vrot.slane %v5723, %v5730
      %v5733 = vunpack.c.l.s4 1983009808
      %v5734 = vunpack.c.0.s8 %v5733
      %v5735 = vlaneseq
      %v5736 = vshrl.u32 %v5735, 7
      %v5737 = vsub.s32 %v5734, %v5736
      %v5738 = vrot.slane %v5724, %v5737
      %v5739 = vcombine.low %v5731, %v5738
      %v5740 = vcombine.low %v5096, %v5099
      %v5741 = vcombine.low %v5103, %v5106
      %v5743 = vunpack.c.l.s4 1983009808
      %v5744 = vunpack.c.0.s8 %v5743
      %v5745 = vlaneseq
      %v5746 = vshrl.u32 %v5745, 7
      %v5747 = vsub.s32 %v5744, %v5746
      %v5748 = vrot.slane %v5740, %v5747
      %v5750 = vunpack.c.l.s4 1983009808
      %v5751 = vunpack.c.0.s8 %v5750
      %v5752 = vlaneseq
      %v5753 = vshrl.u32 %v5752, 7
      %v5754 = vsub.s32 %v5751, %v5753
      %v5755 = vrot.slane %v5741, %v5754
      %v5756 = vcombine.low %v5748, %v5755
      %v5757 = vcombine.low %v5109, %v5112
      %v5758 = vcombine.low %v5115, %v5118
      %v5760 = vunpack.c.l.s4 1983009808
      %v5761 = vunpack.c.0.s8 %v5760
      %v5762 = vlaneseq
      %v5763 = vshrl.u32 %v5762, 7
      %v5764 = vsub.s32 %v5761, %v5763
      %v5765 = vrot.slane %v5757, %v5764
      %v5767 = vunpack.c.l.s4 1983009808
      %v5768 = vunpack.c.0.s8 %v5767
      %v5769 = vlaneseq
      %v5770 = vshrl.u32 %v5769, 7
      %v5771 = vsub.s32 %v5768, %v5770
      %v5772 = vrot.slane %v5758, %v5771
      %v5773 = vcombine.low %v5765, %v5772
      %v5774 = vcombine.low %v5122, %v5125
      %v5775 = vcombine.low %v5128, %v5131
      %v5777 = vunpack.c.l.s4 1983009808
      %v5778 = vunpack.c.0.s8 %v5777
      %v5779 = vlaneseq
      %v5780 = vshrl.u32 %v5779, 7
      %v5781 = vsub.s32 %v5778, %v5780
      %v5782 = vrot.slane %v5774, %v5781
      %v5784 = vunpack.c.l.s4 1983009808
      %v5785 = vunpack.c.0.s8 %v5784
      %v5786 = vlaneseq
      %v5787 = vshrl.u32 %v5786, 7
      %v5788 = vsub.s32 %v5785, %v5787
      %v5789 = vrot.slane %v5775, %v5788
      %v5790 = vcombine.low %v5782, %v5789
      %v5791 = vcombine.low %v5134, %v5137
      %v5792 = vcombine.low %v5141, %v5144
      %v5794 = vunpack.c.l.s4 1983009808
      %v5795 = vunpack.c.0.s8 %v5794
      %v5796 = vlaneseq
      %v5797 = vshrl.u32 %v5796, 7
      %v5798 = vsub.s32 %v5795, %v5797
      %v5799 = vrot.slane %v5791, %v5798
      %v5801 = vunpack.c.l.s4 1983009808
      %v5802 = vunpack.c.0.s8 %v5801
      %v5803 = vlaneseq
      %v5804 = vshrl.u32 %v5803, 7
      %v5805 = vsub.s32 %v5802, %v5804
      %v5806 = vrot.slane %v5792, %v5805
      %v5807 = vcombine.low %v5799, %v5806
      %v5808 = vcombine.low %v5147, %v5150
      %v5809 = vcombine.low %v5153, %v5156
      %v5811 = vunpack.c.l.s4 1983009808
      %v5812 = vunpack.c.0.s8 %v5811
      %v5813 = vlaneseq
      %v5814 = vshrl.u32 %v5813, 7
      %v5815 = vsub.s32 %v5812, %v5814
      %v5816 = vrot.slane %v5808, %v5815
      %v5818 = vunpack.c.l.s4 1983009808
      %v5819 = vunpack.c.0.s8 %v5818
      %v5820 = vlaneseq
      %v5821 = vshrl.u32 %v5820, 7
      %v5822 = vsub.s32 %v5819, %v5821
      %v5823 = vrot.slane %v5809, %v5822
      %v5824 = vcombine.low %v5816, %v5823
      %5825 = vrot.lane.b32.xlu0 %v5535, 32
      %v5826 = vpop.permute.xlu0 %5825
      %5827 = vrot.lane.b32.xlu0 %v5552, 32
      %v5828 = vpop.permute.xlu0 %5827
      %5829 = vrot.lane.b32.xlu0 %v5569, 32
      %v5830 = vpop.permute.xlu0 %5829
      %5831 = vrot.lane.b32.xlu0 %v5586, 32
      %v5832 = vpop.permute.xlu0 %5831
      %5833 = vrot.lane.b32.xlu0 %v5603, 32
      %v5834 = vpop.permute.xlu0 %5833
      %5835 = vrot.lane.b32.xlu0 %v5620, 32
      %v5836 = vpop.permute.xlu0 %5835
      %5837 = vrot.lane.b32.xlu0 %v5637, 32
      %v5838 = vpop.permute.xlu0 %5837
      %5839 = vrot.lane.b32.xlu0 %v5654, 32
      %v5840 = vpop.permute.xlu0 %5839
      %5841 = vrot.lane.b32.xlu0 %v5671, 32
      %v5842 = vpop.permute.xlu0 %5841
      %5843 = vrot.lane.b32.xlu0 %v5688, 32
      %v5844 = vpop.permute.xlu0 %5843
      %5845 = vrot.lane.b32.xlu0 %v5705, 32
      %v5846 = vpop.permute.xlu0 %5845
      %5847 = vrot.lane.b32.xlu0 %v5722, 32
      %v5848 = vpop.permute.xlu0 %5847
      %5849 = vrot.lane.b32.xlu0 %v5739, 32
      %v5850 = vpop.permute.xlu0 %5849
      %5851 = vrot.lane.b32.xlu0 %v5756, 32
      %v5852 = vpop.permute.xlu0 %5851
      %5853 = vrot.lane.b32.xlu0 %v5773, 32
      %v5854 = vpop.permute.xlu0 %5853
      %5855 = vrot.lane.b32.xlu0 %v5790, 32
      %v5856 = vpop.permute.xlu0 %5855
      %5857 = vrot.lane.b32.xlu0 %v5807, 32
      %v5858 = vpop.permute.xlu0 %5857
      %5859 = vrot.lane.b32.xlu0 %v5824, 32
      %v5860 = vpop.permute.xlu0 %5859
      %v5879 = vcombine.low %v4528, %v4527
      %v5880 = vcombine.low %v4529, %v4537
      %v5882 = vunpack.c.l.s4 1983009808
      %v5883 = vunpack.c.0.s8 %v5882
      %v5884 = vlaneseq
      %v5885 = vshrl.u32 %v5884, 7
      %v5886 = vsub.s32 %v5883, %v5885
      %v5887 = vrot.slane %v5879, %v5886
      %v5889 = vunpack.c.l.s4 1983009808
      %v5890 = vunpack.c.0.s8 %v5889
      %v5891 = vlaneseq
      %v5892 = vshrl.u32 %v5891, 7
      %v5893 = vsub.s32 %v5890, %v5892
      %v5894 = vrot.slane %v5880, %v5893
      %v5895 = vcombine.low %v5887, %v5894
      %v5896 = vcombine.low %v4545, %v4544
      %v5897 = vcombine.low %v4554, %v4562
      %v5899 = vunpack.c.l.s4 1983009808
      %v5900 = vunpack.c.0.s8 %v5899
      %v5901 = vlaneseq
      %v5902 = vshrl.u32 %v5901, 7
      %v5903 = vsub.s32 %v5900, %v5902
      %v5904 = vrot.slane %v5896, %v5903
      %v5906 = vunpack.c.l.s4 1983009808
      %v5907 = vunpack.c.0.s8 %v5906
      %v5908 = vlaneseq
      %v5909 = vshrl.u32 %v5908, 7
      %v5910 = vsub.s32 %v5907, %v5909
      %v5911 = vrot.slane %v5897, %v5910
      %v5912 = vcombine.low %v5904, %v5911
      %v5913 = vcombine.low %v4561, %v4563
      %v5914 = vcombine.low %v4571, %v4579
      %v5916 = vunpack.c.l.s4 1983009808
      %v5917 = vunpack.c.0.s8 %v5916
      %v5918 = vlaneseq
      %v5919 = vshrl.u32 %v5918, 7
      %v5920 = vsub.s32 %v5917, %v5919
      %v5921 = vrot.slane %v5913, %v5920
      %v5923 = vunpack.c.l.s4 1983009808
      %v5924 = vunpack.c.0.s8 %v5923
      %v5925 = vlaneseq
      %v5926 = vshrl.u32 %v5925, 7
      %v5927 = vsub.s32 %v5924, %v5926
      %v5928 = vrot.slane %v5914, %v5927
      %v5929 = vcombine.low %v5921, %v5928
      %v5930 = vcombine.low %v4580, %v4588
      %v5931 = vcombine.low %v4596, %v4595
      %v5933 = vunpack.c.l.s4 1983009808
      %v5934 = vunpack.c.0.s8 %v5933
      %v5935 = vlaneseq
      %v5936 = vshrl.u32 %v5935, 7
      %v5937 = vsub.s32 %v5934, %v5936
      %v5938 = vrot.slane %v5930, %v5937
      %v5940 = vunpack.c.l.s4 1983009808
      %v5941 = vunpack.c.0.s8 %v5940
      %v5942 = vlaneseq
      %v5943 = vshrl.u32 %v5942, 7
      %v5944 = vsub.s32 %v5941, %v5943
      %v5945 = vrot.slane %v5931, %v5944
      %v5946 = vcombine.low %v5938, %v5945
      %v5947 = vcombine.low %v4597, %v4605
      %v5948 = vcombine.low %v4612, %v4614
      %v5950 = vunpack.c.l.s4 1983009808
      %v5951 = vunpack.c.0.s8 %v5950
      %v5952 = vlaneseq
      %v5953 = vshrl.u32 %v5952, 7
      %v5954 = vsub.s32 %v5951, %v5953
      %v5955 = vrot.slane %v5947, %v5954
      %v5957 = vunpack.c.l.s4 1983009808
      %v5958 = vunpack.c.0.s8 %v5957
      %v5959 = vlaneseq
      %v5960 = vshrl.u32 %v5959, 7
      %v5961 = vsub.s32 %v5958, %v5960
      %v5962 = vrot.slane %v5948, %v5961
      %v5963 = vcombine.low %v5955, %v5962
      %v5964 = vcombine.low %v4622, %v4630
      %v5965 = vcombine.low %v4629, %v4631
      %v5967 = vunpack.c.l.s4 1983009808
      %v5968 = vunpack.c.0.s8 %v5967
      %v5969 = vlaneseq
      %v5970 = vshrl.u32 %v5969, 7
      %v5971 = vsub.s32 %v5968, %v5970
      %v5972 = vrot.slane %v5964, %v5971
      %v5974 = vunpack.c.l.s4 1983009808
      %v5975 = vunpack.c.0.s8 %v5974
      %v5976 = vlaneseq
      %v5977 = vshrl.u32 %v5976, 7
      %v5978 = vsub.s32 %v5975, %v5977
      %v5979 = vrot.slane %v5965, %v5978
      %v5980 = vcombine.low %v5972, %v5979
      %v5981 = vcombine.low %v4647, %v4646
      %v5982 = vcombine.low %v4648, %v4656
      %v5984 = vunpack.c.l.s4 1983009808
      %v5985 = vunpack.c.0.s8 %v5984
      %v5986 = vlaneseq
      %v5987 = vshrl.u32 %v5986, 7
      %v5988 = vsub.s32 %v5985, %v5987
      %v5989 = vrot.slane %v5981, %v5988
      %v5991 = vunpack.c.l.s4 1983009808
      %v5992 = vunpack.c.0.s8 %v5991
      %v5993 = vlaneseq
      %v5994 = vshrl.u32 %v5993, 7
      %v5995 = vsub.s32 %v5992, %v5994
      %v5996 = vrot.slane %v5982, %v5995
      %v5997 = vcombine.low %v5989, %v5996
      %v5998 = vcombine.low %v4664, %v4663
      %v5999 = vcombine.low %v4673, %v4681
      %v6001 = vunpack.c.l.s4 1983009808
      %v6002 = vunpack.c.0.s8 %v6001
      %v6003 = vlaneseq
      %v6004 = vshrl.u32 %v6003, 7
      %v6005 = vsub.s32 %v6002, %v6004
      %v6006 = vrot.slane %v5998, %v6005
      %v6008 = vunpack.c.l.s4 1983009808
      %v6009 = vunpack.c.0.s8 %v6008
      %v6010 = vlaneseq
      %v6011 = vshrl.u32 %v6010, 7
      %v6012 = vsub.s32 %v6009, %v6011
      %v6013 = vrot.slane %v5999, %v6012
      %v6014 = vcombine.low %v6006, %v6013
      %v6015 = vcombine.low %v4680, %v4682
      %v6016 = vcombine.low %v4690, %v4698
      %v6018 = vunpack.c.l.s4 1983009808
      %v6019 = vunpack.c.0.s8 %v6018
      %v6020 = vlaneseq
      %v6021 = vshrl.u32 %v6020, 7
      %v6022 = vsub.s32 %v6019, %v6021
      %v6023 = vrot.slane %v6015, %v6022
      %v6025 = vunpack.c.l.s4 1983009808
      %v6026 = vunpack.c.0.s8 %v6025
      %v6027 = vlaneseq
      %v6028 = vshrl.u32 %v6027, 7
      %v6029 = vsub.s32 %v6026, %v6028
      %v6030 = vrot.slane %v6016, %v6029
      %v6031 = vcombine.low %v6023, %v6030
      %v6032 = vcombine.low %v4699, %v4707
      %v6033 = vcombine.low %v4715, %v4714
      %v6035 = vunpack.c.l.s4 1983009808
      %v6036 = vunpack.c.0.s8 %v6035
      %v6037 = vlaneseq
      %v6038 = vshrl.u32 %v6037, 7
      %v6039 = vsub.s32 %v6036, %v6038
      %v6040 = vrot.slane %v6032, %v6039
      %v6042 = vunpack.c.l.s4 1983009808
      %v6043 = vunpack.c.0.s8 %v6042
      %v6044 = vlaneseq
      %v6045 = vshrl.u32 %v6044, 7
      %v6046 = vsub.s32 %v6043, %v6045
      %v6047 = vrot.slane %v6033, %v6046
      %v6048 = vcombine.low %v6040, %v6047
      %v6049 = vcombine.low %v4716, %v4724
      %v6050 = vcombine.low %v4731, %v4733
      %v6052 = vunpack.c.l.s4 1983009808
      %v6053 = vunpack.c.0.s8 %v6052
      %v6054 = vlaneseq
      %v6055 = vshrl.u32 %v6054, 7
      %v6056 = vsub.s32 %v6053, %v6055
      %v6057 = vrot.slane %v6049, %v6056
      %v6059 = vunpack.c.l.s4 1983009808
      %v6060 = vunpack.c.0.s8 %v6059
      %v6061 = vlaneseq
      %v6062 = vshrl.u32 %v6061, 7
      %v6063 = vsub.s32 %v6060, %v6062
      %v6064 = vrot.slane %v6050, %v6063
      %v6065 = vcombine.low %v6057, %v6064
      %v6066 = vcombine.low %v4741, %v4749
      %v6067 = vcombine.low %v4748, %v4750
      %v6069 = vunpack.c.l.s4 1983009808
      %v6070 = vunpack.c.0.s8 %v6069
      %v6071 = vlaneseq
      %v6072 = vshrl.u32 %v6071, 7
      %v6073 = vsub.s32 %v6070, %v6072
      %v6074 = vrot.slane %v6066, %v6073
      %v6076 = vunpack.c.l.s4 1983009808
      %v6077 = vunpack.c.0.s8 %v6076
      %v6078 = vlaneseq
      %v6079 = vshrl.u32 %v6078, 7
      %v6080 = vsub.s32 %v6077, %v6079
      %v6081 = vrot.slane %v6067, %v6080
      %v6082 = vcombine.low %v6074, %v6081
      %v6083 = vcombine.low %v4766, %v4765
      %v6084 = vcombine.low %v4767, %v4775
      %v6086 = vunpack.c.l.s4 1983009808
      %v6087 = vunpack.c.0.s8 %v6086
      %v6088 = vlaneseq
      %v6089 = vshrl.u32 %v6088, 7
      %v6090 = vsub.s32 %v6087, %v6089
      %v6091 = vrot.slane %v6083, %v6090
      %v6093 = vunpack.c.l.s4 1983009808
      %v6094 = vunpack.c.0.s8 %v6093
      %v6095 = vlaneseq
      %v6096 = vshrl.u32 %v6095, 7
      %v6097 = vsub.s32 %v6094, %v6096
      %v6098 = vrot.slane %v6084, %v6097
      %v6099 = vcombine.low %v6091, %v6098
      %v6100 = vcombine.low %v4783, %v4782
      %v6101 = vcombine.low %v4792, %v4800
      %v6103 = vunpack.c.l.s4 1983009808
      %v6104 = vunpack.c.0.s8 %v6103
      %v6105 = vlaneseq
      %v6106 = vshrl.u32 %v6105, 7
      %v6107 = vsub.s32 %v6104, %v6106
      %v6108 = vrot.slane %v6100, %v6107
      %v6110 = vunpack.c.l.s4 1983009808
      %v6111 = vunpack.c.0.s8 %v6110
      %v6112 = vlaneseq
      %v6113 = vshrl.u32 %v6112, 7
      %v6114 = vsub.s32 %v6111, %v6113
      %v6115 = vrot.slane %v6101, %v6114
      %v6116 = vcombine.low %v6108, %v6115
      %v6117 = vcombine.low %v4799, %v4801
      %v6118 = vcombine.low %v4809, %v4817
      %v6120 = vunpack.c.l.s4 1983009808
      %v6121 = vunpack.c.0.s8 %v6120
      %v6122 = vlaneseq
      %v6123 = vshrl.u32 %v6122, 7
      %v6124 = vsub.s32 %v6121, %v6123
      %v6125 = vrot.slane %v6117, %v6124
      %v6127 = vunpack.c.l.s4 1983009808
      %v6128 = vunpack.c.0.s8 %v6127
      %v6129 = vlaneseq
      %v6130 = vshrl.u32 %v6129, 7
      %v6131 = vsub.s32 %v6128, %v6130
      %v6132 = vrot.slane %v6118, %v6131
      %v6133 = vcombine.low %v6125, %v6132
      %v6134 = vcombine.low %v4818, %v4826
      %v6135 = vcombine.low %v4834, %v4833
      %v6137 = vunpack.c.l.s4 1983009808
      %v6138 = vunpack.c.0.s8 %v6137
      %v6139 = vlaneseq
      %v6140 = vshrl.u32 %v6139, 7
      %v6141 = vsub.s32 %v6138, %v6140
      %v6142 = vrot.slane %v6134, %v6141
      %v6144 = vunpack.c.l.s4 1983009808
      %v6145 = vunpack.c.0.s8 %v6144
      %v6146 = vlaneseq
      %v6147 = vshrl.u32 %v6146, 7
      %v6148 = vsub.s32 %v6145, %v6147
      %v6149 = vrot.slane %v6135, %v6148
      %v6150 = vcombine.low %v6142, %v6149
      %v6151 = vcombine.low %v4835, %v4843
      %v6152 = vcombine.low %v4850, %v4852
      %v6154 = vunpack.c.l.s4 1983009808
      %v6155 = vunpack.c.0.s8 %v6154
      %v6156 = vlaneseq
      %v6157 = vshrl.u32 %v6156, 7
      %v6158 = vsub.s32 %v6155, %v6157
      %v6159 = vrot.slane %v6151, %v6158
      %v6161 = vunpack.c.l.s4 1983009808
      %v6162 = vunpack.c.0.s8 %v6161
      %v6163 = vlaneseq
      %v6164 = vshrl.u32 %v6163, 7
      %v6165 = vsub.s32 %v6162, %v6164
      %v6166 = vrot.slane %v6152, %v6165
      %v6167 = vcombine.low %v6159, %v6166
      %v6168 = vcombine.low %v4860, %v4868
      %v6169 = vcombine.low %v4867, %v4869
      %v6171 = vunpack.c.l.s4 1983009808
      %v6172 = vunpack.c.0.s8 %v6171
      %v6173 = vlaneseq
      %v6174 = vshrl.u32 %v6173, 7
      %v6175 = vsub.s32 %v6172, %v6174
      %v6176 = vrot.slane %v6168, %v6175
      %v6178 = vunpack.c.l.s4 1983009808
      %v6179 = vunpack.c.0.s8 %v6178
      %v6180 = vlaneseq
      %v6181 = vshrl.u32 %v6180, 7
      %v6182 = vsub.s32 %v6179, %v6181
      %v6183 = vrot.slane %v6169, %v6182
      %v6184 = vcombine.low %v6176, %v6183
      %6185 = vrot.lane.b32.xlu0 %v5895, 64
      %v6186 = vpop.permute.xlu0 %6185
      %6187 = vrot.lane.b32.xlu0 %v5912, 64
      %v6188 = vpop.permute.xlu0 %6187
      %6189 = vrot.lane.b32.xlu0 %v5929, 64
      %v6190 = vpop.permute.xlu0 %6189
      %6191 = vrot.lane.b32.xlu0 %v5946, 64
      %v6192 = vpop.permute.xlu0 %6191
      %6193 = vrot.lane.b32.xlu0 %v5963, 64
      %v6194 = vpop.permute.xlu0 %6193
      %6195 = vrot.lane.b32.xlu0 %v5980, 64
      %v6196 = vpop.permute.xlu0 %6195
      %6197 = vrot.lane.b32.xlu0 %v5997, 64
      %v6198 = vpop.permute.xlu0 %6197
      %6199 = vrot.lane.b32.xlu0 %v6014, 64
      %v6200 = vpop.permute.xlu0 %6199
      %6201 = vrot.lane.b32.xlu0 %v6031, 64
      %v6202 = vpop.permute.xlu0 %6201
      %6203 = vrot.lane.b32.xlu0 %v6048, 64
      %v6204 = vpop.permute.xlu0 %6203
      %6205 = vrot.lane.b32.xlu0 %v6065, 64
      %v6206 = vpop.permute.xlu0 %6205
      %6207 = vrot.lane.b32.xlu0 %v6082, 64
      %v6208 = vpop.permute.xlu0 %6207
      %6209 = vrot.lane.b32.xlu0 %v6099, 64
      %v6210 = vpop.permute.xlu0 %6209
      %6211 = vrot.lane.b32.xlu0 %v6116, 64
      %v6212 = vpop.permute.xlu0 %6211
      %6213 = vrot.lane.b32.xlu0 %v6133, 64
      %v6214 = vpop.permute.xlu0 %6213
      %6215 = vrot.lane.b32.xlu0 %v6150, 64
      %v6216 = vpop.permute.xlu0 %6215
      %6217 = vrot.lane.b32.xlu0 %v6167, 64
      %v6218 = vpop.permute.xlu0 %6217
      %6219 = vrot.lane.b32.xlu0 %v6184, 64
      %v6220 = vpop.permute.xlu0 %6219
      %v6239 = vcombine.low %v5227, %v5237
      %v6240 = vcombine.low %v5244, %v5254
      %v6241 = vcombine.low %v5261, %v5271
      %v6242 = vcombine.low %v5278, %v5288
      %v6243 = vcombine.low %v5295, %v5305
      %v6244 = vcombine.low %v5312, %v5322
      %v6245 = vcombine.low %v5329, %v5339
      %v6246 = vcombine.low %v5346, %v5356
      %v6247 = vcombine.low %v5363, %v5373
      %v6248 = vcombine.low %v5380, %v5390
      %v6249 = vcombine.low %v5397, %v5407
      %v6250 = vcombine.low %v5414, %v5424
      %v6251 = vcombine.low %v5431, %v5441
      %v6252 = vcombine.low %v5448, %v5458
      %v6253 = vcombine.low %v5465, %v5475
      %v6254 = vcombine.low %v5482, %v5492
      %v6255 = vcombine.low %v4877, %v4885
      %v6257 = vunpack.c.l.s4 1983009808
      %v6258 = vunpack.c.0.s8 %v6257
      %v6259 = vlaneseq
      %v6260 = vshrl.u32 %v6259, 7
      %v6261 = vsub.s32 %v6258, %v6260
      %v6262 = vrot.slane %v6255, %v6261
      %v6263 = vcombine.low %v5499, %v6262
      %v6264 = vcombine.low %v4884, %v4886
      %v6265 = vcombine.low %v4894, %v4902
      %v6267 = vunpack.c.l.s4 1983009808
      %v6268 = vunpack.c.0.s8 %v6267
      %v6269 = vlaneseq
      %v6270 = vshrl.u32 %v6269, 7
      %v6271 = vsub.s32 %v6268, %v6270
      %v6272 = vrot.slane %v6264, %v6271
      %v6274 = vunpack.c.l.s4 1983009808
      %v6275 = vunpack.c.0.s8 %v6274
      %v6276 = vlaneseq
      %v6277 = vshrl.u32 %v6276, 7
      %v6278 = vsub.s32 %v6275, %v6277
      %v6279 = vrot.slane %v6265, %v6278
      %v6280 = vcombine.low %v6272, %v6279
      %6281 = vrot.lane.b32.xlu0 %v6239, 96
      %v6282 = vpop.permute.xlu0 %6281
      %6283 = vrot.lane.b32.xlu0 %v6240, 96
      %v6284 = vpop.permute.xlu0 %6283
      %6285 = vrot.lane.b32.xlu0 %v6241, 96
      %v6286 = vpop.permute.xlu0 %6285
      %6287 = vrot.lane.b32.xlu0 %v6242, 96
      %v6288 = vpop.permute.xlu0 %6287
      %6289 = vrot.lane.b32.xlu0 %v6243, 96
      %v6290 = vpop.permute.xlu0 %6289
      %6291 = vrot.lane.b32.xlu0 %v6244, 96
      %v6292 = vpop.permute.xlu0 %6291
      %6293 = vrot.lane.b32.xlu0 %v6245, 96
      %v6294 = vpop.permute.xlu0 %6293
      %6295 = vrot.lane.b32.xlu0 %v6246, 96
      %v6296 = vpop.permute.xlu0 %6295
      %6297 = vrot.lane.b32.xlu0 %v6247, 96
      %v6298 = vpop.permute.xlu0 %6297
      %6299 = vrot.lane.b32.xlu0 %v6248, 96
      %v6300 = vpop.permute.xlu0 %6299
      %6301 = vrot.lane.b32.xlu0 %v6249, 96
      %v6302 = vpop.permute.xlu0 %6301
      %6303 = vrot.lane.b32.xlu0 %v6250, 96
      %v6304 = vpop.permute.xlu0 %6303
      %6305 = vrot.lane.b32.xlu0 %v6251, 96
      %v6306 = vpop.permute.xlu0 %6305
      %6307 = vrot.lane.b32.xlu0 %v6252, 96
      %v6308 = vpop.permute.xlu0 %6307
      %6309 = vrot.lane.b32.xlu0 %v6253, 96
      %v6310 = vpop.permute.xlu0 %6309
      %6311 = vrot.lane.b32.xlu0 %v6254, 96
      %v6312 = vpop.permute.xlu0 %6311
      %6313 = vrot.lane.b32.xlu0 %v6263, 96
      %v6314 = vpop.permute.xlu0 %6313
      %6315 = vrot.lane.b32.xlu0 %v6280, 96
      %v6316 = vpop.permute.xlu0 %6315
      %v6335 = vcombine.low %v5551, %v5561
      %v6336 = vcombine.low %v5568, %v5578
      %v6337 = vcombine.low %v5585, %v5595
      %v6338 = vcombine.low %v5602, %v5612
      %v6339 = vcombine.low %v5619, %v5629
      %v6340 = vcombine.low %v5636, %v5646
      %v6341 = vcombine.low %v5653, %v5663
      %v6342 = vcombine.low %v5670, %v5680
      %v6343 = vcombine.low %v5687, %v5697
      %v6344 = vcombine.low %v5704, %v5714
      %v6345 = vcombine.low %v5721, %v5731
      %v6346 = vcombine.low %v5738, %v5748
      %v6347 = vcombine.low %v5755, %v5765
      %v6348 = vcombine.low %v5772, %v5782
      %v6349 = vcombine.low %v5789, %v5799
      %v6350 = vcombine.low %v5806, %v5816
      %v6351 = vcombine.low %v5160, %v5163
      %v6353 = vunpack.c.l.s4 1983009808
      %v6354 = vunpack.c.0.s8 %v6353
      %v6355 = vlaneseq
      %v6356 = vshrl.u32 %v6355, 7
      %v6357 = vsub.s32 %v6354, %v6356
      %v6358 = vrot.slane %v6351, %v6357
      %v6359 = vcombine.low %v5823, %v6358
      %v6360 = vcombine.low %v5166, %v5169
      %v6361 = vcombine.low %v5172, %v5175
      %v6363 = vunpack.c.l.s4 1983009808
      %v6364 = vunpack.c.0.s8 %v6363
      %v6365 = vlaneseq
      %v6366 = vshrl.u32 %v6365, 7
      %v6367 = vsub.s32 %v6364, %v6366
      %v6368 = vrot.slane %v6360, %v6367
      %v6370 = vunpack.c.l.s4 1983009808
      %v6371 = vunpack.c.0.s8 %v6370
      %v6372 = vlaneseq
      %v6373 = vshrl.u32 %v6372, 7
      %v6374 = vsub.s32 %v6371, %v6373
      %v6375 = vrot.slane %v6361, %v6374
      %v6376 = vcombine.low %v6368, %v6375
      %v6395 = vcombine.low %v5911, %v5921
      %v6396 = vcombine.low %v5928, %v5938
      %v6397 = vcombine.low %v5945, %v5955
      %v6398 = vcombine.low %v5962, %v5972
      %v6399 = vcombine.low %v5979, %v5989
      %v6400 = vcombine.low %v5996, %v6006
      %v6401 = vcombine.low %v6013, %v6023
      %v6402 = vcombine.low %v6030, %v6040
      %v6403 = vcombine.low %v6047, %v6057
      %v6404 = vcombine.low %v6064, %v6074
      %v6405 = vcombine.low %v6081, %v6091
      %v6406 = vcombine.low %v6098, %v6108
      %v6407 = vcombine.low %v6115, %v6125
      %v6408 = vcombine.low %v6132, %v6142
      %v6409 = vcombine.low %v6149, %v6159
      %v6410 = vcombine.low %v6166, %v6176
      %v6411 = vcombine.low %v4885, %v4884
      %v6413 = vunpack.c.l.s4 1983009808
      %v6414 = vunpack.c.0.s8 %v6413
      %v6415 = vlaneseq
      %v6416 = vshrl.u32 %v6415, 7
      %v6417 = vsub.s32 %v6414, %v6416
      %v6418 = vrot.slane %v6411, %v6417
      %v6419 = vcombine.low %v6183, %v6418
      %v6420 = vcombine.low %v4886, %v4894
      %v6421 = vcombine.low %v4902, %v4901
      %v6423 = vunpack.c.l.s4 1983009808
      %v6424 = vunpack.c.0.s8 %v6423
      %v6425 = vlaneseq
      %v6426 = vshrl.u32 %v6425, 7
      %v6427 = vsub.s32 %v6424, %v6426
      %v6428 = vrot.slane %v6420, %v6427
      %v6430 = vunpack.c.l.s4 1983009808
      %v6431 = vunpack.c.0.s8 %v6430
      %v6432 = vlaneseq
      %v6433 = vshrl.u32 %v6432, 7
      %v6434 = vsub.s32 %v6431, %v6433
      %v6435 = vrot.slane %v6421, %v6434
      %v6436 = vcombine.low %v6428, %v6435
      %6437 = vrot.lane.b32.xlu0 %v6395, 32
      %v6438 = vpop.permute.xlu0 %6437
      %6439 = vrot.lane.b32.xlu0 %v6396, 32
      %v6440 = vpop.permute.xlu0 %6439
      %6441 = vrot.lane.b32.xlu0 %v6397, 32
      %v6442 = vpop.permute.xlu0 %6441
      %6443 = vrot.lane.b32.xlu0 %v6398, 32
      %v6444 = vpop.permute.xlu0 %6443
      %6445 = vrot.lane.b32.xlu0 %v6399, 32
      %v6446 = vpop.permute.xlu0 %6445
      %6447 = vrot.lane.b32.xlu0 %v6400, 32
      %v6448 = vpop.permute.xlu0 %6447
      %6449 = vrot.lane.b32.xlu0 %v6401, 32
      %v6450 = vpop.permute.xlu0 %6449
      %6451 = vrot.lane.b32.xlu0 %v6402, 32
      %v6452 = vpop.permute.xlu0 %6451
      %6453 = vrot.lane.b32.xlu0 %v6403, 32
      %v6454 = vpop.permute.xlu0 %6453
      %6455 = vrot.lane.b32.xlu0 %v6404, 32
      %v6456 = vpop.permute.xlu0 %6455
      %6457 = vrot.lane.b32.xlu0 %v6405, 32
      %v6458 = vpop.permute.xlu0 %6457
      %6459 = vrot.lane.b32.xlu0 %v6406, 32
      %v6460 = vpop.permute.xlu0 %6459
      %6461 = vrot.lane.b32.xlu0 %v6407, 32
      %v6462 = vpop.permute.xlu0 %6461
      %6463 = vrot.lane.b32.xlu0 %v6408, 32
      %v6464 = vpop.permute.xlu0 %6463
      %6465 = vrot.lane.b32.xlu0 %v6409, 32
      %v6466 = vpop.permute.xlu0 %6465
      %6467 = vrot.lane.b32.xlu0 %v6410, 32
      %v6468 = vpop.permute.xlu0 %6467
      %6469 = vrot.lane.b32.xlu0 %v6419, 32
      %v6470 = vpop.permute.xlu0 %6469
      %6471 = vrot.lane.b32.xlu0 %v6436, 32
      %v6472 = vpop.permute.xlu0 %6471
      %v6491 = vcombine.low %v6262, %v6272
      %v6492 = vcombine.low %v4903, %v4911
      %v6494 = vunpack.c.l.s4 1983009808
      %v6495 = vunpack.c.0.s8 %v6494
      %v6496 = vlaneseq
      %v6497 = vshrl.u32 %v6496, 7
      %v6498 = vsub.s32 %v6495, %v6497
      %v6499 = vrot.slane %v6492, %v6498
      %v6500 = vcombine.low %v6279, %v6499
      %v6501 = vcombine.low %v4919, %v4918
      %v6502 = vcombine.low %v4920, %v4927
      %v6504 = vunpack.c.l.s4 1983009808
      %v6505 = vunpack.c.0.s8 %v6504
      %v6506 = vlaneseq
      %v6507 = vshrl.u32 %v6506, 7
      %v6508 = vsub.s32 %v6505, %v6507
      %v6509 = vrot.slane %v6501, %v6508
      %v6511 = vunpack.c.l.s4 1983009808
      %v6512 = vunpack.c.0.s8 %v6511
      %v6513 = vlaneseq
      %v6514 = vshrl.u32 %v6513, 7
      %v6515 = vsub.s32 %v6512, %v6514
      %v6516 = vrot.slane %v6502, %v6515
      %v6517 = vcombine.low %v6509, %v6516
      %6518 = vrot.lane.b32.xlu0 %v5262, 64
      %v6519 = vpop.permute.xlu0 %6518
      %6520 = vrot.lane.b32.xlu0 %v5279, 64
      %v6521 = vpop.permute.xlu0 %6520
      %6522 = vrot.lane.b32.xlu0 %v5296, 64
      %v6523 = vpop.permute.xlu0 %6522
      %6524 = vrot.lane.b32.xlu0 %v5313, 64
      %v6525 = vpop.permute.xlu0 %6524
      %6526 = vrot.lane.b32.xlu0 %v5330, 64
      %v6527 = vpop.permute.xlu0 %6526
      %6528 = vrot.lane.b32.xlu0 %v5347, 64
      %v6529 = vpop.permute.xlu0 %6528
      %6530 = vrot.lane.b32.xlu0 %v5364, 64
      %v6531 = vpop.permute.xlu0 %6530
      %6532 = vrot.lane.b32.xlu0 %v5381, 64
      %v6533 = vpop.permute.xlu0 %6532
      %6534 = vrot.lane.b32.xlu0 %v5398, 64
      %v6535 = vpop.permute.xlu0 %6534
      %6536 = vrot.lane.b32.xlu0 %v5415, 64
      %v6537 = vpop.permute.xlu0 %6536
      %6538 = vrot.lane.b32.xlu0 %v5432, 64
      %v6539 = vpop.permute.xlu0 %6538
      %6540 = vrot.lane.b32.xlu0 %v5449, 64
      %v6541 = vpop.permute.xlu0 %6540
      %6542 = vrot.lane.b32.xlu0 %v5466, 64
      %v6543 = vpop.permute.xlu0 %6542
      %6544 = vrot.lane.b32.xlu0 %v5483, 64
      %v6545 = vpop.permute.xlu0 %6544
      %6546 = vrot.lane.b32.xlu0 %v5500, 64
      %v6547 = vpop.permute.xlu0 %6546
      %6548 = vrot.lane.b32.xlu0 %v6491, 64
      %v6549 = vpop.permute.xlu0 %6548
      %6550 = vrot.lane.b32.xlu0 %v6500, 64
      %v6551 = vpop.permute.xlu0 %6550
      %6552 = vrot.lane.b32.xlu0 %v6517, 64
      %v6553 = vpop.permute.xlu0 %6552
      %v6572 = vcombine.low %v6358, %v6368
      %v6573 = vcombine.low %v5179, %v5182
      %v6575 = vunpack.c.l.s4 1983009808
      %v6576 = vunpack.c.0.s8 %v6575
      %v6577 = vlaneseq
      %v6578 = vshrl.u32 %v6577, 7
      %v6579 = vsub.s32 %v6576, %v6578
      %v6580 = vrot.slane %v6573, %v6579
      %v6581 = vcombine.low %v6375, %v6580
      %v6582 = vcombine.low %v5185, %v5188
      %v6583 = vcombine.low %v5191, %v5194
      %v6585 = vunpack.c.l.s4 1983009808
      %v6586 = vunpack.c.0.s8 %v6585
      %v6587 = vlaneseq
      %v6588 = vshrl.u32 %v6587, 7
      %v6589 = vsub.s32 %v6586, %v6588
      %v6590 = vrot.slane %v6582, %v6589
      %v6592 = vunpack.c.l.s4 1983009808
      %v6593 = vunpack.c.0.s8 %v6592
      %v6594 = vlaneseq
      %v6595 = vshrl.u32 %v6594, 7
      %v6596 = vsub.s32 %v6593, %v6595
      %v6597 = vrot.slane %v6583, %v6596
      %v6598 = vcombine.low %v6590, %v6597
      %6599 = vrot.lane.b32.xlu0 %v5586, 96
      %v6600 = vpop.permute.xlu0 %6599
      %6601 = vrot.lane.b32.xlu0 %v5603, 96
      %v6602 = vpop.permute.xlu0 %6601
      %6603 = vrot.lane.b32.xlu0 %v5620, 96
      %v6604 = vpop.permute.xlu0 %6603
      %6605 = vrot.lane.b32.xlu0 %v5637, 96
      %v6606 = vpop.permute.xlu0 %6605
      %6607 = vrot.lane.b32.xlu0 %v5654, 96
      %v6608 = vpop.permute.xlu0 %6607
      %6609 = vrot.lane.b32.xlu0 %v5671, 96
      %v6610 = vpop.permute.xlu0 %6609
      %6611 = vrot.lane.b32.xlu0 %v5688, 96
      %v6612 = vpop.permute.xlu0 %6611
      %6613 = vrot.lane.b32.xlu0 %v5705, 96
      %v6614 = vpop.permute.xlu0 %6613
      %6615 = vrot.lane.b32.xlu0 %v5722, 96
      %v6616 = vpop.permute.xlu0 %6615
      %6617 = vrot.lane.b32.xlu0 %v5739, 96
      %v6618 = vpop.permute.xlu0 %6617
      %6619 = vrot.lane.b32.xlu0 %v5756, 96
      %v6620 = vpop.permute.xlu0 %6619
      %6621 = vrot.lane.b32.xlu0 %v5773, 96
      %v6622 = vpop.permute.xlu0 %6621
      %6623 = vrot.lane.b32.xlu0 %v5790, 96
      %v6624 = vpop.permute.xlu0 %6623
      %6625 = vrot.lane.b32.xlu0 %v5807, 96
      %v6626 = vpop.permute.xlu0 %6625
      %6627 = vrot.lane.b32.xlu0 %v5824, 96
      %v6628 = vpop.permute.xlu0 %6627
      %6629 = vrot.lane.b32.xlu0 %v6572, 96
      %v6630 = vpop.permute.xlu0 %6629
      %6631 = vrot.lane.b32.xlu0 %v6581, 96
      %v6632 = vpop.permute.xlu0 %6631
      %6633 = vrot.lane.b32.xlu0 %v6598, 96
      %v6634 = vpop.permute.xlu0 %6633
      %v6653 = vcombine.low %v6418, %v6428
      %v6654 = vcombine.low %v4911, %v4919
      %v6656 = vunpack.c.l.s4 1983009808
      %v6657 = vunpack.c.0.s8 %v6656
      %v6658 = vlaneseq
      %v6659 = vshrl.u32 %v6658, 7
      %v6660 = vsub.s32 %v6657, %v6659
      %v6661 = vrot.slane %v6654, %v6660
      %v6662 = vcombine.low %v6435, %v6661
      %v6663 = vcombine.low %v4918, %v4920
      %v6664 = vcombine.low %v4927, %v4928
      %v6666 = vunpack.c.l.s4 1983009808
      %v6667 = vunpack.c.0.s8 %v6666
      %v6668 = vlaneseq
      %v6669 = vshrl.u32 %v6668, 7
      %v6670 = vsub.s32 %v6667, %v6669
      %v6671 = vrot.slane %v6663, %v6670
      %v6673 = vunpack.c.l.s4 1983009808
      %v6674 = vunpack.c.0.s8 %v6673
      %v6675 = vlaneseq
      %v6676 = vshrl.u32 %v6675, 7
      %v6677 = vsub.s32 %v6674, %v6676
      %v6678 = vrot.slane %v6664, %v6677
      %v6679 = vcombine.low %v6671, %v6678
      %v6680 = vsel %vm4155, %v5211, %v5826
      %v6681 = vsel %vm4155, %v5228, %v5828
      %v6682 = vsel %vm4155, %v5245, %v5830
      %v6683 = vsel %vm4155, %v5262, %v5832
      %v6684 = vsel %vm4155, %v5279, %v5834
      %v6685 = vsel %vm4155, %v5296, %v5836
      %v6686 = vsel %vm4155, %v5313, %v5838
      %v6687 = vsel %vm4155, %v5330, %v5840
      %v6688 = vsel %vm4155, %v5347, %v5842
      %v6689 = vsel %vm4155, %v5364, %v5844
      %v6690 = vsel %vm4155, %v5381, %v5846
      %v6691 = vsel %vm4155, %v5398, %v5848
      %v6692 = vsel %vm4155, %v5415, %v5850
      %v6693 = vsel %vm4155, %v5432, %v5852
      %v6694 = vsel %vm4155, %v5449, %v5854
      %v6695 = vsel %vm4155, %v5466, %v5856
      %v6696 = vsel %vm4155, %v5483, %v5858
      %v6697 = vsel %vm4155, %v5500, %v5860
      %vm6698 = vcmask 523264
      %v6699 = vsel %vm6698, %v6680, %v6186
      %v6700 = vsel %vm6698, %v6681, %v6188
      %v6701 = vsel %vm6698, %v6682, %v6190
      %v6702 = vsel %vm6698, %v6683, %v6192
      %v6703 = vsel %vm6698, %v6684, %v6194
      %v6704 = vsel %vm6698, %v6685, %v6196
      %v6705 = vsel %vm6698, %v6686, %v6198
      %v6706 = vsel %vm6698, %v6687, %v6200
      %v6707 = vsel %vm6698, %v6688, %v6202
      %v6708 = vsel %vm6698, %v6689, %v6204
      %v6709 = vsel %vm6698, %v6690, %v6206
      %v6710 = vsel %vm6698, %v6691, %v6208
      %v6711 = vsel %vm6698, %v6692, %v6210
      %v6712 = vsel %vm6698, %v6693, %v6212
      %v6713 = vsel %vm6698, %v6694, %v6214
      %v6714 = vsel %vm6698, %v6695, %v6216
      %v6715 = vsel %vm6698, %v6696, %v6218
      %v6716 = vsel %vm6698, %v6697, %v6220
      %vm6717 = vcmask 785408
      %v6718 = vsel %vm6717, %v6699, %v6282
      %v6719 = vsel %vm6717, %v6700, %v6284
      %v6720 = vsel %vm6717, %v6701, %v6286
      %v6721 = vsel %vm6717, %v6702, %v6288
      %v6722 = vsel %vm6717, %v6703, %v6290
      %v6723 = vsel %vm6717, %v6704, %v6292
      %v6724 = vsel %vm6717, %v6705, %v6294
      %v6725 = vsel %vm6717, %v6706, %v6296
      %v6726 = vsel %vm6717, %v6707, %v6298
      %v6727 = vsel %vm6717, %v6708, %v6300
      %v6728 = vsel %vm6717, %v6709, %v6302
      %v6729 = vsel %vm6717, %v6710, %v6304
      %v6730 = vsel %vm6717, %v6711, %v6306
      %v6731 = vsel %vm6717, %v6712, %v6308
      %v6732 = vsel %vm6717, %v6713, %v6310
      %v6733 = vsel %vm6717, %v6714, %v6312
      %v6734 = vsel %vm6717, %v6715, %v6314
      %v6735 = vsel %vm6717, %v6716, %v6316
      %v6736 = vsel %vm4155, %v6335, %v6438
      %v6737 = vsel %vm4155, %v6336, %v6440
      %v6738 = vsel %vm4155, %v6337, %v6442
      %v6739 = vsel %vm4155, %v6338, %v6444
      %v6740 = vsel %vm4155, %v6339, %v6446
      %v6741 = vsel %vm4155, %v6340, %v6448
      %v6742 = vsel %vm4155, %v6341, %v6450
      %v6743 = vsel %vm4155, %v6342, %v6452
      %v6744 = vsel %vm4155, %v6343, %v6454
      %v6745 = vsel %vm4155, %v6344, %v6456
      %v6746 = vsel %vm4155, %v6345, %v6458
      %v6747 = vsel %vm4155, %v6346, %v6460
      %v6748 = vsel %vm4155, %v6347, %v6462
      %v6749 = vsel %vm4155, %v6348, %v6464
      %v6750 = vsel %vm4155, %v6349, %v6466
      %v6751 = vsel %vm4155, %v6350, %v6468
      %v6752 = vsel %vm4155, %v6359, %v6470
      %v6753 = vsel %vm4155, %v6376, %v6472
      %v6754 = vsel %vm6698, %v6736, %v6519
      %v6755 = vsel %vm6698, %v6737, %v6521
      %v6756 = vsel %vm6698, %v6738, %v6523
      %v6757 = vsel %vm6698, %v6739, %v6525
      %v6758 = vsel %vm6698, %v6740, %v6527
      %v6759 = vsel %vm6698, %v6741, %v6529
      %v6760 = vsel %vm6698, %v6742, %v6531
      %v6761 = vsel %vm6698, %v6743, %v6533
      %v6762 = vsel %vm6698, %v6744, %v6535
      %v6763 = vsel %vm6698, %v6745, %v6537
      %v6764 = vsel %vm6698, %v6746, %v6539
      %v6765 = vsel %vm6698, %v6747, %v6541
      %v6766 = vsel %vm6698, %v6748, %v6543
      %v6767 = vsel %vm6698, %v6749, %v6545
      %v6768 = vsel %vm6698, %v6750, %v6547
      %v6769 = vsel %vm6698, %v6751, %v6549
      %v6770 = vsel %vm6698, %v6752, %v6551
      %v6771 = vsel %vm6698, %v6753, %v6553
      %v6772 = vsel %vm6717, %v6754, %v6600
      %v6773 = vsel %vm6717, %v6755, %v6602
      %v6774 = vsel %vm6717, %v6756, %v6604
      %v6775 = vsel %vm6717, %v6757, %v6606
      %v6776 = vsel %vm6717, %v6758, %v6608
      %v6777 = vsel %vm6717, %v6759, %v6610
      %v6778 = vsel %vm6717, %v6760, %v6612
      %v6779 = vsel %vm6717, %v6761, %v6614
      %v6780 = vsel %vm6717, %v6762, %v6616
      %v6781 = vsel %vm6717, %v6763, %v6618
      %v6782 = vsel %vm6717, %v6764, %v6620
      %v6783 = vsel %vm6717, %v6765, %v6622
      %v6784 = vsel %vm6717, %v6766, %v6624
      %v6785 = vsel %vm6717, %v6767, %v6626
      %v6786 = vsel %vm6717, %v6768, %v6628
      %v6787 = vsel %vm6717, %v6769, %v6630
      %v6788 = vsel %vm6717, %v6770, %v6632
      %v6789 = vsel %vm6717, %v6771, %v6634
      %v6790 = vld [vmem:[%s3] sm:$0xff]
      %v6791 = vld [vmem:[%s3 + $0x8] sm:$0xf]
      %v6792 = vld [vmem:[%s4] sm:$0xf]
      %6794 = vset.pattern.permute.xlu0 0
      %6795 = vperm.xlu0 %6794, %v6792
      %v6796 = vpop.permute.xlu0 %6795
      %v6800 = vcombine.high %v6790, %v6790
      %v6802 = vsel %vm4155, %v6791, 0
      %v6804 = vsel %vm4155, %v5946, 0
      %v6806 = vsel %vm4155, %v5963, 0
      %v6808 = vsel %vm4155, %v5980, 0
      %v6810 = vsel %vm4155, %v5997, 0
      %v6812 = vsel %vm4155, %v6014, 0
      %v6814 = vsel %vm4155, %v6031, 0
      %v6816 = vsel %vm4155, %v6048, 0
      %v6818 = vsel %vm4155, %v6065, 0
      %v6820 = vsel %vm4155, %v6082, 0
      %v6822 = vsel %vm4155, %v6099, 0
      %v6824 = vsel %vm4155, %v6116, 0
      %v6826 = vsel %vm4155, %v6133, 0
      %v6828 = vsel %vm4155, %v6150, 0
      %v6830 = vsel %vm4155, %v6167, 0
      %v6832 = vsel %vm4155, %v6184, 0
      %v6834 = vsel %vm4155, %v6653, 0
      %v6836 = vsel %vm4155, %v6662, 0
      %v6838 = vsel %vm4155, %v6679, 0
      %6840 = vmatprep.subr.mxu0 %v6772
      %6841 = vmatpush1.xpose.msra.mxu0 %v6718
      %6842 = vmatprep.subr.mxu0 %v6773
      %6843 = vmatpush1.xpose.msra.mxu0 %v6719
      %6844 = vmatprep.subr.mxu0 %v6774
      %6845 = vmatpush1.xpose.msra.mxu0 %v6720
      %6846 = vmatprep.subr.mxu0 %v6775
      %6847 = vmatpush1.xpose.msra.mxu0 %v6721
      %6848 = vmatprep.subr.mxu0 %v6776
      %6849 = vmatpush1.xpose.msra.mxu0 %v6722
      %6850 = vmatprep.subr.mxu0 %v6777
      %6851 = vmatpush1.xpose.msra.mxu0 %v6723
      %6852 = vmatprep.subr.mxu0 %v6778
      %6853 = vmatpush1.xpose.msra.mxu0 %v6724
      %6854 = vmatprep.subr.mxu0 %v6779
      %6855 = vmatpush1.xpose.msra.mxu0 %v6725
      %6856 = vmatprep.subr.mxu0 %v6780
      %6857 = vmatpush1.xpose.msra.mxu0 %v6726
      %6858 = vmatprep.subr.mxu0 %v6781
      %6859 = vmatpush1.xpose.msra.mxu0 %v6727
      %6860 = vmatprep.subr.mxu0 %v6782
      %6861 = vmatpush1.xpose.msra.mxu0 %v6728
      %6862 = vmatprep.subr.mxu0 %v6783
      %6863 = vmatpush1.xpose.msra.mxu0 %v6729
      %6864 = vmatprep.subr.mxu0 %v6784
      %6865 = vmatpush1.xpose.msra.mxu0 %v6730
      %6866 = vmatprep.subr.mxu0 %v6785
      %6867 = vmatpush1.xpose.msra.mxu0 %v6731
      %6868 = vmatprep.subr.mxu0 %v6786
      %6869 = vmatpush1.xpose.msra.mxu0 %v6732
      %6870 = vmatprep.subr.mxu0 %v6787
      %6871 = vmatpush1.xpose.msra.mxu0 %v6733
      %6872 = vmatprep.subr.mxu0 %v6788
      %6873 = vmatpush1.xpose.msra.mxu0 %v6734
      %6874 = vmatprep.subr.mxu0 %v6789
      %6875 = vmatpush1.xpose.msra.mxu0 %v6735
      %6876 = vmatprep.subr.mxu0 0.0
      %6877 = vmatpush1.xpose.msra.mxu0 0.0
      %6878 = vmatprep.subr.mxu0 0.0
      %6879 = vmatpush1.xpose.msra.mxu0 0.0
      %6880 = vmatprep.subr.mxu0 0.0
      %6881 = vmatpush1.xpose.msra.mxu0 0.0
      %6882 = vmatprep.subr.mxu0 0.0
      %6883 = vmatpush1.xpose.msra.mxu0 0.0
      %6884 = vmatprep.subr.mxu0 0.0
      %6885 = vmatpush1.xpose.msra.mxu0 0.0
      %6886 = vmatprep.subr.mxu0 0.0
      %6887 = vmatpush1.xpose.msra.mxu0 0.0
      %6888 = vmatprep.subr.mxu0 0.0
      %6889 = vmatpush1.xpose.msra.mxu0 0.0
      %6890 = vmatprep.subr.mxu0 0.0
      %6891 = vmatpush1.xpose.msra.mxu0 0.0
      %6892 = vmatprep.subr.mxu0 0.0
      %6893 = vmatpush1.xpose.msra.mxu0 0.0
      %6894 = vmatprep.subr.mxu0 0.0
      %6895 = vmatpush1.xpose.msra.mxu0 0.0
      %6896 = vmatprep.subr.mxu0 0.0
      %6897 = vmatpush1.xpose.msra.mxu0 0.0
      %6898 = vmatprep.subr.mxu0 0.0
      %6899 = vmatpush1.xpose.msra.mxu0 0.0
      %6900 = vmatprep.subr.mxu0 0.0
      %6901 = vmatpush1.xpose.msra.mxu0 0.0
      %6902 = vmatprep.subr.mxu0 0.0
      %6903 = vmatpush1.xpose.msra.mxu0 0.0
      %6904 = vmatprep.mubr.f32.mxu0 %v6800
      %6905 = vmatmul.mubr.f32.gmra.mrb[0].mxu0 %v6790
      %v6906 = vpop.f32.mrb[0].mxu0
      %v6907 = vadd.f32 %v6796, %v6906
      %v6908 = vpop.f32.mrb[0].mxu0
      %v6909 = vadd.f32 %v6796, %v6908
      %6910 = vdwg.mxu0
      %6911 = vmatprep.subr.mxu0 0.0
      %6912 = vmatpush1.xpose.msra.mxu0 %v6804
      %6913 = vmatprep.subr.mxu0 0.0
      %6914 = vmatpush1.xpose.msra.mxu0 %v6806
      %6915 = vmatprep.subr.mxu0 0.0
      %6916 = vmatpush1.xpose.msra.mxu0 %v6808
      %6917 = vmatprep.subr.mxu0 0.0
      %6918 = vmatpush1.xpose.msra.mxu0 %v6810
      %6919 = vmatprep.subr.mxu0 0.0
      %6920 = vmatpush1.xpose.msra.mxu0 %v6812
      %6921 = vmatprep.subr.mxu0 0.0
      %6922 = vmatpush1.xpose.msra.mxu0 %v6814
      %6923 = vmatprep.subr.mxu0 0.0
      %6924 = vmatpush1.xpose.msra.mxu0 %v6816
      %6925 = vmatprep.subr.mxu0 0.0
      %6926 = vmatpush1.xpose.msra.mxu0 %v6818
      %6927 = vmatprep.subr.mxu0 0.0
      %6928 = vmatpush1.xpose.msra.mxu0 %v6820
      %6929 = vmatprep.subr.mxu0 0.0
      %6930 = vmatpush1.xpose.msra.mxu0 %v6822
      %6931 = vmatprep.subr.mxu0 0.0
      %6932 = vmatpush1.xpose.msra.mxu0 %v6824
      %6933 = vmatprep.subr.mxu0 0.0
      %6934 = vmatpush1.xpose.msra.mxu0 %v6826
      %6935 = vmatprep.subr.mxu0 0.0
      %6936 = vmatpush1.xpose.msra.mxu0 %v6828
      %6937 = vmatprep.subr.mxu0 0.0
      %6938 = vmatpush1.xpose.msra.mxu0 %v6830
      %6939 = vmatprep.subr.mxu0 0.0
      %6940 = vmatpush1.xpose.msra.mxu0 %v6832
      %6941 = vmatprep.subr.mxu0 0.0
      %6942 = vmatpush1.xpose.msra.mxu0 %v6834
      %6943 = vmatprep.subr.mxu0 0.0
      %6944 = vmatpush1.xpose.msra.mxu0 %v6836
      %6945 = vmatprep.subr.mxu0 0.0
      %6946 = vmatpush1.xpose.msra.mxu0 %v6838
      %6947 = vmatprep.subr.mxu0 0.0
      %6948 = vmatpush1.xpose.msra.mxu0 0.0
      %6949 = vmatprep.subr.mxu0 0.0
      %6950 = vmatpush1.xpose.msra.mxu0 0.0
      %6951 = vmatprep.subr.mxu0 0.0
      %6952 = vmatpush1.xpose.msra.mxu0 0.0
      %6953 = vmatprep.subr.mxu0 0.0
      %6954 = vmatpush1.xpose.msra.mxu0 0.0
      %6955 = vmatprep.subr.mxu0 0.0
      %6956 = vmatpush1.xpose.msra.mxu0 0.0
      %6957 = vmatprep.subr.mxu0 0.0
      %6958 = vmatpush1.xpose.msra.mxu0 0.0
      %6959 = vmatprep.subr.mxu0 0.0
      %6960 = vmatpush1.xpose.msra.mxu0 0.0
      %6961 = vmatprep.subr.mxu0 0.0
      %6962 = vmatpush1.xpose.msra.mxu0 0.0
      %6963 = vmatprep.subr.mxu0 0.0
      %6964 = vmatpush1.xpose.msra.mxu0 0.0
      %6965 = vmatprep.subr.mxu0 0.0
      %6966 = vmatpush1.xpose.msra.mxu0 0.0
      %6967 = vmatprep.subr.mxu0 0.0
      %6968 = vmatpush1.xpose.msra.mxu0 0.0
      %6969 = vmatprep.subr.mxu0 0.0
      %6970 = vmatpush1.xpose.msra.mxu0 0.0
      %6971 = vmatprep.subr.mxu0 0.0
      %6972 = vmatpush1.xpose.msra.mxu0 0.0
      %6973 = vmatprep.subr.mxu0 0.0
      %6974 = vmatpush1.xpose.msra.mxu0 0.0
      %6975 = vmatprep.mubr.f32.mxu0 0.0
      %6976 = vmatmul.mubr.f32.gmra.mrb[0].mxu0 %v6802
      %v6977 = vpop.f32.mrb[0].mxu0
      %v6978 = vadd.f32 %v6907, %v6977
      %v6979 = vpop.f32.mrb[0].mxu0
      %v6980 = vadd.f32 %v6909, %v6979
      %6981 = vdwg.mxu0
      %v6984 = vcombine.low %v6978, %v6980
      %vm6986 = vcmask 130052
      %vm6987 = vmor %vm6986, %vm4269
      %6988 = vst.msk [vmem:[%s224] sm:$0xff] %vm6987, %v6984
      %p6989 = scmp.lt.s32.totalorder %s16, 1
      %s6990 = scalar_select %p6989, %s16, 1
      %s6991 = smul.addr %s6990, 2
      %s6992 = smul.addr %s6991, 4
      %s6993 = scalar_lea.vmem %s5, %s6992
      // Predicated region
      $region41: #{ca_forward.1} parent=39 // pred_check
        %p6994 = pneg %p144
      $region42: #{ca_forward.1} parent=39 // pred_check_branch
        %6996 = sbr.rel (%p6994) target = $region44
      $region43: #{ca_forward.1} parent=39 // pred_region
        _
      $region44: #{ca_forward.1} parent=39 // pred_fallthru
        _
    $region40: #{ca_forward.1} parent=5 // pred_fallthru
      _
    %p6997 = scmp.le.s32.totalorder 2, %s11
    // Predicated region
    $region45: #{ca_forward.1} parent=5 // pred_check
      %p6998 = pneg %p6997
    $region46: #{ca_forward.1} parent=5 // pred_check_branch
      %7000 = sbr.rel (%p6998) target = $region48
    $region47: #{ca_forward.1} parent=5 // pred_region
      %s7001 = ssub.s32 %s11, 2
      // Predicated region
      $region49: #{ca_forward.1} parent=47 // pred_check
        %p7002 = pneg %p150
      $region50: #{ca_forward.1} parent=47 // pred_check_branch
        %7004 = sbr.rel (%p7002) target = $region52
      $region51: #{ca_forward.1} parent=47 // pred_region
        %p7005 = scmp.lt.s32.totalorder %s17, 1
        %s7006 = scalar_select %p7005, %s17, 1
        %s7007 = smul.addr %s7006, 2
        %s7008 = smul.addr %s7007, 4
        %s7009 = scalar_lea.vmem %s5, %s7008
      $region52: #{ca_forward.1} parent=47 // pred_fallthru
        _
    $region48: #{ca_forward.1} parent=5 // pred_fallthru
      _
  $region6: #{ca_forward.1} parent=0 // loop_footer
    %s15 = sadd.s32 1, %s11
  $region7: #{ca_forward.1} parent=0 // loop_footer_branch
    %10 = sbr.rel target = $region3
  $region8: #{ca_forward.1} parent=0 // loop_exit
    _

</llo_original>
